<compile_context>
chip_gen: v7x
topology: tpu7x:2x2x1
jax: 0.10.0
libtpu: 0.0.40
codegen_flags: <defaults>
</compile_context>

<pallas_src>
import functools

import jax
import jax.numpy as jnp
from jax import lax
from jax.experimental import pallas as pl
from jax.experimental.pallas import tpu as pltpu

# mmcv ConvModule(act_cfg=dict(type='LeakyReLU')) -> nn.LeakyReLU() default slope.
LEAKY_SLOPE = 0.01
BN_EPS = 1e-5


# ------------------------------ Pallas kernel ------------------------------- #

def conv_s2_kernel(*refs, toh, ow, cout, slope, fuse_lrelu, has_bias,
                   compute_stats):
    """One (image, output-row-band) step of a 4x4/stride-2/pad-1 conv.

    Inputs are in space-to-depth ("parity split") layout, so the conv is a
    stride-1 2x2 conv with 4*Cin channels per tap: for every output row we
    accumulate 4 unit-stride (OW, 4*Cin) x (4*Cin, Cout) MXU dots in f32.
    Optionally fuses bias + LeakyReLU (no-norm layer) or per-band channel
    sum / sum-of-squares partials (BatchNorm layers).
    """
    xq_ref, wq_ref = refs[0], refs[1]
    idx = 2
    b_ref = None
    if has_bias:
        b_ref = refs[idx]
        idx += 1
    y_ref = refs[idx]
    idx += 1
    psum_ref = psumsq_ref = None
    if compute_stats:
        psum_ref, psumsq_ref = refs[idx], refs[idx + 1]

    n = pl.program_id(0)
    oh0 = pl.program_id(1) * toh

    if compute_stats:
        s = jnp.zeros((1, cout), jnp.float32)
        ss = jnp.zeros((1, cout), jnp.float32)

    for t in range(toh):                          # static unroll over the band
        acc = jnp.zeros((ow, cout), jnp.float32)
        for dr in range(2):
            for dc in range(2):
                # (OW, 4*Cin) bf16, unit-stride gather from the resident slab.
                lhs = xq_ref[n, oh0 + t + dr, pl.ds(dc, ow), :]
                acc = acc + jnp.dot(lhs, wq_ref[dr, dc],
                                    preferred_element_type=jnp.float32)
        if has_bias:
            acc = acc + b_ref[...]
        if fuse_lrelu:
            acc = jnp.where(acc >= 0.0, acc, slope * acc)
        y_ref[0, t] = acc.astype(y_ref.dtype)     # bf16 activation store
        if compute_stats:
            # All rows in the band are valid (TOH divides OH) -> no masking.
            s = s + jnp.sum(acc, axis=0, keepdims=True)
            ss = ss + jnp.sum(acc * acc, axis=0, keepdims=True)

    if compute_stats:
        psum_ref[0, 0] = s
        psumsq_ref[0, 0] = ss


# ------------------------------- JAX wrappers -------------------------------- #

def _choose_toh(oh, ow, n_img):
    """Output-row band size: ~512 flattened rows per grid step, divides OH."""
    target = max(1, 512 // max(ow, 1))
    toh = min(oh, target)
    if n_img == 1 and oh > 1:          # guarantee >= 2 grid steps (v7x 2 TCs)
        toh = min(toh, max(1, oh // 2))
    while oh % toh:
        toh -= 1
    return toh


def _const_block_spec(shape, grid_rank):
    """Whole-array, constant-index block; single-buffered when supported."""
    index_map = lambda *_: (0,) * len(shape)
    del grid_rank
    try:
        return pl.BlockSpec(shape, index_map, pipeline_mode=pl.Buffered(1))
    except TypeError:   # older jax without pipeline_mode: default buffering
        return pl.BlockSpec(shape, index_map)


def space_to_depth_pad(a, pad=1):
    """(N,H,W,C) -> zero-pad -> parity split -> (N, H/2+pad, W/2+pad, 4C)."""
    n, h, w, c = a.shape
    ap = jnp.pad(a, ((0, 0), (pad, pad), (pad, pad), (0, 0)))
    hp, wp = h + 2 * pad, w + 2 * pad
    xq = ap.reshape(n, hp // 2, 2, wp // 2, 2, c)
    xq = xq.transpose(0, 1, 3, 2, 4, 5)           # (n, r, c, pr, pc, ci)
    return xq.reshape(n, hp // 2, wp // 2, 4 * c)


def conv_down_pallas(xq, wq, bias, *, oh, ow, cout, fuse_lrelu, compute_stats):
    """Pallas call for one 4x4/stride-2/pad-1 downsample conv."""
    n_img, hq, wq_dim, cin4 = xq.shape
    toh = _choose_toh(oh, ow, n_img)
    g1 = oh // toh

    kernel = functools.partial(
        conv_s2_kernel, toh=toh, ow=ow, cout=cout, slope=LEAKY_SLOPE,
        fuse_lrelu=fuse_lrelu, has_bias=bias is not None,
        compute_stats=compute_stats)

    in_specs = [
        _const_block_spec((n_img, hq, wq_dim, cin4), 2),   # activation slab
        _const_block_spec((2, 2, cin4, cout), 2),          # 2x2-tap weight
    ]
    inputs = [xq, wq]
    if bias is not None:
        in_specs.append(pl.BlockSpec((1, cout), lambda i, j: (0, 0)))
        inputs.append(bias)

    y_shape = jax.ShapeDtypeStruct((n_img, oh, ow, cout), jnp.bfloat16)
    y_spec = pl.BlockSpec((1, toh, ow, cout), lambda i, j: (i, j, 0, 0))
    cp = pltpu.CompilerParams(dimension_semantics=("parallel", "parallel"))

    if compute_stats:
        stat_shape = jax.ShapeDtypeStruct((n_img, g1, 1, cout), jnp.float32)
        stat_spec = pl.BlockSpec((1, 1, 1, cout), lambda i, j: (i, j, 0, 0))
        return pl.pallas_call(
            kernel,
            out_shape=(y_shape, stat_shape, stat_shape),
            grid=(n_img, g1),
            in_specs=in_specs,
            out_specs=(y_spec, stat_spec, stat_spec),
            compiler_params=cp,
        )(*inputs)

    return pl.pallas_call(
        kernel,
        out_shape=y_shape,
        grid=(n_img, g1),
        in_specs=in_specs,
        out_specs=y_spec,
        compiler_params=cp,
    )(*inputs)


# --------------------------- Parameters & model ----------------------------- #

def init_params(key, in_channels, base_channels, out_channels, num_downsamples):
    """Deterministic init matching DCGANDiscriminator.init_weights(None)."""
    params = {"down": []}
    curr = in_channels
    for i in range(num_downsamples):
        ch = base_channels * (2 ** i)
        key, kw_, kbn = jax.random.split(key, 3)
        w = 0.02 * jax.random.normal(kw_, (ch, curr, 4, 4), jnp.float32)
        if i == 0:
            b = jnp.zeros((ch,), jnp.float32)       # conv bias (no norm layer)
            bn = None
        else:
            b = None                                 # bias='auto' -> False w/ BN
            bn = (jax.random.normal(kbn, (ch,), jnp.float32),   # gamma ~ N(0,1)
                  jnp.zeros((ch,), jnp.float32))                # beta = 0
        params["down"].append((w, b, bn))
        curr = ch
    key, kw_ = jax.random.split(key)
    params["w_out"] = 0.02 * jax.random.normal(kw_, (out_channels, curr, 4, 4),
                                               jnp.float32)
    params["b_out"] = jnp.zeros((out_channels,), jnp.float32)
    return params


def prep_down_weight(w):
    """(Cout, Cin, 4, 4) -> (2, 2, 4*Cin, Cout) bf16, matching the slab packing."""
    cout, cin, kh, kw = w.shape
    assert kh == 4 and kw == 4
    wt = jnp.transpose(w, (2, 3, 1, 0))            # (KH, KW, Cin, Cout)
    wt = wt.reshape(2, 2, 2, 2, cin, cout)         # (dr, pr, dc, pc, Cin, Cout)
    wt = wt.transpose(0, 2, 1, 3, 4, 5)            # (dr, dc, pr, pc, Cin, Cout)
    return wt.reshape(2, 2, 4 * cin, cout).astype(jnp.bfloat16)


def prepare_params(params):
    """Hoisted, one-time weight re-layouts (nothing per-forward)."""
    prepared = {"down": []}
    for (w, b, bn) in params["down"]:
        layer = {
            "wq": prep_down_weight(w),
            "cout": int(w.shape[0]),
            "bias": None if b is None else b.reshape(1, -1).astype(jnp.float32),
            "bn": bn is not None,
        }
        if bn is not None:
            layer["gamma"], layer["beta"] = bn
        prepared["down"].append(layer)
    prepared["w_out_hwio"] = jnp.transpose(params["w_out"], (2, 3, 1, 0))
    prepared["b_out"] = params["b_out"]
    return prepared


def dcgan_discriminator_forward(x_nchw, prepared):
    n = x_nchw.shape[0]
    a = jnp.transpose(x_nchw, (0, 2, 3, 1))        # NCHW -> NHWC once
    pending = None                                 # (scale, shift) of previous BN

    for layer in prepared["down"]:
        if pending is not None:                    # fold BN affine + LeakyReLU of
            scale, shift = pending                 # the previous layer into the
            a = a.astype(jnp.float32) * scale + shift   # slab prep (f32 math)
            a = jnp.where(a >= 0.0, a, LEAKY_SLOPE * a)
        xq = space_to_depth_pad(a, pad=1).astype(jnp.bfloat16)
        oh, ow = a.shape[1] // 2, a.shape[2] // 2

        if layer["bn"]:
            y, psum, psumsq = conv_down_pallas(
                xq, layer["wq"], None, oh=oh, ow=ow, cout=layer["cout"],
                fuse_lrelu=False, compute_stats=True)
            cnt = float(n * oh * ow)
            mean = jnp.sum(psum, axis=(0, 1, 2)) / cnt
            var = jnp.maximum(jnp.sum(psumsq, axis=(0, 1, 2)) / cnt - mean * mean,
                              0.0)                 # biased (PyTorch train mode)
            scale = layer["gamma"] / jnp.sqrt(var + BN_EPS)
            shift = layer["beta"] - mean * scale
            pending = (scale, shift)
        else:
            y = conv_down_pallas(
                xq, layer["wq"], layer["bias"], oh=oh, ow=ow, cout=layer["cout"],
                fuse_lrelu=True, compute_stats=False)
            pending = None
        a = y                                      # bf16 activation between layers

    if pending is not None:                        # last downsample's BN + lrelu
        scale, shift = pending
        a = a.astype(jnp.float32) * scale + shift
        a = jnp.where(a >= 0.0, a, LEAKY_SLOPE * a)
    else:
        a = a.astype(jnp.float32)

    # Final output conv (4x4, stride 1, pad 0, out_act_cfg=None): tiny
    # (M = batch, Cout = out_channels) -> left to XLA per the perf review.
    out = lax.conv_general_dilated(
        a, prepared["w_out_hwio"], (1, 1), [(0, 0), (0, 0)],
        dimension_numbers=("NHWC", "HWIO", "NCHW"),
        precision=lax.Precision.HIGHEST)
    out = out + prepared["b_out"][None, :, None, None]
    return out.reshape(n, -1)                      # PyTorch view(n, -1) order


# ------------------------------ Reference (JAX) ----------------------------- #

def _ref_conv(x, w, stride, pad):
    return lax.conv_general_dilated(
        x, w, (stride, stride), [(pad, pad), (pad, pad)],
        dimension_numbers=("NCHW", "OIHW", "NCHW"),
        precision=lax.Precision.HIGHEST)


def ref_forward(x, params):
    n = x.shape[0]
    y = x
    for (w, b, bn) in params["down"]:
        y = _ref_conv(y, w, 2, 1)
        if b is not None:
            y = y + b[None, :, None, None]
        if bn is not None:
            gamma, beta = bn
            mean = y.mean(axis=(0, 2, 3), keepdims=True)
            var = y.var(axis=(0, 2, 3), keepdims=True)
            y = (y - mean) / jnp.sqrt(var + BN_EPS)
            y = y * gamma[None, :, None, None] + beta[None, :, None, None]
        y = jnp.where(y >= 0.0, y, LEAKY_SLOPE * y)
    y = _ref_conv(y, params["w_out"], 1, 0) + params["b_out"][None, :, None, None]
    return y.reshape(n, -1)


# ----------------------------------- Main ----------------------------------- #

if __name__ == "__main__":
    # input_scale=16, output_scale=4 -> num_downsamples = log2(16 // 4) = 2
    input_scale, output_scale = 16, 4
    in_channels, base_channels, out_channels = 4, 32, 5
    num_downsamples = (input_scale // output_scale).bit_length() - 1
    batch = 2

    key = jax.random.PRNGKey(0)
    key, kx = jax.random.split(key)
    x = jax.random.normal(kx, (batch, in_channels, input_scale, input_scale),
                          jnp.float32)

    params = init_params(key, in_channels, base_channels, out_channels,
                         num_downsamples)
    prepared = prepare_params(params)

    fwd = jax.jit(lambda xx: dcgan_discriminator_forward(xx, prepared))
    out = jax.block_until_ready(fwd(x))
    ref = jax.block_until_ready(ref_forward(x, params))

    assert out.shape == ref.shape == (batch, out_channels), (out.shape, ref.shape)
    max_diff = float(jnp.max(jnp.abs(out - ref)))
    # bf16 MXU operands + bf16 inter-layer activation storage vs. an all-f32
    # HIGHEST-precision reference: a 2e-2 tolerance is tight enough to catch
    # real indexing/statistics bugs (those show up as O(0.1-1) errors).
    assert jnp.allclose(out, ref, rtol=2e-2, atol=2e-2), (
        f"mismatch: max abs diff {max_diff}")

    print("KERNEL_OK")
</pallas_src>

<mosaic_0001>
module attributes {stable_mosaic.version = 11 : i64} {
  func.func @conv_s2_kernel(%arg0: i32, %arg1: i32, %arg2: memref<2x9x9x16xbf16, #tpu.memory_space<vmem>>, %arg3: memref<2x2x16x32xbf16, #tpu.memory_space<vmem>>, %arg4: memref<1x32xf32, #tpu.memory_space<vmem>>, %arg5: memref<1x8x8x32xbf16, #tpu.memory_space<vmem>>) attributes {dimension_semantics = [#tpu.dimension_semantics<parallel>, #tpu.dimension_semantics<parallel>], iteration_bounds = array<i64: 2, 1>, scalar_prefetch = 0 : i64, scratch_operands = 0 : i64, tpu.core_type = #tpu.core_type<tc>, window_params = [{pipeline_mode = #tpu.pipeline_mode<synchronous>, transform_indices = @transform_0, window_bounds = array<i64: 2, 9, 9, 16>}, {pipeline_mode = #tpu.pipeline_mode<synchronous>, transform_indices = @transform_1, window_bounds = array<i64: 2, 2, 16, 32>}, {pipeline_mode = #tpu.pipeline_mode<synchronous>, transform_indices = @transform_2, window_bounds = array<i64: 1, 32>}, {transform_indices = @transform_3, window_bounds = array<i64: 1, 8, 8, 32>}]} {
    %c8_i32 = arith.constant 8 : i32
    %0 = arith.muli %arg1, %c8_i32 : i32
    %cst = arith.constant 0.000000e+00 : f32
    %1 = vector.broadcast %cst : f32 to vector<8x32xf32>
    %c0_i32 = arith.constant 0 : i32
    %2 = arith.addi %0, %c0_i32 : i32
    %c0_i32_0 = arith.constant 0 : i32
    %3 = arith.addi %2, %c0_i32_0 : i32
    %4 = arith.index_cast %arg0 : i32 to index
    %5 = arith.index_cast %3 : i32 to index
    %c0 = arith.constant 0 : index
    %c0_1 = arith.constant 0 : index
    %6 = vector.load %arg2[%4, %5, %c0, %c0_1] : memref<2x9x9x16xbf16, #tpu.memory_space<vmem>>, vector<1x1x8x16xbf16>
    %7 = vector.shape_cast %6 : vector<1x1x8x16xbf16> to vector<8x16xbf16>
    %c0_2 = arith.constant 0 : index
    %c0_3 = arith.constant 0 : index
    %c0_4 = arith.constant 0 : index
    %c0_5 = arith.constant 0 : index
    %8 = vector.load %arg3[%c0_2, %c0_3, %c0_4, %c0_5] : memref<2x2x16x32xbf16, #tpu.memory_space<vmem>>, vector<1x1x16x32xbf16>
    %9 = vector.shape_cast %8 : vector<1x1x16x32xbf16> to vector<16x32xbf16>
    %cst_6 = arith.constant dense<0.000000e+00> : vector<8x32xf32>
    %10 = tpu.matmul %7, %9, %cst_6 {dimension_numbers = #tpu.dot_dimension_numbers<[1], [0], [0], [1], [0, 0, 1, 1], [], []>} : vector<8x16xbf16>, vector<16x32xbf16>, vector<8x32xf32> -> vector<8x32xf32>
    %11 = arith.addf %1, %10 : vector<8x32xf32>
    %c0_i32_7 = arith.constant 0 : i32
    %12 = arith.addi %0, %c0_i32_7 : i32
    %c0_i32_8 = arith.constant 0 : i32
    %13 = arith.addi %12, %c0_i32_8 : i32
    %14 = arith.index_cast %arg0 : i32 to index
    %15 = arith.index_cast %13 : i32 to index
    %c1 = arith.constant 1 : index
    %c0_9 = arith.constant 0 : index
    %16 = vector.load %arg2[%14, %15, %c1, %c0_9] : memref<2x9x9x16xbf16, #tpu.memory_space<vmem>>, vector<1x1x8x16xbf16>
    %17 = vector.shape_cast %16 : vector<1x1x8x16xbf16> to vector<8x16xbf16>
    %c0_10 = arith.constant 0 : index
    %c1_11 = arith.constant 1 : index
    %c0_12 = arith.constant 0 : index
    %c0_13 = arith.constant 0 : index
    %18 = vector.load %arg3[%c0_10, %c1_11, %c0_12, %c0_13] : memref<2x2x16x32xbf16, #tpu.memory_space<vmem>>, vector<1x1x16x32xbf16>
    %19 = vector.shape_cast %18 : vector<1x1x16x32xbf16> to vector<16x32xbf16>
    %cst_14 = arith.constant dense<0.000000e+00> : vector<8x32xf32>
    %20 = tpu.matmul %17, %19, %cst_14 {dimension_numbers = #tpu.dot_dimension_numbers<[1], [0], [0], [1], [0, 0, 1, 1], [], []>} : vector<8x16xbf16>, vector<16x32xbf16>, vector<8x32xf32> -> vector<8x32xf32>
    %21 = arith.addf %11, %20 : vector<8x32xf32>
    %c0_i32_15 = arith.constant 0 : i32
    %22 = arith.addi %0, %c0_i32_15 : i32
    %c1_i32 = arith.constant 1 : i32
    %23 = arith.addi %22, %c1_i32 : i32
    %24 = arith.index_cast %arg0 : i32 to index
    %25 = arith.index_cast %23 : i32 to index
    %c0_16 = arith.constant 0 : index
    %c0_17 = arith.constant 0 : index
    %26 = vector.load %arg2[%24, %25, %c0_16, %c0_17] : memref<2x9x9x16xbf16, #tpu.memory_space<vmem>>, vector<1x1x8x16xbf16>
    %27 = vector.shape_cast %26 : vector<1x1x8x16xbf16> to vector<8x16xbf16>
    %c1_18 = arith.constant 1 : index
    %c0_19 = arith.constant 0 : index
    %c0_20 = arith.constant 0 : index
    %c0_21 = arith.constant 0 : index
    %28 = vector.load %arg3[%c1_18, %c0_19, %c0_20, %c0_21] : memref<2x2x16x32xbf16, #tpu.memory_space<vmem>>, vector<1x1x16x32xbf16>
    %29 = vector.shape_cast %28 : vector<1x1x16x32xbf16> to vector<16x32xbf16>
    %cst_22 = arith.constant dense<0.000000e+00> : vector<8x32xf32>
    %30 = tpu.matmul %27, %29, %cst_22 {dimension_numbers = #tpu.dot_dimension_numbers<[1], [0], [0], [1], [0, 0, 1, 1], [], []>} : vector<8x16xbf16>, vector<16x32xbf16>, vector<8x32xf32> -> vector<8x32xf32>
    %31 = arith.addf %21, %30 : vector<8x32xf32>
    %c0_i32_23 = arith.constant 0 : i32
    %32 = arith.addi %0, %c0_i32_23 : i32
    %c1_i32_24 = arith.constant 1 : i32
    %33 = arith.addi %32, %c1_i32_24 : i32
    %34 = arith.index_cast %arg0 : i32 to index
    %35 = arith.index_cast %33 : i32 to index
    %c1_25 = arith.constant 1 : index
    %c0_26 = arith.constant 0 : index
    %36 = vector.load %arg2[%34, %35, %c1_25, %c0_26] : memref<2x9x9x16xbf16, #tpu.memory_space<vmem>>, vector<1x1x8x16xbf16>
    %37 = vector.shape_cast %36 : vector<1x1x8x16xbf16> to vector<8x16xbf16>
    %c1_27 = arith.constant 1 : index
    %c1_28 = arith.constant 1 : index
    %c0_29 = arith.constant 0 : index
    %c0_30 = arith.constant 0 : index
    %38 = vector.load %arg3[%c1_27, %c1_28, %c0_29, %c0_30] : memref<2x2x16x32xbf16, #tpu.memory_space<vmem>>, vector<1x1x16x32xbf16>
    %39 = vector.shape_cast %38 : vector<1x1x16x32xbf16> to vector<16x32xbf16>
    %cst_31 = arith.constant dense<0.000000e+00> : vector<8x32xf32>
    %40 = tpu.matmul %37, %39, %cst_31 {dimension_numbers = #tpu.dot_dimension_numbers<[1], [0], [0], [1], [0, 0, 1, 1], [], []>} : vector<8x16xbf16>, vector<16x32xbf16>, vector<8x32xf32> -> vector<8x32xf32>
    %41 = arith.addf %31, %40 : vector<8x32xf32>
    %c0_32 = arith.constant 0 : index
    %c0_33 = arith.constant 0 : index
    %42 = vector.load %arg4[%c0_32, %c0_33] : memref<1x32xf32, #tpu.memory_space<vmem>>, vector<1x32xf32>
    %43 = vector.broadcast %42 : vector<1x32xf32> to vector<8x32xf32>
    %44 = arith.addf %41, %43 : vector<8x32xf32>
    %cst_34 = arith.constant 0.000000e+00 : f32
    %45 = vector.broadcast %cst_34 : f32 to vector<8x32xf32>
    %46 = arith.cmpf oge, %44, %45 : vector<8x32xf32>
    %cst_35 = arith.constant 0.00999999977 : f32
    %47 = vector.broadcast %cst_35 : f32 to vector<8x32xf32>
    %48 = arith.mulf %47, %44 : vector<8x32xf32>
    %49 = arith.select %46, %44, %48 : vector<8x32xi1>, vector<8x32xf32>
    %50 = arith.truncf %49 : vector<8x32xf32> to vector<8x32xbf16>
    %c0_36 = arith.constant 0 : index
    %c0_37 = arith.constant 0 : index
    %c0_38 = arith.constant 0 : index
    %c0_39 = arith.constant 0 : index
    %51 = vector.load %arg5[%c0_36, %c0_37, %c0_38, %c0_39] : memref<1x8x8x32xbf16, #tpu.memory_space<vmem>>, vector<1x1x8x32xbf16>
    %52 = vector.shape_cast %51 : vector<1x1x8x32xbf16> to vector<8x32xbf16>
    %53 = vector.shape_cast %50 : vector<8x32xbf16> to vector<1x1x8x32xbf16>
    tpu.vector_store %arg5[%c0_36, %c0_37, %c0_38, %c0_39], %53 {strides = array<i32>} : memref<1x8x8x32xbf16, #tpu.memory_space<vmem>>, vector<1x1x8x32xbf16>,
    %cst_40 = arith.constant 0.000000e+00 : f32
    %54 = vector.broadcast %cst_40 : f32 to vector<8x32xf32>
    %c1_i32_41 = arith.constant 1 : i32
    %55 = arith.addi %0, %c1_i32_41 : i32
    %c0_i32_42 = arith.constant 0 : i32
    %56 = arith.addi %55, %c0_i32_42 : i32
    %57 = arith.index_cast %arg0 : i32 to index
    %58 = arith.index_cast %56 : i32 to index
    %c0_43 = arith.constant 0 : index
    %c0_44 = arith.constant 0 : index
    %59 = vector.load %arg2[%57, %58, %c0_43, %c0_44] : memref<2x9x9x16xbf16, #tpu.memory_space<vmem>>, vector<1x1x8x16xbf16>
    %60 = vector.shape_cast %59 : vector<1x1x8x16xbf16> to vector<8x16xbf16>
    %c0_45 = arith.constant 0 : index
    %c0_46 = arith.constant 0 : index
    %c0_47 = arith.constant 0 : index
    %c0_48 = arith.constant 0 : index
    %61 = vector.load %arg3[%c0_45, %c0_46, %c0_47, %c0_48] : memref<2x2x16x32xbf16, #tpu.memory_space<vmem>>, vector<1x1x16x32xbf16>
    %62 = vector.shape_cast %61 : vector<1x1x16x32xbf16> to vector<16x32xbf16>
    %cst_49 = arith.constant dense<0.000000e+00> : vector<8x32xf32>
    %63 = tpu.matmul %60, %62, %cst_49 {dimension_numbers = #tpu.dot_dimension_numbers<[1], [0], [0], [1], [0, 0, 1, 1], [], []>} : vector<8x16xbf16>, vector<16x32xbf16>, vector<8x32xf32> -> vector<8x32xf32>
    %64 = arith.addf %54, %63 : vector<8x32xf32>
    %c1_i32_50 = arith.constant 1 : i32
    %65 = arith.addi %0, %c1_i32_50 : i32
    %c0_i32_51 = arith.constant 0 : i32
    %66 = arith.addi %65, %c0_i32_51 : i32
    %67 = arith.index_cast %arg0 : i32 to index
    %68 = arith.index_cast %66 : i32 to index
    %c1_52 = arith.constant 1 : index
    %c0_53 = arith.constant 0 : index
    %69 = vector.load %arg2[%67, %68, %c1_52, %c0_53] : memref<2x9x9x16xbf16, #tpu.memory_space<vmem>>, vector<1x1x8x16xbf16>
    %70 = vector.shape_cast %69 : vector<1x1x8x16xbf16> to vector<8x16xbf16>
    %c0_54 = arith.constant 0 : index
    %c1_55 = arith.constant 1 : index
    %c0_56 = arith.constant 0 : index
    %c0_57 = arith.constant 0 : index
    %71 = vector.load %arg3[%c0_54, %c1_55, %c0_56, %c0_57] : memref<2x2x16x32xbf16, #tpu.memory_space<vmem>>, vector<1x1x16x32xbf16>
    %72 = vector.shape_cast %71 : vector<1x1x16x32xbf16> to vector<16x32xbf16>
    %cst_58 = arith.constant dense<0.000000e+00> : vector<8x32xf32>
    %73 = tpu.matmul %70, %72, %cst_58 {dimension_numbers = #tpu.dot_dimension_numbers<[1], [0], [0], [1], [0, 0, 1, 1], [], []>} : vector<8x16xbf16>, vector<16x32xbf16>, vector<8x32xf32> -> vector<8x32xf32>
    %74 = arith.addf %64, %73 : vector<8x32xf32>
    %c1_i32_59 = arith.constant 1 : i32
    %75 = arith.addi %0, %c1_i32_59 : i32
    %c1_i32_60 = arith.constant 1 : i32
    %76 = arith.addi %75, %c1_i32_60 : i32
    %77 = arith.index_cast %arg0 : i32 to index
    %78 = arith.index_cast %76 : i32 to index
    %c0_61 = arith.constant 0 : index
    %c0_62 = arith.constant 0 : index
    %79 = vector.load %arg2[%77, %78, %c0_61, %c0_62] : memref<2x9x9x16xbf16, #tpu.memory_space<vmem>>, vector<1x1x8x16xbf16>
    %80 = vector.shape_cast %79 : vector<1x1x8x16xbf16> to vector<8x16xbf16>
    %c1_63 = arith.constant 1 : index
    %c0_64 = arith.constant 0 : index
    %c0_65 = arith.constant 0 : index
    %c0_66 = arith.constant 0 : index
    %81 = vector.load %arg3[%c1_63, %c0_64, %c0_65, %c0_66] : memref<2x2x16x32xbf16, #tpu.memory_space<vmem>>, vector<1x1x16x32xbf16>
    %82 = vector.shape_cast %81 : vector<1x1x16x32xbf16> to vector<16x32xbf16>
    %cst_67 = arith.constant dense<0.000000e+00> : vector<8x32xf32>
    %83 = tpu.matmul %80, %82, %cst_67 {dimension_numbers = #tpu.dot_dimension_numbers<[1], [0], [0], [1], [0, 0, 1, 1], [], []>} : vector<8x16xbf16>, vector<16x32xbf16>, vector<8x32xf32> -> vector<8x32xf32>
    %84 = arith.addf %74, %83 : vector<8x32xf32>
    %c1_i32_68 = arith.constant 1 : i32
    %85 = arith.addi %0, %c1_i32_68 : i32
    %c1_i32_69 = arith.constant 1 : i32
    %86 = arith.addi %85, %c1_i32_69 : i32
    %87 = arith.index_cast %arg0 : i32 to index
    %88 = arith.index_cast %86 : i32 to index
    %c1_70 = arith.constant 1 : index
    %c0_71 = arith.constant 0 : index
    %89 = vector.load %arg2[%87, %88, %c1_70, %c0_71] : memref<2x9x9x16xbf16, #tpu.memory_space<vmem>>, vector<1x1x8x16xbf16>
    %90 = vector.shape_cast %89 : vector<1x1x8x16xbf16> to vector<8x16xbf16>
    %c1_72 = arith.constant 1 : index
    %c1_73 = arith.constant 1 : index
    %c0_74 = arith.constant 0 : index
    %c0_75 = arith.constant 0 : index
    %91 = vector.load %arg3[%c1_72, %c1_73, %c0_74, %c0_75] : memref<2x2x16x32xbf16, #tpu.memory_space<vmem>>, vector<1x1x16x32xbf16>
    %92 = vector.shape_cast %91 : vector<1x1x16x32xbf16> to vector<16x32xbf16>
    %cst_76 = arith.constant dense<0.000000e+00> : vector<8x32xf32>
    %93 = tpu.matmul %90, %92, %cst_76 {dimension_numbers = #tpu.dot_dimension_numbers<[1], [0], [0], [1], [0, 0, 1, 1], [], []>} : vector<8x16xbf16>, vector<16x32xbf16>, vector<8x32xf32> -> vector<8x32xf32>
    %94 = arith.addf %84, %93 : vector<8x32xf32>
    %c0_77 = arith.constant 0 : index
    %c0_78 = arith.constant 0 : index
    %95 = vector.load %arg4[%c0_77, %c0_78] : memref<1x32xf32, #tpu.memory_space<vmem>>, vector<1x32xf32>
    %96 = vector.broadcast %95 : vector<1x32xf32> to vector<8x32xf32>
    %97 = arith.addf %94, %96 : vector<8x32xf32>
    %cst_79 = arith.constant 0.000000e+00 : f32
    %98 = vector.broadcast %cst_79 : f32 to vector<8x32xf32>
    %99 = arith.cmpf oge, %97, %98 : vector<8x32xf32>
    %cst_80 = arith.constant 0.00999999977 : f32
    %100 = vector.broadcast %cst_80 : f32 to vector<8x32xf32>
    %101 = arith.mulf %100, %97 : vector<8x32xf32>
    %102 = arith.select %99, %97, %101 : vector<8x32xi1>, vector<8x32xf32>
    %103 = arith.truncf %102 : vector<8x32xf32> to vector<8x32xbf16>
    %c0_81 = arith.constant 0 : index
    %c1_82 = arith.constant 1 : index
    %c0_83 = arith.constant 0 : index
    %c0_84 = arith.constant 0 : index
    %104 = vector.load %arg5[%c0_81, %c1_82, %c0_83, %c0_84] : memref<1x8x8x32xbf16, #tpu.memory_space<vmem>>, vector<1x1x8x32xbf16>
    %105 = vector.shape_cast %104 : vector<1x1x8x32xbf16> to vector<8x32xbf16>
    %106 = vector.shape_cast %103 : vector<8x32xbf16> to vector<1x1x8x32xbf16>
    tpu.vector_store %arg5[%c0_81, %c1_82, %c0_83, %c0_84], %106 {strides = array<i32>} : memref<1x8x8x32xbf16, #tpu.memory_space<vmem>>, vector<1x1x8x32xbf16>,
    %cst_85 = arith.constant 0.000000e+00 : f32
    %107 = vector.broadcast %cst_85 : f32 to vector<8x32xf32>
    %c2_i32 = arith.constant 2 : i32
    %108 = arith.addi %0, %c2_i32 : i32
    %c0_i32_86 = arith.constant 0 : i32
    %109 = arith.addi %108, %c0_i32_86 : i32
    %110 = arith.index_cast %arg0 : i32 to index
    %111 = arith.index_cast %109 : i32 to index
    %c0_87 = arith.constant 0 : index
    %c0_88 = arith.constant 0 : index
    %112 = vector.load %arg2[%110, %111, %c0_87, %c0_88] : memref<2x9x9x16xbf16, #tpu.memory_space<vmem>>, vector<1x1x8x16xbf16>
    %113 = vector.shape_cast %112 : vector<1x1x8x16xbf16> to vector<8x16xbf16>
    %c0_89 = arith.constant 0 : index
    %c0_90 = arith.constant 0 : index
    %c0_91 = arith.constant 0 : index
    %c0_92 = arith.constant 0 : index
    %114 = vector.load %arg3[%c0_89, %c0_90, %c0_91, %c0_92] : memref<2x2x16x32xbf16, #tpu.memory_space<vmem>>, vector<1x1x16x32xbf16>
    %115 = vector.shape_cast %114 : vector<1x1x16x32xbf16> to vector<16x32xbf16>
    %cst_93 = arith.constant dense<0.000000e+00> : vector<8x32xf32>
    %116 = tpu.matmul %113, %115, %cst_93 {dimension_numbers = #tpu.dot_dimension_numbers<[1], [0], [0], [1], [0, 0, 1, 1], [], []>} : vector<8x16xbf16>, vector<16x32xbf16>, vector<8x32xf32> -> vector<8x32xf32>
    %117 = arith.addf %107, %116 : vector<8x32xf32>
    %c2_i32_94 = arith.constant 2 : i32
    %118 = arith.addi %0, %c2_i32_94 : i32
    %c0_i32_95 = arith.constant 0 : i32
    %119 = arith.addi %118, %c0_i32_95 : i32
    %120 = arith.index_cast %arg0 : i32 to index
    %121 = arith.index_cast %119 : i32 to index
    %c1_96 = arith.constant 1 : index
    %c0_97 = arith.constant 0 : index
    %122 = vector.load %arg2[%120, %121, %c1_96, %c0_97] : memref<2x9x9x16xbf16, #tpu.memory_space<vmem>>, vector<1x1x8x16xbf16>
    %123 = vector.shape_cast %122 : vector<1x1x8x16xbf16> to vector<8x16xbf16>
    %c0_98 = arith.constant 0 : index
    %c1_99 = arith.constant 1 : index
    %c0_100 = arith.constant 0 : index
    %c0_101 = arith.constant 0 : index
    %124 = vector.load %arg3[%c0_98, %c1_99, %c0_100, %c0_101] : memref<2x2x16x32xbf16, #tpu.memory_space<vmem>>, vector<1x1x16x32xbf16>
    %125 = vector.shape_cast %124 : vector<1x1x16x32xbf16> to vector<16x32xbf16>
    %cst_102 = arith.constant dense<0.000000e+00> : vector<8x32xf32>
    %126 = tpu.matmul %123, %125, %cst_102 {dimension_numbers = #tpu.dot_dimension_numbers<[1], [0], [0], [1], [0, 0, 1, 1], [], []>} : vector<8x16xbf16>, vector<16x32xbf16>, vector<8x32xf32> -> vector<8x32xf32>
    %127 = arith.addf %117, %126 : vector<8x32xf32>
    %c2_i32_103 = arith.constant 2 : i32
    %128 = arith.addi %0, %c2_i32_103 : i32
    %c1_i32_104 = arith.constant 1 : i32
    %129 = arith.addi %128, %c1_i32_104 : i32
    %130 = arith.index_cast %arg0 : i32 to index
    %131 = arith.index_cast %129 : i32 to index
    %c0_105 = arith.constant 0 : index
    %c0_106 = arith.constant 0 : index
    %132 = vector.load %arg2[%130, %131, %c0_105, %c0_106] : memref<2x9x9x16xbf16, #tpu.memory_space<vmem>>, vector<1x1x8x16xbf16>
    %133 = vector.shape_cast %132 : vector<1x1x8x16xbf16> to vector<8x16xbf16>
    %c1_107 = arith.constant 1 : index
    %c0_108 = arith.constant 0 : index
    %c0_109 = arith.constant 0 : index
    %c0_110 = arith.constant 0 : index
    %134 = vector.load %arg3[%c1_107, %c0_108, %c0_109, %c0_110] : memref<2x2x16x32xbf16, #tpu.memory_space<vmem>>, vector<1x1x16x32xbf16>
    %135 = vector.shape_cast %134 : vector<1x1x16x32xbf16> to vector<16x32xbf16>
    %cst_111 = arith.constant dense<0.000000e+00> : vector<8x32xf32>
    %136 = tpu.matmul %133, %135, %cst_111 {dimension_numbers = #tpu.dot_dimension_numbers<[1], [0], [0], [1], [0, 0, 1, 1], [], []>} : vector<8x16xbf16>, vector<16x32xbf16>, vector<8x32xf32> -> vector<8x32xf32>
    %137 = arith.addf %127, %136 : vector<8x32xf32>
    %c2_i32_112 = arith.constant 2 : i32
    %138 = arith.addi %0, %c2_i32_112 : i32
    %c1_i32_113 = arith.constant 1 : i32
    %139 = arith.addi %138, %c1_i32_113 : i32
    %140 = arith.index_cast %arg0 : i32 to index
    %141 = arith.index_cast %139 : i32 to index
    %c1_114 = arith.constant 1 : index
    %c0_115 = arith.constant 0 : index
    %142 = vector.load %arg2[%140, %141, %c1_114, %c0_115] : memref<2x9x9x16xbf16, #tpu.memory_space<vmem>>, vector<1x1x8x16xbf16>
    %143 = vector.shape_cast %142 : vector<1x1x8x16xbf16> to vector<8x16xbf16>
    %c1_116 = arith.constant 1 : index
    %c1_117 = arith.constant 1 : index
    %c0_118 = arith.constant 0 : index
    %c0_119 = arith.constant 0 : index
    %144 = vector.load %arg3[%c1_116, %c1_117, %c0_118, %c0_119] : memref<2x2x16x32xbf16, #tpu.memory_space<vmem>>, vector<1x1x16x32xbf16>
    %145 = vector.shape_cast %144 : vector<1x1x16x32xbf16> to vector<16x32xbf16>
    %cst_120 = arith.constant dense<0.000000e+00> : vector<8x32xf32>
    %146 = tpu.matmul %143, %145, %cst_120 {dimension_numbers = #tpu.dot_dimension_numbers<[1], [0], [0], [1], [0, 0, 1, 1], [], []>} : vector<8x16xbf16>, vector<16x32xbf16>, vector<8x32xf32> -> vector<8x32xf32>
    %147 = arith.addf %137, %146 : vector<8x32xf32>
    %c0_121 = arith.constant 0 : index
    %c0_122 = arith.constant 0 : index
    %148 = vector.load %arg4[%c0_121, %c0_122] : memref<1x32xf32, #tpu.memory_space<vmem>>, vector<1x32xf32>
    %149 = vector.broadcast %148 : vector<1x32xf32> to vector<8x32xf32>
    %150 = arith.addf %147, %149 : vector<8x32xf32>
    %cst_123 = arith.constant 0.000000e+00 : f32
    %151 = vector.broadcast %cst_123 : f32 to vector<8x32xf32>
    %152 = arith.cmpf oge, %150, %151 : vector<8x32xf32>
    %cst_124 = arith.constant 0.00999999977 : f32
    %153 = vector.broadcast %cst_124 : f32 to vector<8x32xf32>
    %154 = arith.mulf %153, %150 : vector<8x32xf32>
    %155 = arith.select %152, %150, %154 : vector<8x32xi1>, vector<8x32xf32>
    %156 = arith.truncf %155 : vector<8x32xf32> to vector<8x32xbf16>
    %c0_125 = arith.constant 0 : index
    %c2 = arith.constant 2 : index
    %c0_126 = arith.constant 0 : index
    %c0_127 = arith.constant 0 : index
    %157 = vector.load %arg5[%c0_125, %c2, %c0_126, %c0_127] : memref<1x8x8x32xbf16, #tpu.memory_space<vmem>>, vector<1x1x8x32xbf16>
    %158 = vector.shape_cast %157 : vector<1x1x8x32xbf16> to vector<8x32xbf16>
    %159 = vector.shape_cast %156 : vector<8x32xbf16> to vector<1x1x8x32xbf16>
    tpu.vector_store %arg5[%c0_125, %c2, %c0_126, %c0_127], %159 {strides = array<i32>} : memref<1x8x8x32xbf16, #tpu.memory_space<vmem>>, vector<1x1x8x32xbf16>,
    %cst_128 = arith.constant 0.000000e+00 : f32
    %160 = vector.broadcast %cst_128 : f32 to vector<8x32xf32>
    %c3_i32 = arith.constant 3 : i32
    %161 = arith.addi %0, %c3_i32 : i32
    %c0_i32_129 = arith.constant 0 : i32
    %162 = arith.addi %161, %c0_i32_129 : i32
    %163 = arith.index_cast %arg0 : i32 to index
    %164 = arith.index_cast %162 : i32 to index
    %c0_130 = arith.constant 0 : index
    %c0_131 = arith.constant 0 : index
    %165 = vector.load %arg2[%163, %164, %c0_130, %c0_131] : memref<2x9x9x16xbf16, #tpu.memory_space<vmem>>, vector<1x1x8x16xbf16>
    %166 = vector.shape_cast %165 : vector<1x1x8x16xbf16> to vector<8x16xbf16>
    %c0_132 = arith.constant 0 : index
    %c0_133 = arith.constant 0 : index
    %c0_134 = arith.constant 0 : index
    %c0_135 = arith.constant 0 : index
    %167 = vector.load %arg3[%c0_132, %c0_133, %c0_134, %c0_135] : memref<2x2x16x32xbf16, #tpu.memory_space<vmem>>, vector<1x1x16x32xbf16>
    %168 = vector.shape_cast %167 : vector<1x1x16x32xbf16> to vector<16x32xbf16>
    %cst_136 = arith.constant dense<0.000000e+00> : vector<8x32xf32>
    %169 = tpu.matmul %166, %168, %cst_136 {dimension_numbers = #tpu.dot_dimension_numbers<[1], [0], [0], [1], [0, 0, 1, 1], [], []>} : vector<8x16xbf16>, vector<16x32xbf16>, vector<8x32xf32> -> vector<8x32xf32>
    %170 = arith.addf %160, %169 : vector<8x32xf32>
    %c3_i32_137 = arith.constant 3 : i32
    %171 = arith.addi %0, %c3_i32_137 : i32
    %c0_i32_138 = arith.constant 0 : i32
    %172 = arith.addi %171, %c0_i32_138 : i32
    %173 = arith.index_cast %arg0 : i32 to index
    %174 = arith.index_cast %172 : i32 to index
    %c1_139 = arith.constant 1 : index
    %c0_140 = arith.constant 0 : index
    %175 = vector.load %arg2[%173, %174, %c1_139, %c0_140] : memref<2x9x9x16xbf16, #tpu.memory_space<vmem>>, vector<1x1x8x16xbf16>
    %176 = vector.shape_cast %175 : vector<1x1x8x16xbf16> to vector<8x16xbf16>
    %c0_141 = arith.constant 0 : index
    %c1_142 = arith.constant 1 : index
    %c0_143 = arith.constant 0 : index
    %c0_144 = arith.constant 0 : index
    %177 = vector.load %arg3[%c0_141, %c1_142, %c0_143, %c0_144] : memref<2x2x16x32xbf16, #tpu.memory_space<vmem>>, vector<1x1x16x32xbf16>
    %178 = vector.shape_cast %177 : vector<1x1x16x32xbf16> to vector<16x32xbf16>
    %cst_145 = arith.constant dense<0.000000e+00> : vector<8x32xf32>
    %179 = tpu.matmul %176, %178, %cst_145 {dimension_numbers = #tpu.dot_dimension_numbers<[1], [0], [0], [1], [0, 0, 1, 1], [], []>} : vector<8x16xbf16>, vector<16x32xbf16>, vector<8x32xf32> -> vector<8x32xf32>
    %180 = arith.addf %170, %179 : vector<8x32xf32>
    %c3_i32_146 = arith.constant 3 : i32
    %181 = arith.addi %0, %c3_i32_146 : i32
    %c1_i32_147 = arith.constant 1 : i32
    %182 = arith.addi %181, %c1_i32_147 : i32
    %183 = arith.index_cast %arg0 : i32 to index
    %184 = arith.index_cast %182 : i32 to index
    %c0_148 = arith.constant 0 : index
    %c0_149 = arith.constant 0 : index
    %185 = vector.load %arg2[%183, %184, %c0_148, %c0_149] : memref<2x9x9x16xbf16, #tpu.memory_space<vmem>>, vector<1x1x8x16xbf16>
    %186 = vector.shape_cast %185 : vector<1x1x8x16xbf16> to vector<8x16xbf16>
    %c1_150 = arith.constant 1 : index
    %c0_151 = arith.constant 0 : index
    %c0_152 = arith.constant 0 : index
    %c0_153 = arith.constant 0 : index
    %187 = vector.load %arg3[%c1_150, %c0_151, %c0_152, %c0_153] : memref<2x2x16x32xbf16, #tpu.memory_space<vmem>>, vector<1x1x16x32xbf16>
    %188 = vector.shape_cast %187 : vector<1x1x16x32xbf16> to vector<16x32xbf16>
    %cst_154 = arith.constant dense<0.000000e+00> : vector<8x32xf32>
    %189 = tpu.matmul %186, %188, %cst_154 {dimension_numbers = #tpu.dot_dimension_numbers<[1], [0], [0], [1], [0, 0, 1, 1], [], []>} : vector<8x16xbf16>, vector<16x32xbf16>, vector<8x32xf32> -> vector<8x32xf32>
    %190 = arith.addf %180, %189 : vector<8x32xf32>
    %c3_i32_155 = arith.constant 3 : i32
    %191 = arith.addi %0, %c3_i32_155 : i32
    %c1_i32_156 = arith.constant 1 : i32
    %192 = arith.addi %191, %c1_i32_156 : i32
    %193 = arith.index_cast %arg0 : i32 to index
    %194 = arith.index_cast %192 : i32 to index
    %c1_157 = arith.constant 1 : index
    %c0_158 = arith.constant 0 : index
    %195 = vector.load %arg2[%193, %194, %c1_157, %c0_158] : memref<2x9x9x16xbf16, #tpu.memory_space<vmem>>, vector<1x1x8x16xbf16>
    %196 = vector.shape_cast %195 : vector<1x1x8x16xbf16> to vector<8x16xbf16>
    %c1_159 = arith.constant 1 : index
    %c1_160 = arith.constant 1 : index
    %c0_161 = arith.constant 0 : index
    %c0_162 = arith.constant 0 : index
    %197 = vector.load %arg3[%c1_159, %c1_160, %c0_161, %c0_162] : memref<2x2x16x32xbf16, #tpu.memory_space<vmem>>, vector<1x1x16x32xbf16>
    %198 = vector.shape_cast %197 : vector<1x1x16x32xbf16> to vector<16x32xbf16>
    %cst_163 = arith.constant dense<0.000000e+00> : vector<8x32xf32>
    %199 = tpu.matmul %196, %198, %cst_163 {dimension_numbers = #tpu.dot_dimension_numbers<[1], [0], [0], [1], [0, 0, 1, 1], [], []>} : vector<8x16xbf16>, vector<16x32xbf16>, vector<8x32xf32> -> vector<8x32xf32>
    %200 = arith.addf %190, %199 : vector<8x32xf32>
    %c0_164 = arith.constant 0 : index
    %c0_165 = arith.constant 0 : index
    %201 = vector.load %arg4[%c0_164, %c0_165] : memref<1x32xf32, #tpu.memory_space<vmem>>, vector<1x32xf32>
    %202 = vector.broadcast %201 : vector<1x32xf32> to vector<8x32xf32>
    %203 = arith.addf %200, %202 : vector<8x32xf32>
    %cst_166 = arith.constant 0.000000e+00 : f32
    %204 = vector.broadcast %cst_166 : f32 to vector<8x32xf32>
    %205 = arith.cmpf oge, %203, %204 : vector<8x32xf32>
    %cst_167 = arith.constant 0.00999999977 : f32
    %206 = vector.broadcast %cst_167 : f32 to vector<8x32xf32>
    %207 = arith.mulf %206, %203 : vector<8x32xf32>
    %208 = arith.select %205, %203, %207 : vector<8x32xi1>, vector<8x32xf32>
    %209 = arith.truncf %208 : vector<8x32xf32> to vector<8x32xbf16>
    %c0_168 = arith.constant 0 : index
    %c3 = arith.constant 3 : index
    %c0_169 = arith.constant 0 : index
    %c0_170 = arith.constant 0 : index
    %210 = vector.load %arg5[%c0_168, %c3, %c0_169, %c0_170] : memref<1x8x8x32xbf16, #tpu.memory_space<vmem>>, vector<1x1x8x32xbf16>
    %211 = vector.shape_cast %210 : vector<1x1x8x32xbf16> to vector<8x32xbf16>
    %212 = vector.shape_cast %209 : vector<8x32xbf16> to vector<1x1x8x32xbf16>
    tpu.vector_store %arg5[%c0_168, %c3, %c0_169, %c0_170], %212 {strides = array<i32>} : memref<1x8x8x32xbf16, #tpu.memory_space<vmem>>, vector<1x1x8x32xbf16>,
    %cst_171 = arith.constant 0.000000e+00 : f32
    %213 = vector.broadcast %cst_171 : f32 to vector<8x32xf32>
    %c4_i32 = arith.constant 4 : i32
    %214 = arith.addi %0, %c4_i32 : i32
    %c0_i32_172 = arith.constant 0 : i32
    %215 = arith.addi %214, %c0_i32_172 : i32
    %216 = arith.index_cast %arg0 : i32 to index
    %217 = arith.index_cast %215 : i32 to index
    %c0_173 = arith.constant 0 : index
    %c0_174 = arith.constant 0 : index
    %218 = vector.load %arg2[%216, %217, %c0_173, %c0_174] : memref<2x9x9x16xbf16, #tpu.memory_space<vmem>>, vector<1x1x8x16xbf16>
    %219 = vector.shape_cast %218 : vector<1x1x8x16xbf16> to vector<8x16xbf16>
    %c0_175 = arith.constant 0 : index
    %c0_176 = arith.constant 0 : index
    %c0_177 = arith.constant 0 : index
    %c0_178 = arith.constant 0 : index
    %220 = vector.load %arg3[%c0_175, %c0_176, %c0_177, %c0_178] : memref<2x2x16x32xbf16, #tpu.memory_space<vmem>>, vector<1x1x16x32xbf16>
    %221 = vector.shape_cast %220 : vector<1x1x16x32xbf16> to vector<16x32xbf16>
    %cst_179 = arith.constant dense<0.000000e+00> : vector<8x32xf32>
    %222 = tpu.matmul %219, %221, %cst_179 {dimension_numbers = #tpu.dot_dimension_numbers<[1], [0], [0], [1], [0, 0, 1, 1], [], []>} : vector<8x16xbf16>, vector<16x32xbf16>, vector<8x32xf32> -> vector<8x32xf32>
    %223 = arith.addf %213, %222 : vector<8x32xf32>
    %c4_i32_180 = arith.constant 4 : i32
    %224 = arith.addi %0, %c4_i32_180 : i32
    %c0_i32_181 = arith.constant 0 : i32
    %225 = arith.addi %224, %c0_i32_181 : i32
    %226 = arith.index_cast %arg0 : i32 to index
    %227 = arith.index_cast %225 : i32 to index
    %c1_182 = arith.constant 1 : index
    %c0_183 = arith.constant 0 : index
    %228 = vector.load %arg2[%226, %227, %c1_182, %c0_183] : memref<2x9x9x16xbf16, #tpu.memory_space<vmem>>, vector<1x1x8x16xbf16>
    %229 = vector.shape_cast %228 : vector<1x1x8x16xbf16> to vector<8x16xbf16>
    %c0_184 = arith.constant 0 : index
    %c1_185 = arith.constant 1 : index
    %c0_186 = arith.constant 0 : index
    %c0_187 = arith.constant 0 : index
    %230 = vector.load %arg3[%c0_184, %c1_185, %c0_186, %c0_187] : memref<2x2x16x32xbf16, #tpu.memory_space<vmem>>, vector<1x1x16x32xbf16>
    %231 = vector.shape_cast %230 : vector<1x1x16x32xbf16> to vector<16x32xbf16>
    %cst_188 = arith.constant dense<0.000000e+00> : vector<8x32xf32>
    %232 = tpu.matmul %229, %231, %cst_188 {dimension_numbers = #tpu.dot_dimension_numbers<[1], [0], [0], [1], [0, 0, 1, 1], [], []>} : vector<8x16xbf16>, vector<16x32xbf16>, vector<8x32xf32> -> vector<8x32xf32>
    %233 = arith.addf %223, %232 : vector<8x32xf32>
    %c4_i32_189 = arith.constant 4 : i32
    %234 = arith.addi %0, %c4_i32_189 : i32
    %c1_i32_190 = arith.constant 1 : i32
    %235 = arith.addi %234, %c1_i32_190 : i32
    %236 = arith.index_cast %arg0 : i32 to index
    %237 = arith.index_cast %235 : i32 to index
    %c0_191 = arith.constant 0 : index
    %c0_192 = arith.constant 0 : index
    %238 = vector.load %arg2[%236, %237, %c0_191, %c0_192] : memref<2x9x9x16xbf16, #tpu.memory_space<vmem>>, vector<1x1x8x16xbf16>
    %239 = vector.shape_cast %238 : vector<1x1x8x16xbf16> to vector<8x16xbf16>
    %c1_193 = arith.constant 1 : index
    %c0_194 = arith.constant 0 : index
    %c0_195 = arith.constant 0 : index
    %c0_196 = arith.constant 0 : index
    %240 = vector.load %arg3[%c1_193, %c0_194, %c0_195, %c0_196] : memref<2x2x16x32xbf16, #tpu.memory_space<vmem>>, vector<1x1x16x32xbf16>
    %241 = vector.shape_cast %240 : vector<1x1x16x32xbf16> to vector<16x32xbf16>
    %cst_197 = arith.constant dense<0.000000e+00> : vector<8x32xf32>
    %242 = tpu.matmul %239, %241, %cst_197 {dimension_numbers = #tpu.dot_dimension_numbers<[1], [0], [0], [1], [0, 0, 1, 1], [], []>} : vector<8x16xbf16>, vector<16x32xbf16>, vector<8x32xf32> -> vector<8x32xf32>
    %243 = arith.addf %233, %242 : vector<8x32xf32>
    %c4_i32_198 = arith.constant 4 : i32
    %244 = arith.addi %0, %c4_i32_198 : i32
    %c1_i32_199 = arith.constant 1 : i32
    %245 = arith.addi %244, %c1_i32_199 : i32
    %246 = arith.index_cast %arg0 : i32 to index
    %247 = arith.index_cast %245 : i32 to index
    %c1_200 = arith.constant 1 : index
    %c0_201 = arith.constant 0 : index
    %248 = vector.load %arg2[%246, %247, %c1_200, %c0_201] : memref<2x9x9x16xbf16, #tpu.memory_space<vmem>>, vector<1x1x8x16xbf16>
    %249 = vector.shape_cast %248 : vector<1x1x8x16xbf16> to vector<8x16xbf16>
    %c1_202 = arith.constant 1 : index
    %c1_203 = arith.constant 1 : index
    %c0_204 = arith.constant 0 : index
    %c0_205 = arith.constant 0 : index
    %250 = vector.load %arg3[%c1_202, %c1_203, %c0_204, %c0_205] : memref<2x2x16x32xbf16, #tpu.memory_space<vmem>>, vector<1x1x16x32xbf16>
    %251 = vector.shape_cast %250 : vector<1x1x16x32xbf16> to vector<16x32xbf16>
    %cst_206 = arith.constant dense<0.000000e+00> : vector<8x32xf32>
    %252 = tpu.matmul %249, %251, %cst_206 {dimension_numbers = #tpu.dot_dimension_numbers<[1], [0], [0], [1], [0, 0, 1, 1], [], []>} : vector<8x16xbf16>, vector<16x32xbf16>, vector<8x32xf32> -> vector<8x32xf32>
    %253 = arith.addf %243, %252 : vector<8x32xf32>
    %c0_207 = arith.constant 0 : index
    %c0_208 = arith.constant 0 : index
    %254 = vector.load %arg4[%c0_207, %c0_208] : memref<1x32xf32, #tpu.memory_space<vmem>>, vector<1x32xf32>
    %255 = vector.broadcast %254 : vector<1x32xf32> to vector<8x32xf32>
    %256 = arith.addf %253, %255 : vector<8x32xf32>
    %cst_209 = arith.constant 0.000000e+00 : f32
    %257 = vector.broadcast %cst_209 : f32 to vector<8x32xf32>
    %258 = arith.cmpf oge, %256, %257 : vector<8x32xf32>
    %cst_210 = arith.constant 0.00999999977 : f32
    %259 = vector.broadcast %cst_210 : f32 to vector<8x32xf32>
    %260 = arith.mulf %259, %256 : vector<8x32xf32>
    %261 = arith.select %258, %256, %260 : vector<8x32xi1>, vector<8x32xf32>
    %262 = arith.truncf %261 : vector<8x32xf32> to vector<8x32xbf16>
    %c0_211 = arith.constant 0 : index
    %c4 = arith.constant 4 : index
    %c0_212 = arith.constant 0 : index
    %c0_213 = arith.constant 0 : index
    %263 = vector.load %arg5[%c0_211, %c4, %c0_212, %c0_213] : memref<1x8x8x32xbf16, #tpu.memory_space<vmem>>, vector<1x1x8x32xbf16>
    %264 = vector.shape_cast %263 : vector<1x1x8x32xbf16> to vector<8x32xbf16>
    %265 = vector.shape_cast %262 : vector<8x32xbf16> to vector<1x1x8x32xbf16>
    tpu.vector_store %arg5[%c0_211, %c4, %c0_212, %c0_213], %265 {strides = array<i32>} : memref<1x8x8x32xbf16, #tpu.memory_space<vmem>>, vector<1x1x8x32xbf16>,
    %cst_214 = arith.constant 0.000000e+00 : f32
    %266 = vector.broadcast %cst_214 : f32 to vector<8x32xf32>
    %c5_i32 = arith.constant 5 : i32
    %267 = arith.addi %0, %c5_i32 : i32
    %c0_i32_215 = arith.constant 0 : i32
    %268 = arith.addi %267, %c0_i32_215 : i32
    %269 = arith.index_cast %arg0 : i32 to index
    %270 = arith.index_cast %268 : i32 to index
    %c0_216 = arith.constant 0 : index
    %c0_217 = arith.constant 0 : index
    %271 = vector.load %arg2[%269, %270, %c0_216, %c0_217] : memref<2x9x9x16xbf16, #tpu.memory_space<vmem>>, vector<1x1x8x16xbf16>
    %272 = vector.shape_cast %271 : vector<1x1x8x16xbf16> to vector<8x16xbf16>
    %c0_218 = arith.constant 0 : index
    %c0_219 = arith.constant 0 : index
    %c0_220 = arith.constant 0 : index
    %c0_221 = arith.constant 0 : index
    %273 = vector.load %arg3[%c0_218, %c0_219, %c0_220, %c0_221] : memref<2x2x16x32xbf16, #tpu.memory_space<vmem>>, vector<1x1x16x32xbf16>
    %274 = vector.shape_cast %273 : vector<1x1x16x32xbf16> to vector<16x32xbf16>
    %cst_222 = arith.constant dense<0.000000e+00> : vector<8x32xf32>
    %275 = tpu.matmul %272, %274, %cst_222 {dimension_numbers = #tpu.dot_dimension_numbers<[1], [0], [0], [1], [0, 0, 1, 1], [], []>} : vector<8x16xbf16>, vector<16x32xbf16>, vector<8x32xf32> -> vector<8x32xf32>
    %276 = arith.addf %266, %275 : vector<8x32xf32>
    %c5_i32_223 = arith.constant 5 : i32
    %277 = arith.addi %0, %c5_i32_223 : i32
    %c0_i32_224 = arith.constant 0 : i32
    %278 = arith.addi %277, %c0_i32_224 : i32
    %279 = arith.index_cast %arg0 : i32 to index
    %280 = arith.index_cast %278 : i32 to index
    %c1_225 = arith.constant 1 : index
    %c0_226 = arith.constant 0 : index
    %281 = vector.load %arg2[%279, %280, %c1_225, %c0_226] : memref<2x9x9x16xbf16, #tpu.memory_space<vmem>>, vector<1x1x8x16xbf16>
    %282 = vector.shape_cast %281 : vector<1x1x8x16xbf16> to vector<8x16xbf16>
    %c0_227 = arith.constant 0 : index
    %c1_228 = arith.constant 1 : index
    %c0_229 = arith.constant 0 : index
    %c0_230 = arith.constant 0 : index
    %283 = vector.load %arg3[%c0_227, %c1_228, %c0_229, %c0_230] : memref<2x2x16x32xbf16, #tpu.memory_space<vmem>>, vector<1x1x16x32xbf16>
    %284 = vector.shape_cast %283 : vector<1x1x16x32xbf16> to vector<16x32xbf16>
    %cst_231 = arith.constant dense<0.000000e+00> : vector<8x32xf32>
    %285 = tpu.matmul %282, %284, %cst_231 {dimension_numbers = #tpu.dot_dimension_numbers<[1], [0], [0], [1], [0, 0, 1, 1], [], []>} : vector<8x16xbf16>, vector<16x32xbf16>, vector<8x32xf32> -> vector<8x32xf32>
    %286 = arith.addf %276, %285 : vector<8x32xf32>
    %c5_i32_232 = arith.constant 5 : i32
    %287 = arith.addi %0, %c5_i32_232 : i32
    %c1_i32_233 = arith.constant 1 : i32
    %288 = arith.addi %287, %c1_i32_233 : i32
    %289 = arith.index_cast %arg0 : i32 to index
    %290 = arith.index_cast %288 : i32 to index
    %c0_234 = arith.constant 0 : index
    %c0_235 = arith.constant 0 : index
    %291 = vector.load %arg2[%289, %290, %c0_234, %c0_235] : memref<2x9x9x16xbf16, #tpu.memory_space<vmem>>, vector<1x1x8x16xbf16>
    %292 = vector.shape_cast %291 : vector<1x1x8x16xbf16> to vector<8x16xbf16>
    %c1_236 = arith.constant 1 : index
    %c0_237 = arith.constant 0 : index
    %c0_238 = arith.constant 0 : index
    %c0_239 = arith.constant 0 : index
    %293 = vector.load %arg3[%c1_236, %c0_237, %c0_238, %c0_239] : memref<2x2x16x32xbf16, #tpu.memory_space<vmem>>, vector<1x1x16x32xbf16>
    %294 = vector.shape_cast %293 : vector<1x1x16x32xbf16> to vector<16x32xbf16>
    %cst_240 = arith.constant dense<0.000000e+00> : vector<8x32xf32>
    %295 = tpu.matmul %292, %294, %cst_240 {dimension_numbers = #tpu.dot_dimension_numbers<[1], [0], [0], [1], [0, 0, 1, 1], [], []>} : vector<8x16xbf16>, vector<16x32xbf16>, vector<8x32xf32> -> vector<8x32xf32>
    %296 = arith.addf %286, %295 : vector<8x32xf32>
    %c5_i32_241 = arith.constant 5 : i32
    %297 = arith.addi %0, %c5_i32_241 : i32
    %c1_i32_242 = arith.constant 1 : i32
    %298 = arith.addi %297, %c1_i32_242 : i32
    %299 = arith.index_cast %arg0 : i32 to index
    %300 = arith.index_cast %298 : i32 to index
    %c1_243 = arith.constant 1 : index
    %c0_244 = arith.constant 0 : index
    %301 = vector.load %arg2[%299, %300, %c1_243, %c0_244] : memref<2x9x9x16xbf16, #tpu.memory_space<vmem>>, vector<1x1x8x16xbf16>
    %302 = vector.shape_cast %301 : vector<1x1x8x16xbf16> to vector<8x16xbf16>
    %c1_245 = arith.constant 1 : index
    %c1_246 = arith.constant 1 : index
    %c0_247 = arith.constant 0 : index
    %c0_248 = arith.constant 0 : index
    %303 = vector.load %arg3[%c1_245, %c1_246, %c0_247, %c0_248] : memref<2x2x16x32xbf16, #tpu.memory_space<vmem>>, vector<1x1x16x32xbf16>
    %304 = vector.shape_cast %303 : vector<1x1x16x32xbf16> to vector<16x32xbf16>
    %cst_249 = arith.constant dense<0.000000e+00> : vector<8x32xf32>
    %305 = tpu.matmul %302, %304, %cst_249 {dimension_numbers = #tpu.dot_dimension_numbers<[1], [0], [0], [1], [0, 0, 1, 1], [], []>} : vector<8x16xbf16>, vector<16x32xbf16>, vector<8x32xf32> -> vector<8x32xf32>
    %306 = arith.addf %296, %305 : vector<8x32xf32>
    %c0_250 = arith.constant 0 : index
    %c0_251 = arith.constant 0 : index
    %307 = vector.load %arg4[%c0_250, %c0_251] : memref<1x32xf32, #tpu.memory_space<vmem>>, vector<1x32xf32>
    %308 = vector.broadcast %307 : vector<1x32xf32> to vector<8x32xf32>
    %309 = arith.addf %306, %308 : vector<8x32xf32>
    %cst_252 = arith.constant 0.000000e+00 : f32
    %310 = vector.broadcast %cst_252 : f32 to vector<8x32xf32>
    %311 = arith.cmpf oge, %309, %310 : vector<8x32xf32>
    %cst_253 = arith.constant 0.00999999977 : f32
    %312 = vector.broadcast %cst_253 : f32 to vector<8x32xf32>
    %313 = arith.mulf %312, %309 : vector<8x32xf32>
    %314 = arith.select %311, %309, %313 : vector<8x32xi1>, vector<8x32xf32>
    %315 = arith.truncf %314 : vector<8x32xf32> to vector<8x32xbf16>
    %c0_254 = arith.constant 0 : index
    %c5 = arith.constant 5 : index
    %c0_255 = arith.constant 0 : index
    %c0_256 = arith.constant 0 : index
    %316 = vector.load %arg5[%c0_254, %c5, %c0_255, %c0_256] : memref<1x8x8x32xbf16, #tpu.memory_space<vmem>>, vector<1x1x8x32xbf16>
    %317 = vector.shape_cast %316 : vector<1x1x8x32xbf16> to vector<8x32xbf16>
    %318 = vector.shape_cast %315 : vector<8x32xbf16> to vector<1x1x8x32xbf16>
    tpu.vector_store %arg5[%c0_254, %c5, %c0_255, %c0_256], %318 {strides = array<i32>} : memref<1x8x8x32xbf16, #tpu.memory_space<vmem>>, vector<1x1x8x32xbf16>,
    %cst_257 = arith.constant 0.000000e+00 : f32
    %319 = vector.broadcast %cst_257 : f32 to vector<8x32xf32>
    %c6_i32 = arith.constant 6 : i32
    %320 = arith.addi %0, %c6_i32 : i32
    %c0_i32_258 = arith.constant 0 : i32
    %321 = arith.addi %320, %c0_i32_258 : i32
    %322 = arith.index_cast %arg0 : i32 to index
    %323 = arith.index_cast %321 : i32 to index
    %c0_259 = arith.constant 0 : index
    %c0_260 = arith.constant 0 : index
    %324 = vector.load %arg2[%322, %323, %c0_259, %c0_260] : memref<2x9x9x16xbf16, #tpu.memory_space<vmem>>, vector<1x1x8x16xbf16>
    %325 = vector.shape_cast %324 : vector<1x1x8x16xbf16> to vector<8x16xbf16>
    %c0_261 = arith.constant 0 : index
    %c0_262 = arith.constant 0 : index
    %c0_263 = arith.constant 0 : index
    %c0_264 = arith.constant 0 : index
    %326 = vector.load %arg3[%c0_261, %c0_262, %c0_263, %c0_264] : memref<2x2x16x32xbf16, #tpu.memory_space<vmem>>, vector<1x1x16x32xbf16>
    %327 = vector.shape_cast %326 : vector<1x1x16x32xbf16> to vector<16x32xbf16>
    %cst_265 = arith.constant dense<0.000000e+00> : vector<8x32xf32>
    %328 = tpu.matmul %325, %327, %cst_265 {dimension_numbers = #tpu.dot_dimension_numbers<[1], [0], [0], [1], [0, 0, 1, 1], [], []>} : vector<8x16xbf16>, vector<16x32xbf16>, vector<8x32xf32> -> vector<8x32xf32>
    %329 = arith.addf %319, %328 : vector<8x32xf32>
    %c6_i32_266 = arith.constant 6 : i32
    %330 = arith.addi %0, %c6_i32_266 : i32
    %c0_i32_267 = arith.constant 0 : i32
    %331 = arith.addi %330, %c0_i32_267 : i32
    %332 = arith.index_cast %arg0 : i32 to index
    %333 = arith.index_cast %331 : i32 to index
    %c1_268 = arith.constant 1 : index
    %c0_269 = arith.constant 0 : index
    %334 = vector.load %arg2[%332, %333, %c1_268, %c0_269] : memref<2x9x9x16xbf16, #tpu.memory_space<vmem>>, vector<1x1x8x16xbf16>
    %335 = vector.shape_cast %334 : vector<1x1x8x16xbf16> to vector<8x16xbf16>
    %c0_270 = arith.constant 0 : index
    %c1_271 = arith.constant 1 : index
    %c0_272 = arith.constant 0 : index
    %c0_273 = arith.constant 0 : index
    %336 = vector.load %arg3[%c0_270, %c1_271, %c0_272, %c0_273] : memref<2x2x16x32xbf16, #tpu.memory_space<vmem>>, vector<1x1x16x32xbf16>
    %337 = vector.shape_cast %336 : vector<1x1x16x32xbf16> to vector<16x32xbf16>
    %cst_274 = arith.constant dense<0.000000e+00> : vector<8x32xf32>
    %338 = tpu.matmul %335, %337, %cst_274 {dimension_numbers = #tpu.dot_dimension_numbers<[1], [0], [0], [1], [0, 0, 1, 1], [], []>} : vector<8x16xbf16>, vector<16x32xbf16>, vector<8x32xf32> -> vector<8x32xf32>
    %339 = arith.addf %329, %338 : vector<8x32xf32>
    %c6_i32_275 = arith.constant 6 : i32
    %340 = arith.addi %0, %c6_i32_275 : i32
    %c1_i32_276 = arith.constant 1 : i32
    %341 = arith.addi %340, %c1_i32_276 : i32
    %342 = arith.index_cast %arg0 : i32 to index
    %343 = arith.index_cast %341 : i32 to index
    %c0_277 = arith.constant 0 : index
    %c0_278 = arith.constant 0 : index
    %344 = vector.load %arg2[%342, %343, %c0_277, %c0_278] : memref<2x9x9x16xbf16, #tpu.memory_space<vmem>>, vector<1x1x8x16xbf16>
    %345 = vector.shape_cast %344 : vector<1x1x8x16xbf16> to vector<8x16xbf16>
    %c1_279 = arith.constant 1 : index
    %c0_280 = arith.constant 0 : index
    %c0_281 = arith.constant 0 : index
    %c0_282 = arith.constant 0 : index
    %346 = vector.load %arg3[%c1_279, %c0_280, %c0_281, %c0_282] : memref<2x2x16x32xbf16, #tpu.memory_space<vmem>>, vector<1x1x16x32xbf16>
    %347 = vector.shape_cast %346 : vector<1x1x16x32xbf16> to vector<16x32xbf16>
    %cst_283 = arith.constant dense<0.000000e+00> : vector<8x32xf32>
    %348 = tpu.matmul %345, %347, %cst_283 {dimension_numbers = #tpu.dot_dimension_numbers<[1], [0], [0], [1], [0, 0, 1, 1], [], []>} : vector<8x16xbf16>, vector<16x32xbf16>, vector<8x32xf32> -> vector<8x32xf32>
    %349 = arith.addf %339, %348 : vector<8x32xf32>
    %c6_i32_284 = arith.constant 6 : i32
    %350 = arith.addi %0, %c6_i32_284 : i32
    %c1_i32_285 = arith.constant 1 : i32
    %351 = arith.addi %350, %c1_i32_285 : i32
    %352 = arith.index_cast %arg0 : i32 to index
    %353 = arith.index_cast %351 : i32 to index
    %c1_286 = arith.constant 1 : index
    %c0_287 = arith.constant 0 : index
    %354 = vector.load %arg2[%352, %353, %c1_286, %c0_287] : memref<2x9x9x16xbf16, #tpu.memory_space<vmem>>, vector<1x1x8x16xbf16>
    %355 = vector.shape_cast %354 : vector<1x1x8x16xbf16> to vector<8x16xbf16>
    %c1_288 = arith.constant 1 : index
    %c1_289 = arith.constant 1 : index
    %c0_290 = arith.constant 0 : index
    %c0_291 = arith.constant 0 : index
    %356 = vector.load %arg3[%c1_288, %c1_289, %c0_290, %c0_291] : memref<2x2x16x32xbf16, #tpu.memory_space<vmem>>, vector<1x1x16x32xbf16>
    %357 = vector.shape_cast %356 : vector<1x1x16x32xbf16> to vector<16x32xbf16>
    %cst_292 = arith.constant dense<0.000000e+00> : vector<8x32xf32>
    %358 = tpu.matmul %355, %357, %cst_292 {dimension_numbers = #tpu.dot_dimension_numbers<[1], [0], [0], [1], [0, 0, 1, 1], [], []>} : vector<8x16xbf16>, vector<16x32xbf16>, vector<8x32xf32> -> vector<8x32xf32>
    %359 = arith.addf %349, %358 : vector<8x32xf32>
    %c0_293 = arith.constant 0 : index
    %c0_294 = arith.constant 0 : index
    %360 = vector.load %arg4[%c0_293, %c0_294] : memref<1x32xf32, #tpu.memory_space<vmem>>, vector<1x32xf32>
    %361 = vector.broadcast %360 : vector<1x32xf32> to vector<8x32xf32>
    %362 = arith.addf %359, %361 : vector<8x32xf32>
    %cst_295 = arith.constant 0.000000e+00 : f32
    %363 = vector.broadcast %cst_295 : f32 to vector<8x32xf32>
    %364 = arith.cmpf oge, %362, %363 : vector<8x32xf32>
    %cst_296 = arith.constant 0.00999999977 : f32
    %365 = vector.broadcast %cst_296 : f32 to vector<8x32xf32>
    %366 = arith.mulf %365, %362 : vector<8x32xf32>
    %367 = arith.select %364, %362, %366 : vector<8x32xi1>, vector<8x32xf32>
    %368 = arith.truncf %367 : vector<8x32xf32> to vector<8x32xbf16>
    %c0_297 = arith.constant 0 : index
    %c6 = arith.constant 6 : index
    %c0_298 = arith.constant 0 : index
    %c0_299 = arith.constant 0 : index
    %369 = vector.load %arg5[%c0_297, %c6, %c0_298, %c0_299] : memref<1x8x8x32xbf16, #tpu.memory_space<vmem>>, vector<1x1x8x32xbf16>
    %370 = vector.shape_cast %369 : vector<1x1x8x32xbf16> to vector<8x32xbf16>
    %371 = vector.shape_cast %368 : vector<8x32xbf16> to vector<1x1x8x32xbf16>
    tpu.vector_store %arg5[%c0_297, %c6, %c0_298, %c0_299], %371 {strides = array<i32>} : memref<1x8x8x32xbf16, #tpu.memory_space<vmem>>, vector<1x1x8x32xbf16>,
    %cst_300 = arith.constant 0.000000e+00 : f32
    %372 = vector.broadcast %cst_300 : f32 to vector<8x32xf32>
    %c7_i32 = arith.constant 7 : i32
    %373 = arith.addi %0, %c7_i32 : i32
    %c0_i32_301 = arith.constant 0 : i32
    %374 = arith.addi %373, %c0_i32_301 : i32
    %375 = arith.index_cast %arg0 : i32 to index
    %376 = arith.index_cast %374 : i32 to index
    %c0_302 = arith.constant 0 : index
    %c0_303 = arith.constant 0 : index
    %377 = vector.load %arg2[%375, %376, %c0_302, %c0_303] : memref<2x9x9x16xbf16, #tpu.memory_space<vmem>>, vector<1x1x8x16xbf16>
    %378 = vector.shape_cast %377 : vector<1x1x8x16xbf16> to vector<8x16xbf16>
    %c0_304 = arith.constant 0 : index
    %c0_305 = arith.constant 0 : index
    %c0_306 = arith.constant 0 : index
    %c0_307 = arith.constant 0 : index
    %379 = vector.load %arg3[%c0_304, %c0_305, %c0_306, %c0_307] : memref<2x2x16x32xbf16, #tpu.memory_space<vmem>>, vector<1x1x16x32xbf16>
    %380 = vector.shape_cast %379 : vector<1x1x16x32xbf16> to vector<16x32xbf16>
    %cst_308 = arith.constant dense<0.000000e+00> : vector<8x32xf32>
    %381 = tpu.matmul %378, %380, %cst_308 {dimension_numbers = #tpu.dot_dimension_numbers<[1], [0], [0], [1], [0, 0, 1, 1], [], []>} : vector<8x16xbf16>, vector<16x32xbf16>, vector<8x32xf32> -> vector<8x32xf32>
    %382 = arith.addf %372, %381 : vector<8x32xf32>
    %c7_i32_309 = arith.constant 7 : i32
    %383 = arith.addi %0, %c7_i32_309 : i32
    %c0_i32_310 = arith.constant 0 : i32
    %384 = arith.addi %383, %c0_i32_310 : i32
    %385 = arith.index_cast %arg0 : i32 to index
    %386 = arith.index_cast %384 : i32 to index
    %c1_311 = arith.constant 1 : index
    %c0_312 = arith.constant 0 : index
    %387 = vector.load %arg2[%385, %386, %c1_311, %c0_312] : memref<2x9x9x16xbf16, #tpu.memory_space<vmem>>, vector<1x1x8x16xbf16>
    %388 = vector.shape_cast %387 : vector<1x1x8x16xbf16> to vector<8x16xbf16>
    %c0_313 = arith.constant 0 : index
    %c1_314 = arith.constant 1 : index
    %c0_315 = arith.constant 0 : index
    %c0_316 = arith.constant 0 : index
    %389 = vector.load %arg3[%c0_313, %c1_314, %c0_315, %c0_316] : memref<2x2x16x32xbf16, #tpu.memory_space<vmem>>, vector<1x1x16x32xbf16>
    %390 = vector.shape_cast %389 : vector<1x1x16x32xbf16> to vector<16x32xbf16>
    %cst_317 = arith.constant dense<0.000000e+00> : vector<8x32xf32>
    %391 = tpu.matmul %388, %390, %cst_317 {dimension_numbers = #tpu.dot_dimension_numbers<[1], [0], [0], [1], [0, 0, 1, 1], [], []>} : vector<8x16xbf16>, vector<16x32xbf16>, vector<8x32xf32> -> vector<8x32xf32>
    %392 = arith.addf %382, %391 : vector<8x32xf32>
    %c7_i32_318 = arith.constant 7 : i32
    %393 = arith.addi %0, %c7_i32_318 : i32
    %c1_i32_319 = arith.constant 1 : i32
    %394 = arith.addi %393, %c1_i32_319 : i32
    %395 = arith.index_cast %arg0 : i32 to index
    %396 = arith.index_cast %394 : i32 to index
    %c0_320 = arith.constant 0 : index
    %c0_321 = arith.constant 0 : index
    %397 = vector.load %arg2[%395, %396, %c0_320, %c0_321] : memref<2x9x9x16xbf16, #tpu.memory_space<vmem>>, vector<1x1x8x16xbf16>
    %398 = vector.shape_cast %397 : vector<1x1x8x16xbf16> to vector<8x16xbf16>
    %c1_322 = arith.constant 1 : index
    %c0_323 = arith.constant 0 : index
    %c0_324 = arith.constant 0 : index
    %c0_325 = arith.constant 0 : index
    %399 = vector.load %arg3[%c1_322, %c0_323, %c0_324, %c0_325] : memref<2x2x16x32xbf16, #tpu.memory_space<vmem>>, vector<1x1x16x32xbf16>
    %400 = vector.shape_cast %399 : vector<1x1x16x32xbf16> to vector<16x32xbf16>
    %cst_326 = arith.constant dense<0.000000e+00> : vector<8x32xf32>
    %401 = tpu.matmul %398, %400, %cst_326 {dimension_numbers = #tpu.dot_dimension_numbers<[1], [0], [0], [1], [0, 0, 1, 1], [], []>} : vector<8x16xbf16>, vector<16x32xbf16>, vector<8x32xf32> -> vector<8x32xf32>
    %402 = arith.addf %392, %401 : vector<8x32xf32>
    %c7_i32_327 = arith.constant 7 : i32
    %403 = arith.addi %0, %c7_i32_327 : i32
    %c1_i32_328 = arith.constant 1 : i32
    %404 = arith.addi %403, %c1_i32_328 : i32
    %405 = arith.index_cast %arg0 : i32 to index
    %406 = arith.index_cast %404 : i32 to index
    %c1_329 = arith.constant 1 : index
    %c0_330 = arith.constant 0 : index
    %407 = vector.load %arg2[%405, %406, %c1_329, %c0_330] : memref<2x9x9x16xbf16, #tpu.memory_space<vmem>>, vector<1x1x8x16xbf16>
    %408 = vector.shape_cast %407 : vector<1x1x8x16xbf16> to vector<8x16xbf16>
    %c1_331 = arith.constant 1 : index
    %c1_332 = arith.constant 1 : index
    %c0_333 = arith.constant 0 : index
    %c0_334 = arith.constant 0 : index
    %409 = vector.load %arg3[%c1_331, %c1_332, %c0_333, %c0_334] : memref<2x2x16x32xbf16, #tpu.memory_space<vmem>>, vector<1x1x16x32xbf16>
    %410 = vector.shape_cast %409 : vector<1x1x16x32xbf16> to vector<16x32xbf16>
    %cst_335 = arith.constant dense<0.000000e+00> : vector<8x32xf32>
    %411 = tpu.matmul %408, %410, %cst_335 {dimension_numbers = #tpu.dot_dimension_numbers<[1], [0], [0], [1], [0, 0, 1, 1], [], []>} : vector<8x16xbf16>, vector<16x32xbf16>, vector<8x32xf32> -> vector<8x32xf32>
    %412 = arith.addf %402, %411 : vector<8x32xf32>
    %c0_336 = arith.constant 0 : index
    %c0_337 = arith.constant 0 : index
    %413 = vector.load %arg4[%c0_336, %c0_337] : memref<1x32xf32, #tpu.memory_space<vmem>>, vector<1x32xf32>
    %414 = vector.broadcast %413 : vector<1x32xf32> to vector<8x32xf32>
    %415 = arith.addf %412, %414 : vector<8x32xf32>
    %cst_338 = arith.constant 0.000000e+00 : f32
    %416 = vector.broadcast %cst_338 : f32 to vector<8x32xf32>
    %417 = arith.cmpf oge, %415, %416 : vector<8x32xf32>
    %cst_339 = arith.constant 0.00999999977 : f32
    %418 = vector.broadcast %cst_339 : f32 to vector<8x32xf32>
    %419 = arith.mulf %418, %415 : vector<8x32xf32>
    %420 = arith.select %417, %415, %419 : vector<8x32xi1>, vector<8x32xf32>
    %421 = arith.truncf %420 : vector<8x32xf32> to vector<8x32xbf16>
    %c0_340 = arith.constant 0 : index
    %c7 = arith.constant 7 : index
    %c0_341 = arith.constant 0 : index
    %c0_342 = arith.constant 0 : index
    %422 = vector.load %arg5[%c0_340, %c7, %c0_341, %c0_342] : memref<1x8x8x32xbf16, #tpu.memory_space<vmem>>, vector<1x1x8x32xbf16>
    %423 = vector.shape_cast %422 : vector<1x1x8x32xbf16> to vector<8x32xbf16>
    %424 = vector.shape_cast %421 : vector<8x32xbf16> to vector<1x1x8x32xbf16>
    tpu.vector_store %arg5[%c0_340, %c7, %c0_341, %c0_342], %424 {strides = array<i32>} : memref<1x8x8x32xbf16, #tpu.memory_space<vmem>>, vector<1x1x8x32xbf16>,
    return
  }
  func.func @transform_0(%arg0: i32, %arg1: i32) -> (i32, i32, i32, i32) {
    %c0_i32 = arith.constant 0 : i32
    %c0_i32_0 = arith.constant 0 : i32
    %c0_i32_1 = arith.constant 0 : i32
    %c0_i32_2 = arith.constant 0 : i32
    %c0_i32_3 = arith.constant 0 : i32
    return %c0_i32, %c0_i32_0, %c0_i32_1, %c0_i32_2 : i32, i32, i32, i32
  }
  func.func @transform_1(%arg0: i32, %arg1: i32) -> (i32, i32, i32, i32) {
    %c0_i32 = arith.constant 0 : i32
    %c0_i32_0 = arith.constant 0 : i32
    %c0_i32_1 = arith.constant 0 : i32
    %c0_i32_2 = arith.constant 0 : i32
    %c0_i32_3 = arith.constant 0 : i32
    return %c0_i32, %c0_i32_0, %c0_i32_1, %c0_i32_2 : i32, i32, i32, i32
  }
  func.func @transform_2(%arg0: i32, %arg1: i32) -> (i32, i32) {
    %c0_i32 = arith.constant 0 : i32
    %c0_i32_0 = arith.constant 0 : i32
    %c0_i32_1 = arith.constant 0 : i32
    return %c0_i32, %c0_i32_0 : i32, i32
  }
  func.func @transform_3(%arg0: i32, %arg1: i32) -> (i32, i32, i32, i32) {
    %c0_i32 = arith.constant 0 : i32
    %c0_i32_0 = arith.constant 0 : i32
    %c0_i32_1 = arith.constant 0 : i32
    return %arg0, %arg1, %c0_i32, %c0_i32_0 : i32, i32, i32, i32
  }
}

module attributes {stable_mosaic.version = 11 : i64} {
  func.func @conv_s2_kernel(%arg0: i32, %arg1: i32, %arg2: memref<2x5x5x128xbf16, #tpu.memory_space<vmem>>, %arg3: memref<2x2x128x64xbf16, #tpu.memory_space<vmem>>, %arg4: memref<1x4x4x64xbf16, #tpu.memory_space<vmem>>, %arg5: memref<1x1x1x64xf32, #tpu.memory_space<vmem>>, %arg6: memref<1x1x1x64xf32, #tpu.memory_space<vmem>>) attributes {dimension_semantics = [#tpu.dimension_semantics<parallel>, #tpu.dimension_semantics<parallel>], iteration_bounds = array<i64: 2, 1>, scalar_prefetch = 0 : i64, scratch_operands = 0 : i64, tpu.core_type = #tpu.core_type<tc>, window_params = [{pipeline_mode = #tpu.pipeline_mode<synchronous>, transform_indices = @transform_0, window_bounds = array<i64: 2, 5, 5, 128>}, {pipeline_mode = #tpu.pipeline_mode<synchronous>, transform_indices = @transform_1, window_bounds = array<i64: 2, 2, 128, 64>}, {transform_indices = @transform_2, window_bounds = array<i64: 1, 4, 4, 64>}, {transform_indices = @transform_3, window_bounds = array<i64: 1, 1, 1, 64>}, {transform_indices = @transform_4, window_bounds = array<i64: 1, 1, 1, 64>}]} {
    %c4_i32 = arith.constant 4 : i32
    %0 = arith.muli %arg1, %c4_i32 : i32
    %cst = arith.constant 0.000000e+00 : f32
    %1 = vector.broadcast %cst : f32 to vector<1x64xf32>
    %cst_0 = arith.constant 0.000000e+00 : f32
    %2 = vector.broadcast %cst_0 : f32 to vector<1x64xf32>
    %cst_1 = arith.constant 0.000000e+00 : f32
    %3 = vector.broadcast %cst_1 : f32 to vector<4x64xf32>
    %c0_i32 = arith.constant 0 : i32
    %4 = arith.addi %0, %c0_i32 : i32
    %c0_i32_2 = arith.constant 0 : i32
    %5 = arith.addi %4, %c0_i32_2 : i32
    %6 = arith.index_cast %arg0 : i32 to index
    %7 = arith.index_cast %5 : i32 to index
    %c0 = arith.constant 0 : index
    %c0_3 = arith.constant 0 : index
    %8 = vector.load %arg2[%6, %7, %c0, %c0_3] : memref<2x5x5x128xbf16, #tpu.memory_space<vmem>>, vector<1x1x4x128xbf16>
    %9 = vector.shape_cast %8 : vector<1x1x4x128xbf16> to vector<4x128xbf16>
    %c0_4 = arith.constant 0 : index
    %c0_5 = arith.constant 0 : index
    %c0_6 = arith.constant 0 : index
    %c0_7 = arith.constant 0 : index
    %10 = vector.load %arg3[%c0_4, %c0_5, %c0_6, %c0_7] : memref<2x2x128x64xbf16, #tpu.memory_space<vmem>>, vector<1x1x128x64xbf16>
    %11 = vector.shape_cast %10 : vector<1x1x128x64xbf16> to vector<128x64xbf16>
    %cst_8 = arith.constant dense<0.000000e+00> : vector<4x64xf32>
    %12 = tpu.matmul %9, %11, %cst_8 {dimension_numbers = #tpu.dot_dimension_numbers<[1], [0], [0], [1], [0, 0, 1, 1], [], []>} : vector<4x128xbf16>, vector<128x64xbf16>, vector<4x64xf32> -> vector<4x64xf32>
    %13 = arith.addf %3, %12 : vector<4x64xf32>
    %c0_i32_9 = arith.constant 0 : i32
    %14 = arith.addi %0, %c0_i32_9 : i32
    %c0_i32_10 = arith.constant 0 : i32
    %15 = arith.addi %14, %c0_i32_10 : i32
    %16 = arith.index_cast %arg0 : i32 to index
    %17 = arith.index_cast %15 : i32 to index
    %c1 = arith.constant 1 : index
    %c0_11 = arith.constant 0 : index
    %18 = vector.load %arg2[%16, %17, %c1, %c0_11] : memref<2x5x5x128xbf16, #tpu.memory_space<vmem>>, vector<1x1x4x128xbf16>
    %19 = vector.shape_cast %18 : vector<1x1x4x128xbf16> to vector<4x128xbf16>
    %c0_12 = arith.constant 0 : index
    %c1_13 = arith.constant 1 : index
    %c0_14 = arith.constant 0 : index
    %c0_15 = arith.constant 0 : index
    %20 = vector.load %arg3[%c0_12, %c1_13, %c0_14, %c0_15] : memref<2x2x128x64xbf16, #tpu.memory_space<vmem>>, vector<1x1x128x64xbf16>
    %21 = vector.shape_cast %20 : vector<1x1x128x64xbf16> to vector<128x64xbf16>
    %cst_16 = arith.constant dense<0.000000e+00> : vector<4x64xf32>
    %22 = tpu.matmul %19, %21, %cst_16 {dimension_numbers = #tpu.dot_dimension_numbers<[1], [0], [0], [1], [0, 0, 1, 1], [], []>} : vector<4x128xbf16>, vector<128x64xbf16>, vector<4x64xf32> -> vector<4x64xf32>
    %23 = arith.addf %13, %22 : vector<4x64xf32>
    %c0_i32_17 = arith.constant 0 : i32
    %24 = arith.addi %0, %c0_i32_17 : i32
    %c1_i32 = arith.constant 1 : i32
    %25 = arith.addi %24, %c1_i32 : i32
    %26 = arith.index_cast %arg0 : i32 to index
    %27 = arith.index_cast %25 : i32 to index
    %c0_18 = arith.constant 0 : index
    %c0_19 = arith.constant 0 : index
    %28 = vector.load %arg2[%26, %27, %c0_18, %c0_19] : memref<2x5x5x128xbf16, #tpu.memory_space<vmem>>, vector<1x1x4x128xbf16>
    %29 = vector.shape_cast %28 : vector<1x1x4x128xbf16> to vector<4x128xbf16>
    %c1_20 = arith.constant 1 : index
    %c0_21 = arith.constant 0 : index
    %c0_22 = arith.constant 0 : index
    %c0_23 = arith.constant 0 : index
    %30 = vector.load %arg3[%c1_20, %c0_21, %c0_22, %c0_23] : memref<2x2x128x64xbf16, #tpu.memory_space<vmem>>, vector<1x1x128x64xbf16>
    %31 = vector.shape_cast %30 : vector<1x1x128x64xbf16> to vector<128x64xbf16>
    %cst_24 = arith.constant dense<0.000000e+00> : vector<4x64xf32>
    %32 = tpu.matmul %29, %31, %cst_24 {dimension_numbers = #tpu.dot_dimension_numbers<[1], [0], [0], [1], [0, 0, 1, 1], [], []>} : vector<4x128xbf16>, vector<128x64xbf16>, vector<4x64xf32> -> vector<4x64xf32>
    %33 = arith.addf %23, %32 : vector<4x64xf32>
    %c0_i32_25 = arith.constant 0 : i32
    %34 = arith.addi %0, %c0_i32_25 : i32
    %c1_i32_26 = arith.constant 1 : i32
    %35 = arith.addi %34, %c1_i32_26 : i32
    %36 = arith.index_cast %arg0 : i32 to index
    %37 = arith.index_cast %35 : i32 to index
    %c1_27 = arith.constant 1 : index
    %c0_28 = arith.constant 0 : index
    %38 = vector.load %arg2[%36, %37, %c1_27, %c0_28] : memref<2x5x5x128xbf16, #tpu.memory_space<vmem>>, vector<1x1x4x128xbf16>
    %39 = vector.shape_cast %38 : vector<1x1x4x128xbf16> to vector<4x128xbf16>
    %c1_29 = arith.constant 1 : index
    %c1_30 = arith.constant 1 : index
    %c0_31 = arith.constant 0 : index
    %c0_32 = arith.constant 0 : index
    %40 = vector.load %arg3[%c1_29, %c1_30, %c0_31, %c0_32] : memref<2x2x128x64xbf16, #tpu.memory_space<vmem>>, vector<1x1x128x64xbf16>
    %41 = vector.shape_cast %40 : vector<1x1x128x64xbf16> to vector<128x64xbf16>
    %cst_33 = arith.constant dense<0.000000e+00> : vector<4x64xf32>
    %42 = tpu.matmul %39, %41, %cst_33 {dimension_numbers = #tpu.dot_dimension_numbers<[1], [0], [0], [1], [0, 0, 1, 1], [], []>} : vector<4x128xbf16>, vector<128x64xbf16>, vector<4x64xf32> -> vector<4x64xf32>
    %43 = arith.addf %33, %42 : vector<4x64xf32>
    %44 = arith.truncf %43 : vector<4x64xf32> to vector<4x64xbf16>
    %c0_34 = arith.constant 0 : index
    %c0_35 = arith.constant 0 : index
    %c0_36 = arith.constant 0 : index
    %c0_37 = arith.constant 0 : index
    %45 = vector.load %arg4[%c0_34, %c0_35, %c0_36, %c0_37] : memref<1x4x4x64xbf16, #tpu.memory_space<vmem>>, vector<1x1x4x64xbf16>
    %46 = vector.shape_cast %45 : vector<1x1x4x64xbf16> to vector<4x64xbf16>
    %47 = vector.shape_cast %44 : vector<4x64xbf16> to vector<1x1x4x64xbf16>
    tpu.vector_store %arg4[%c0_34, %c0_35, %c0_36, %c0_37], %47 {strides = array<i32>} : memref<1x4x4x64xbf16, #tpu.memory_space<vmem>>, vector<1x1x4x64xbf16>,
    %cst_38 = arith.constant dense<0.000000e+00> : vector<64xf32>
    %48 = vector.multi_reduction <add>, %43, %cst_38 [0] : vector<4x64xf32> to vector<64xf32>
    %49 = vector.shape_cast %48 : vector<64xf32> to vector<1x64xf32>
    %50 = arith.addf %1, %49 : vector<1x64xf32>
    %51 = arith.mulf %43, %43 : vector<4x64xf32>
    %cst_39 = arith.constant dense<0.000000e+00> : vector<64xf32>
    %52 = vector.multi_reduction <add>, %51, %cst_39 [0] : vector<4x64xf32> to vector<64xf32>
    %53 = vector.shape_cast %52 : vector<64xf32> to vector<1x64xf32>
    %54 = arith.addf %2, %53 : vector<1x64xf32>
    %cst_40 = arith.constant 0.000000e+00 : f32
    %55 = vector.broadcast %cst_40 : f32 to vector<4x64xf32>
    %c1_i32_41 = arith.constant 1 : i32
    %56 = arith.addi %0, %c1_i32_41 : i32
    %c0_i32_42 = arith.constant 0 : i32
    %57 = arith.addi %56, %c0_i32_42 : i32
    %58 = arith.index_cast %arg0 : i32 to index
    %59 = arith.index_cast %57 : i32 to index
    %c0_43 = arith.constant 0 : index
    %c0_44 = arith.constant 0 : index
    %60 = vector.load %arg2[%58, %59, %c0_43, %c0_44] : memref<2x5x5x128xbf16, #tpu.memory_space<vmem>>, vector<1x1x4x128xbf16>
    %61 = vector.shape_cast %60 : vector<1x1x4x128xbf16> to vector<4x128xbf16>
    %c0_45 = arith.constant 0 : index
    %c0_46 = arith.constant 0 : index
    %c0_47 = arith.constant 0 : index
    %c0_48 = arith.constant 0 : index
    %62 = vector.load %arg3[%c0_45, %c0_46, %c0_47, %c0_48] : memref<2x2x128x64xbf16, #tpu.memory_space<vmem>>, vector<1x1x128x64xbf16>
    %63 = vector.shape_cast %62 : vector<1x1x128x64xbf16> to vector<128x64xbf16>
    %cst_49 = arith.constant dense<0.000000e+00> : vector<4x64xf32>
    %64 = tpu.matmul %61, %63, %cst_49 {dimension_numbers = #tpu.dot_dimension_numbers<[1], [0], [0], [1], [0, 0, 1, 1], [], []>} : vector<4x128xbf16>, vector<128x64xbf16>, vector<4x64xf32> -> vector<4x64xf32>
    %65 = arith.addf %55, %64 : vector<4x64xf32>
    %c1_i32_50 = arith.constant 1 : i32
    %66 = arith.addi %0, %c1_i32_50 : i32
    %c0_i32_51 = arith.constant 0 : i32
    %67 = arith.addi %66, %c0_i32_51 : i32
    %68 = arith.index_cast %arg0 : i32 to index
    %69 = arith.index_cast %67 : i32 to index
    %c1_52 = arith.constant 1 : index
    %c0_53 = arith.constant 0 : index
    %70 = vector.load %arg2[%68, %69, %c1_52, %c0_53] : memref<2x5x5x128xbf16, #tpu.memory_space<vmem>>, vector<1x1x4x128xbf16>
    %71 = vector.shape_cast %70 : vector<1x1x4x128xbf16> to vector<4x128xbf16>
    %c0_54 = arith.constant 0 : index
    %c1_55 = arith.constant 1 : index
    %c0_56 = arith.constant 0 : index
    %c0_57 = arith.constant 0 : index
    %72 = vector.load %arg3[%c0_54, %c1_55, %c0_56, %c0_57] : memref<2x2x128x64xbf16, #tpu.memory_space<vmem>>, vector<1x1x128x64xbf16>
    %73 = vector.shape_cast %72 : vector<1x1x128x64xbf16> to vector<128x64xbf16>
    %cst_58 = arith.constant dense<0.000000e+00> : vector<4x64xf32>
    %74 = tpu.matmul %71, %73, %cst_58 {dimension_numbers = #tpu.dot_dimension_numbers<[1], [0], [0], [1], [0, 0, 1, 1], [], []>} : vector<4x128xbf16>, vector<128x64xbf16>, vector<4x64xf32> -> vector<4x64xf32>
    %75 = arith.addf %65, %74 : vector<4x64xf32>
    %c1_i32_59 = arith.constant 1 : i32
    %76 = arith.addi %0, %c1_i32_59 : i32
    %c1_i32_60 = arith.constant 1 : i32
    %77 = arith.addi %76, %c1_i32_60 : i32
    %78 = arith.index_cast %arg0 : i32 to index
    %79 = arith.index_cast %77 : i32 to index
    %c0_61 = arith.constant 0 : index
    %c0_62 = arith.constant 0 : index
    %80 = vector.load %arg2[%78, %79, %c0_61, %c0_62] : memref<2x5x5x128xbf16, #tpu.memory_space<vmem>>, vector<1x1x4x128xbf16>
    %81 = vector.shape_cast %80 : vector<1x1x4x128xbf16> to vector<4x128xbf16>
    %c1_63 = arith.constant 1 : index
    %c0_64 = arith.constant 0 : index
    %c0_65 = arith.constant 0 : index
    %c0_66 = arith.constant 0 : index
    %82 = vector.load %arg3[%c1_63, %c0_64, %c0_65, %c0_66] : memref<2x2x128x64xbf16, #tpu.memory_space<vmem>>, vector<1x1x128x64xbf16>
    %83 = vector.shape_cast %82 : vector<1x1x128x64xbf16> to vector<128x64xbf16>
    %cst_67 = arith.constant dense<0.000000e+00> : vector<4x64xf32>
    %84 = tpu.matmul %81, %83, %cst_67 {dimension_numbers = #tpu.dot_dimension_numbers<[1], [0], [0], [1], [0, 0, 1, 1], [], []>} : vector<4x128xbf16>, vector<128x64xbf16>, vector<4x64xf32> -> vector<4x64xf32>
    %85 = arith.addf %75, %84 : vector<4x64xf32>
    %c1_i32_68 = arith.constant 1 : i32
    %86 = arith.addi %0, %c1_i32_68 : i32
    %c1_i32_69 = arith.constant 1 : i32
    %87 = arith.addi %86, %c1_i32_69 : i32
    %88 = arith.index_cast %arg0 : i32 to index
    %89 = arith.index_cast %87 : i32 to index
    %c1_70 = arith.constant 1 : index
    %c0_71 = arith.constant 0 : index
    %90 = vector.load %arg2[%88, %89, %c1_70, %c0_71] : memref<2x5x5x128xbf16, #tpu.memory_space<vmem>>, vector<1x1x4x128xbf16>
    %91 = vector.shape_cast %90 : vector<1x1x4x128xbf16> to vector<4x128xbf16>
    %c1_72 = arith.constant 1 : index
    %c1_73 = arith.constant 1 : index
    %c0_74 = arith.constant 0 : index
    %c0_75 = arith.constant 0 : index
    %92 = vector.load %arg3[%c1_72, %c1_73, %c0_74, %c0_75] : memref<2x2x128x64xbf16, #tpu.memory_space<vmem>>, vector<1x1x128x64xbf16>
    %93 = vector.shape_cast %92 : vector<1x1x128x64xbf16> to vector<128x64xbf16>
    %cst_76 = arith.constant dense<0.000000e+00> : vector<4x64xf32>
    %94 = tpu.matmul %91, %93, %cst_76 {dimension_numbers = #tpu.dot_dimension_numbers<[1], [0], [0], [1], [0, 0, 1, 1], [], []>} : vector<4x128xbf16>, vector<128x64xbf16>, vector<4x64xf32> -> vector<4x64xf32>
    %95 = arith.addf %85, %94 : vector<4x64xf32>
    %96 = arith.truncf %95 : vector<4x64xf32> to vector<4x64xbf16>
    %c0_77 = arith.constant 0 : index
    %c1_78 = arith.constant 1 : index
    %c0_79 = arith.constant 0 : index
    %c0_80 = arith.constant 0 : index
    %97 = vector.load %arg4[%c0_77, %c1_78, %c0_79, %c0_80] : memref<1x4x4x64xbf16, #tpu.memory_space<vmem>>, vector<1x1x4x64xbf16>
    %98 = vector.shape_cast %97 : vector<1x1x4x64xbf16> to vector<4x64xbf16>
    %99 = vector.shape_cast %96 : vector<4x64xbf16> to vector<1x1x4x64xbf16>
    tpu.vector_store %arg4[%c0_77, %c1_78, %c0_79, %c0_80], %99 {strides = array<i32>} : memref<1x4x4x64xbf16, #tpu.memory_space<vmem>>, vector<1x1x4x64xbf16>,
    %cst_81 = arith.constant dense<0.000000e+00> : vector<64xf32>
    %100 = vector.multi_reduction <add>, %95, %cst_81 [0] : vector<4x64xf32> to vector<64xf32>
    %101 = vector.shape_cast %100 : vector<64xf32> to vector<1x64xf32>
    %102 = arith.addf %50, %101 : vector<1x64xf32>
    %103 = arith.mulf %95, %95 : vector<4x64xf32>
    %cst_82 = arith.constant dense<0.000000e+00> : vector<64xf32>
    %104 = vector.multi_reduction <add>, %103, %cst_82 [0] : vector<4x64xf32> to vector<64xf32>
    %105 = vector.shape_cast %104 : vector<64xf32> to vector<1x64xf32>
    %106 = arith.addf %54, %105 : vector<1x64xf32>
    %cst_83 = arith.constant 0.000000e+00 : f32
    %107 = vector.broadcast %cst_83 : f32 to vector<4x64xf32>
    %c2_i32 = arith.constant 2 : i32
    %108 = arith.addi %0, %c2_i32 : i32
    %c0_i32_84 = arith.constant 0 : i32
    %109 = arith.addi %108, %c0_i32_84 : i32
    %110 = arith.index_cast %arg0 : i32 to index
    %111 = arith.index_cast %109 : i32 to index
    %c0_85 = arith.constant 0 : index
    %c0_86 = arith.constant 0 : index
    %112 = vector.load %arg2[%110, %111, %c0_85, %c0_86] : memref<2x5x5x128xbf16, #tpu.memory_space<vmem>>, vector<1x1x4x128xbf16>
    %113 = vector.shape_cast %112 : vector<1x1x4x128xbf16> to vector<4x128xbf16>
    %c0_87 = arith.constant 0 : index
    %c0_88 = arith.constant 0 : index
    %c0_89 = arith.constant 0 : index
    %c0_90 = arith.constant 0 : index
    %114 = vector.load %arg3[%c0_87, %c0_88, %c0_89, %c0_90] : memref<2x2x128x64xbf16, #tpu.memory_space<vmem>>, vector<1x1x128x64xbf16>
    %115 = vector.shape_cast %114 : vector<1x1x128x64xbf16> to vector<128x64xbf16>
    %cst_91 = arith.constant dense<0.000000e+00> : vector<4x64xf32>
    %116 = tpu.matmul %113, %115, %cst_91 {dimension_numbers = #tpu.dot_dimension_numbers<[1], [0], [0], [1], [0, 0, 1, 1], [], []>} : vector<4x128xbf16>, vector<128x64xbf16>, vector<4x64xf32> -> vector<4x64xf32>
    %117 = arith.addf %107, %116 : vector<4x64xf32>
    %c2_i32_92 = arith.constant 2 : i32
    %118 = arith.addi %0, %c2_i32_92 : i32
    %c0_i32_93 = arith.constant 0 : i32
    %119 = arith.addi %118, %c0_i32_93 : i32
    %120 = arith.index_cast %arg0 : i32 to index
    %121 = arith.index_cast %119 : i32 to index
    %c1_94 = arith.constant 1 : index
    %c0_95 = arith.constant 0 : index
    %122 = vector.load %arg2[%120, %121, %c1_94, %c0_95] : memref<2x5x5x128xbf16, #tpu.memory_space<vmem>>, vector<1x1x4x128xbf16>
    %123 = vector.shape_cast %122 : vector<1x1x4x128xbf16> to vector<4x128xbf16>
    %c0_96 = arith.constant 0 : index
    %c1_97 = arith.constant 1 : index
    %c0_98 = arith.constant 0 : index
    %c0_99 = arith.constant 0 : index
    %124 = vector.load %arg3[%c0_96, %c1_97, %c0_98, %c0_99] : memref<2x2x128x64xbf16, #tpu.memory_space<vmem>>, vector<1x1x128x64xbf16>
    %125 = vector.shape_cast %124 : vector<1x1x128x64xbf16> to vector<128x64xbf16>
    %cst_100 = arith.constant dense<0.000000e+00> : vector<4x64xf32>
    %126 = tpu.matmul %123, %125, %cst_100 {dimension_numbers = #tpu.dot_dimension_numbers<[1], [0], [0], [1], [0, 0, 1, 1], [], []>} : vector<4x128xbf16>, vector<128x64xbf16>, vector<4x64xf32> -> vector<4x64xf32>
    %127 = arith.addf %117, %126 : vector<4x64xf32>
    %c2_i32_101 = arith.constant 2 : i32
    %128 = arith.addi %0, %c2_i32_101 : i32
    %c1_i32_102 = arith.constant 1 : i32
    %129 = arith.addi %128, %c1_i32_102 : i32
    %130 = arith.index_cast %arg0 : i32 to index
    %131 = arith.index_cast %129 : i32 to index
    %c0_103 = arith.constant 0 : index
    %c0_104 = arith.constant 0 : index
    %132 = vector.load %arg2[%130, %131, %c0_103, %c0_104] : memref<2x5x5x128xbf16, #tpu.memory_space<vmem>>, vector<1x1x4x128xbf16>
    %133 = vector.shape_cast %132 : vector<1x1x4x128xbf16> to vector<4x128xbf16>
    %c1_105 = arith.constant 1 : index
    %c0_106 = arith.constant 0 : index
    %c0_107 = arith.constant 0 : index
    %c0_108 = arith.constant 0 : index
    %134 = vector.load %arg3[%c1_105, %c0_106, %c0_107, %c0_108] : memref<2x2x128x64xbf16, #tpu.memory_space<vmem>>, vector<1x1x128x64xbf16>
    %135 = vector.shape_cast %134 : vector<1x1x128x64xbf16> to vector<128x64xbf16>
    %cst_109 = arith.constant dense<0.000000e+00> : vector<4x64xf32>
    %136 = tpu.matmul %133, %135, %cst_109 {dimension_numbers = #tpu.dot_dimension_numbers<[1], [0], [0], [1], [0, 0, 1, 1], [], []>} : vector<4x128xbf16>, vector<128x64xbf16>, vector<4x64xf32> -> vector<4x64xf32>
    %137 = arith.addf %127, %136 : vector<4x64xf32>
    %c2_i32_110 = arith.constant 2 : i32
    %138 = arith.addi %0, %c2_i32_110 : i32
    %c1_i32_111 = arith.constant 1 : i32
    %139 = arith.addi %138, %c1_i32_111 : i32
    %140 = arith.index_cast %arg0 : i32 to index
    %141 = arith.index_cast %139 : i32 to index
    %c1_112 = arith.constant 1 : index
    %c0_113 = arith.constant 0 : index
    %142 = vector.load %arg2[%140, %141, %c1_112, %c0_113] : memref<2x5x5x128xbf16, #tpu.memory_space<vmem>>, vector<1x1x4x128xbf16>
    %143 = vector.shape_cast %142 : vector<1x1x4x128xbf16> to vector<4x128xbf16>
    %c1_114 = arith.constant 1 : index
    %c1_115 = arith.constant 1 : index
    %c0_116 = arith.constant 0 : index
    %c0_117 = arith.constant 0 : index
    %144 = vector.load %arg3[%c1_114, %c1_115, %c0_116, %c0_117] : memref<2x2x128x64xbf16, #tpu.memory_space<vmem>>, vector<1x1x128x64xbf16>
    %145 = vector.shape_cast %144 : vector<1x1x128x64xbf16> to vector<128x64xbf16>
    %cst_118 = arith.constant dense<0.000000e+00> : vector<4x64xf32>
    %146 = tpu.matmul %143, %145, %cst_118 {dimension_numbers = #tpu.dot_dimension_numbers<[1], [0], [0], [1], [0, 0, 1, 1], [], []>} : vector<4x128xbf16>, vector<128x64xbf16>, vector<4x64xf32> -> vector<4x64xf32>
    %147 = arith.addf %137, %146 : vector<4x64xf32>
    %148 = arith.truncf %147 : vector<4x64xf32> to vector<4x64xbf16>
    %c0_119 = arith.constant 0 : index
    %c2 = arith.constant 2 : index
    %c0_120 = arith.constant 0 : index
    %c0_121 = arith.constant 0 : index
    %149 = vector.load %arg4[%c0_119, %c2, %c0_120, %c0_121] : memref<1x4x4x64xbf16, #tpu.memory_space<vmem>>, vector<1x1x4x64xbf16>
    %150 = vector.shape_cast %149 : vector<1x1x4x64xbf16> to vector<4x64xbf16>
    %151 = vector.shape_cast %148 : vector<4x64xbf16> to vector<1x1x4x64xbf16>
    tpu.vector_store %arg4[%c0_119, %c2, %c0_120, %c0_121], %151 {strides = array<i32>} : memref<1x4x4x64xbf16, #tpu.memory_space<vmem>>, vector<1x1x4x64xbf16>,
    %cst_122 = arith.constant dense<0.000000e+00> : vector<64xf32>
    %152 = vector.multi_reduction <add>, %147, %cst_122 [0] : vector<4x64xf32> to vector<64xf32>
    %153 = vector.shape_cast %152 : vector<64xf32> to vector<1x64xf32>
    %154 = arith.addf %102, %153 : vector<1x64xf32>
    %155 = arith.mulf %147, %147 : vector<4x64xf32>
    %cst_123 = arith.constant dense<0.000000e+00> : vector<64xf32>
    %156 = vector.multi_reduction <add>, %155, %cst_123 [0] : vector<4x64xf32> to vector<64xf32>
    %157 = vector.shape_cast %156 : vector<64xf32> to vector<1x64xf32>
    %158 = arith.addf %106, %157 : vector<1x64xf32>
    %cst_124 = arith.constant 0.000000e+00 : f32
    %159 = vector.broadcast %cst_124 : f32 to vector<4x64xf32>
    %c3_i32 = arith.constant 3 : i32
    %160 = arith.addi %0, %c3_i32 : i32
    %c0_i32_125 = arith.constant 0 : i32
    %161 = arith.addi %160, %c0_i32_125 : i32
    %162 = arith.index_cast %arg0 : i32 to index
    %163 = arith.index_cast %161 : i32 to index
    %c0_126 = arith.constant 0 : index
    %c0_127 = arith.constant 0 : index
    %164 = vector.load %arg2[%162, %163, %c0_126, %c0_127] : memref<2x5x5x128xbf16, #tpu.memory_space<vmem>>, vector<1x1x4x128xbf16>
    %165 = vector.shape_cast %164 : vector<1x1x4x128xbf16> to vector<4x128xbf16>
    %c0_128 = arith.constant 0 : index
    %c0_129 = arith.constant 0 : index
    %c0_130 = arith.constant 0 : index
    %c0_131 = arith.constant 0 : index
    %166 = vector.load %arg3[%c0_128, %c0_129, %c0_130, %c0_131] : memref<2x2x128x64xbf16, #tpu.memory_space<vmem>>, vector<1x1x128x64xbf16>
    %167 = vector.shape_cast %166 : vector<1x1x128x64xbf16> to vector<128x64xbf16>
    %cst_132 = arith.constant dense<0.000000e+00> : vector<4x64xf32>
    %168 = tpu.matmul %165, %167, %cst_132 {dimension_numbers = #tpu.dot_dimension_numbers<[1], [0], [0], [1], [0, 0, 1, 1], [], []>} : vector<4x128xbf16>, vector<128x64xbf16>, vector<4x64xf32> -> vector<4x64xf32>
    %169 = arith.addf %159, %168 : vector<4x64xf32>
    %c3_i32_133 = arith.constant 3 : i32
    %170 = arith.addi %0, %c3_i32_133 : i32
    %c0_i32_134 = arith.constant 0 : i32
    %171 = arith.addi %170, %c0_i32_134 : i32
    %172 = arith.index_cast %arg0 : i32 to index
    %173 = arith.index_cast %171 : i32 to index
    %c1_135 = arith.constant 1 : index
    %c0_136 = arith.constant 0 : index
    %174 = vector.load %arg2[%172, %173, %c1_135, %c0_136] : memref<2x5x5x128xbf16, #tpu.memory_space<vmem>>, vector<1x1x4x128xbf16>
    %175 = vector.shape_cast %174 : vector<1x1x4x128xbf16> to vector<4x128xbf16>
    %c0_137 = arith.constant 0 : index
    %c1_138 = arith.constant 1 : index
    %c0_139 = arith.constant 0 : index
    %c0_140 = arith.constant 0 : index
    %176 = vector.load %arg3[%c0_137, %c1_138, %c0_139, %c0_140] : memref<2x2x128x64xbf16, #tpu.memory_space<vmem>>, vector<1x1x128x64xbf16>
    %177 = vector.shape_cast %176 : vector<1x1x128x64xbf16> to vector<128x64xbf16>
    %cst_141 = arith.constant dense<0.000000e+00> : vector<4x64xf32>
    %178 = tpu.matmul %175, %177, %cst_141 {dimension_numbers = #tpu.dot_dimension_numbers<[1], [0], [0], [1], [0, 0, 1, 1], [], []>} : vector<4x128xbf16>, vector<128x64xbf16>, vector<4x64xf32> -> vector<4x64xf32>
    %179 = arith.addf %169, %178 : vector<4x64xf32>
    %c3_i32_142 = arith.constant 3 : i32
    %180 = arith.addi %0, %c3_i32_142 : i32
    %c1_i32_143 = arith.constant 1 : i32
    %181 = arith.addi %180, %c1_i32_143 : i32
    %182 = arith.index_cast %arg0 : i32 to index
    %183 = arith.index_cast %181 : i32 to index
    %c0_144 = arith.constant 0 : index
    %c0_145 = arith.constant 0 : index
    %184 = vector.load %arg2[%182, %183, %c0_144, %c0_145] : memref<2x5x5x128xbf16, #tpu.memory_space<vmem>>, vector<1x1x4x128xbf16>
    %185 = vector.shape_cast %184 : vector<1x1x4x128xbf16> to vector<4x128xbf16>
    %c1_146 = arith.constant 1 : index
    %c0_147 = arith.constant 0 : index
    %c0_148 = arith.constant 0 : index
    %c0_149 = arith.constant 0 : index
    %186 = vector.load %arg3[%c1_146, %c0_147, %c0_148, %c0_149] : memref<2x2x128x64xbf16, #tpu.memory_space<vmem>>, vector<1x1x128x64xbf16>
    %187 = vector.shape_cast %186 : vector<1x1x128x64xbf16> to vector<128x64xbf16>
    %cst_150 = arith.constant dense<0.000000e+00> : vector<4x64xf32>
    %188 = tpu.matmul %185, %187, %cst_150 {dimension_numbers = #tpu.dot_dimension_numbers<[1], [0], [0], [1], [0, 0, 1, 1], [], []>} : vector<4x128xbf16>, vector<128x64xbf16>, vector<4x64xf32> -> vector<4x64xf32>
    %189 = arith.addf %179, %188 : vector<4x64xf32>
    %c3_i32_151 = arith.constant 3 : i32
    %190 = arith.addi %0, %c3_i32_151 : i32
    %c1_i32_152 = arith.constant 1 : i32
    %191 = arith.addi %190, %c1_i32_152 : i32
    %192 = arith.index_cast %arg0 : i32 to index
    %193 = arith.index_cast %191 : i32 to index
    %c1_153 = arith.constant 1 : index
    %c0_154 = arith.constant 0 : index
    %194 = vector.load %arg2[%192, %193, %c1_153, %c0_154] : memref<2x5x5x128xbf16, #tpu.memory_space<vmem>>, vector<1x1x4x128xbf16>
    %195 = vector.shape_cast %194 : vector<1x1x4x128xbf16> to vector<4x128xbf16>
    %c1_155 = arith.constant 1 : index
    %c1_156 = arith.constant 1 : index
    %c0_157 = arith.constant 0 : index
    %c0_158 = arith.constant 0 : index
    %196 = vector.load %arg3[%c1_155, %c1_156, %c0_157, %c0_158] : memref<2x2x128x64xbf16, #tpu.memory_space<vmem>>, vector<1x1x128x64xbf16>
    %197 = vector.shape_cast %196 : vector<1x1x128x64xbf16> to vector<128x64xbf16>
    %cst_159 = arith.constant dense<0.000000e+00> : vector<4x64xf32>
    %198 = tpu.matmul %195, %197, %cst_159 {dimension_numbers = #tpu.dot_dimension_numbers<[1], [0], [0], [1], [0, 0, 1, 1], [], []>} : vector<4x128xbf16>, vector<128x64xbf16>, vector<4x64xf32> -> vector<4x64xf32>
    %199 = arith.addf %189, %198 : vector<4x64xf32>
    %200 = arith.truncf %199 : vector<4x64xf32> to vector<4x64xbf16>
    %c0_160 = arith.constant 0 : index
    %c3 = arith.constant 3 : index
    %c0_161 = arith.constant 0 : index
    %c0_162 = arith.constant 0 : index
    %201 = vector.load %arg4[%c0_160, %c3, %c0_161, %c0_162] : memref<1x4x4x64xbf16, #tpu.memory_space<vmem>>, vector<1x1x4x64xbf16>
    %202 = vector.shape_cast %201 : vector<1x1x4x64xbf16> to vector<4x64xbf16>
    %203 = vector.shape_cast %200 : vector<4x64xbf16> to vector<1x1x4x64xbf16>
    tpu.vector_store %arg4[%c0_160, %c3, %c0_161, %c0_162], %203 {strides = array<i32>} : memref<1x4x4x64xbf16, #tpu.memory_space<vmem>>, vector<1x1x4x64xbf16>,
    %cst_163 = arith.constant dense<0.000000e+00> : vector<64xf32>
    %204 = vector.multi_reduction <add>, %199, %cst_163 [0] : vector<4x64xf32> to vector<64xf32>
    %205 = vector.shape_cast %204 : vector<64xf32> to vector<1x64xf32>
    %206 = arith.addf %154, %205 : vector<1x64xf32>
    %207 = arith.mulf %199, %199 : vector<4x64xf32>
    %cst_164 = arith.constant dense<0.000000e+00> : vector<64xf32>
    %208 = vector.multi_reduction <add>, %207, %cst_164 [0] : vector<4x64xf32> to vector<64xf32>
    %209 = vector.shape_cast %208 : vector<64xf32> to vector<1x64xf32>
    %210 = arith.addf %158, %209 : vector<1x64xf32>
    %c0_165 = arith.constant 0 : index
    %c0_166 = arith.constant 0 : index
    %c0_167 = arith.constant 0 : index
    %c0_168 = arith.constant 0 : index
    %211 = vector.load %arg5[%c0_165, %c0_166, %c0_167, %c0_168] : memref<1x1x1x64xf32, #tpu.memory_space<vmem>>, vector<1x1x1x64xf32>
    %212 = vector.shape_cast %211 : vector<1x1x1x64xf32> to vector<1x64xf32>
    %213 = vector.shape_cast %206 : vector<1x64xf32> to vector<1x1x1x64xf32>
    tpu.vector_store %arg5[%c0_165, %c0_166, %c0_167, %c0_168], %213 {strides = array<i32>} : memref<1x1x1x64xf32, #tpu.memory_space<vmem>>, vector<1x1x1x64xf32>,
    %c0_169 = arith.constant 0 : index
    %c0_170 = arith.constant 0 : index
    %c0_171 = arith.constant 0 : index
    %c0_172 = arith.constant 0 : index
    %214 = vector.load %arg6[%c0_169, %c0_170, %c0_171, %c0_172] : memref<1x1x1x64xf32, #tpu.memory_space<vmem>>, vector<1x1x1x64xf32>
    %215 = vector.shape_cast %214 : vector<1x1x1x64xf32> to vector<1x64xf32>
    %216 = vector.shape_cast %210 : vector<1x64xf32> to vector<1x1x1x64xf32>
    tpu.vector_store %arg6[%c0_169, %c0_170, %c0_171, %c0_172], %216 {strides = array<i32>} : memref<1x1x1x64xf32, #tpu.memory_space<vmem>>, vector<1x1x1x64xf32>,
    return
  }
  func.func @transform_0(%arg0: i32, %arg1: i32) -> (i32, i32, i32, i32) {
    %c0_i32 = arith.constant 0 : i32
    %c0_i32_0 = arith.constant 0 : i32
    %c0_i32_1 = arith.constant 0 : i32
    %c0_i32_2 = arith.constant 0 : i32
    %c0_i32_3 = arith.constant 0 : i32
    return %c0_i32, %c0_i32_0, %c0_i32_1, %c0_i32_2 : i32, i32, i32, i32
  }
  func.func @transform_1(%arg0: i32, %arg1: i32) -> (i32, i32, i32, i32) {
    %c0_i32 = arith.constant 0 : i32
    %c0_i32_0 = arith.constant 0 : i32
    %c0_i32_1 = arith.constant 0 : i32
    %c0_i32_2 = arith.constant 0 : i32
    %c0_i32_3 = arith.constant 0 : i32
    return %c0_i32, %c0_i32_0, %c0_i32_1, %c0_i32_2 : i32, i32, i32, i32
  }
  func.func @transform_2(%arg0: i32, %arg1: i32) -> (i32, i32, i32, i32) {
    %c0_i32 = arith.constant 0 : i32
    %c0_i32_0 = arith.constant 0 : i32
    %c0_i32_1 = arith.constant 0 : i32
    return %arg0, %arg1, %c0_i32, %c0_i32_0 : i32, i32, i32, i32
  }
  func.func @transform_3(%arg0: i32, %arg1: i32) -> (i32, i32, i32, i32) {
    %c0_i32 = arith.constant 0 : i32
    %c0_i32_0 = arith.constant 0 : i32
    %c0_i32_1 = arith.constant 0 : i32
    return %arg0, %arg1, %c0_i32, %c0_i32_0 : i32, i32, i32, i32
  }
  func.func @transform_4(%arg0: i32, %arg1: i32) -> (i32, i32, i32, i32) {
    %c0_i32 = arith.constant 0 : i32
    %c0_i32_0 = arith.constant 0 : i32
    %c0_i32_1 = arith.constant 0 : i32
    return %arg0, %arg1, %c0_i32, %c0_i32_0 : i32, i32, i32, i32
  }
}

</mosaic_0001>

<llo_original>
// kernel: _lambda_.3
$region0: #{_lambda_.3}
  #allocation0 [shape = 'u32[]', space=smem, size = 0x4, offset = 0x4, fixed_abs, tag = 'smem constant byte address 0x4 - core index']
  #allocation1 [shape = 'u32[144,128]{1,0:T(1,128)}', space=vmem, size = 0x12000, scoped, tag = 'internal scratch']
  %s0 = inlined_call_operand.vmem [shape: bf16[2,5,5,128], index: 0, kind: input, shape index: {}]
  %s1 = inlined_call_operand.vmem [shape: bf16[2,2,128,64], index: 1, kind: input, shape index: {}]
  %s2 = inlined_call_operand.vmem [shape: bf16[2,4,4,64], index: 2, kind: output, shape index: {0}]
  %s3 = inlined_call_operand.vmem [shape: f32[2,1,1,64], index: 3, kind: output, shape index: {1}]
  %s4 = inlined_call_operand.vmem [shape: f32[2,1,1,64], index: 4, kind: output, shape index: {2}]
  %5 = xla_tuple %s2, %s3, %s4
  %s6 = sld [smem:[#allocation0]]
  $region57: #{_lambda_.3} parent=0
    _
  %s8 = ssub.s32 1, %s6
  %s9 = scalar_select 0, %s8, %s6
  loop: start=0, step=1, limit=4
  $region2: #{_lambda_.3} parent=0 // loop_pre_header
    _
  $region3: #{_lambda_.3} parent=0 // loop_header
    %s11 = sphi 0, %s15
    %p12 = scmp.ge.s32.totalorder %s11, 4
    %s18 = sphi 0, %s30
    %s19 = sphi 0, %s26
    %s20 = sphi 0, %s18
    %s21 = sphi 0, %s19
    %s22 = sphi 0, %s20
    %s23 = sphi 0, %s21
    %s31 = sphi 0, %s31
    %s33 = sphi 0, %s31
    %s34 = sphi 0, %s33
    %s48 = sphi 0, %s34
    %s52 = sphi 0, %s52
    %s54 = sphi 0, %s52
    %s55 = sphi 0, %s54
    %s69 = sphi 0, %s55
    %s77 = sphi 0, %s79
    %s80 = sphi 0, %s77
    %s81 = sphi 0, %s80
    %s97 = sphi 0, %s81
    %s105 = sphi 0, %s107
    %s108 = sphi 0, %s105
    %s109 = sphi 0, %s108
    %s125 = sphi 0, %s109
    %s133 = sphi 0, %s135
    %s136 = sphi 0, %s133
    %s137 = sphi 0, %s136
    %s153 = sphi 0, %s137
  $region4: #{_lambda_.3} parent=0 // loop_header_branch
    %14 = sbr.rel (%p12) target = $region8
  $region5: #{_lambda_.3} parent=0 // loop_body
    %s16 = ssub.s32 %s11, 1
    %s17 = ssub.s32 %s11, 2
    %s24 = sadd.s32 1, %s19
    %p25 = scmp.ge.s32.totalorder %s24, 1
    %s26 = scalar_select %p25, 0, %s24
    %s27 = sadd.s32 1, %s18
    %s28 = scalar_select %p25, %s27, %s18
    %p29 = scmp.ge.s32.totalorder %s28, 2
    %s30 = scalar_select %p29, 0, %s28
    %s32 = sadd.s32 %s31, 1
    %p35 = scmp.eq.s32.totalorder %s11, 1
    %p36 = scmp.ne.s32.totalorder %s31, %s33
    %p37 = scmp.eq.s32.totalorder %s11, 0
    %p38 = por %p36, %p37
    %p39 = scmp.ne.s32.totalorder %s31, %s33
    %p40 = scmp.eq.s32.totalorder %s16, 1
    %p41 = por %p39, %p40
    %p42 = scmp.ne.s32.totalorder %s33, %s34
    %p43 = scmp.eq.s32.totalorder %s16, 0
    %p44 = por %p42, %p43
    %p45 = scmp.ne.s32.totalorder %s33, %s34
    %p46 = scmp.eq.s32.totalorder %s17, 1
    %p47 = por %p45, %p46
    %p49 = scmp.ne.s32.totalorder %s34, %s48
    %p50 = scmp.eq.s32.totalorder %s17, 0
    %p51 = por %p49, %p50
    %s53 = sadd.s32 %s52, 1
    %p56 = scmp.eq.s32.totalorder %s11, 1
    %p57 = scmp.ne.s32.totalorder %s52, %s54
    %p58 = scmp.eq.s32.totalorder %s11, 0
    %p59 = por %p57, %p58
    %p60 = scmp.ne.s32.totalorder %s52, %s54
    %p61 = scmp.eq.s32.totalorder %s16, 1
    %p62 = por %p60, %p61
    %p63 = scmp.ne.s32.totalorder %s54, %s55
    %p64 = scmp.eq.s32.totalorder %s16, 0
    %p65 = por %p63, %p64
    %p66 = scmp.ne.s32.totalorder %s54, %s55
    %p67 = scmp.eq.s32.totalorder %s17, 1
    %p68 = por %p66, %p67
    %p70 = scmp.ne.s32.totalorder %s55, %s69
    %p71 = scmp.eq.s32.totalorder %s17, 0
    %p72 = por %p70, %p71
    %s73 = ssub.s32 %s18, %s30
    %s74 = ssub.s32 %s19, %s26
    %s75 = sor.u32 %s73, %s74
    %p76 = scmp.eq.s32.totalorder %s75, 0
    %s78 = sadd.s32 %s77, 1
    %s79 = scalar_select %p76, %s77, %s78
    %p82 = pneg %p76
    %p83 = scmp.eq.s32.totalorder %s11, 1
    %p84 = por %p82, %p83
    %p85 = scmp.ne.s32.totalorder %s77, %s80
    %p86 = scmp.eq.s32.totalorder %s11, 0
    %p87 = por %p85, %p86
    %p88 = scmp.ne.s32.totalorder %s77, %s80
    %p89 = scmp.eq.s32.totalorder %s16, 1
    %p90 = por %p88, %p89
    %p91 = scmp.ne.s32.totalorder %s80, %s81
    %p92 = scmp.eq.s32.totalorder %s16, 0
    %p93 = por %p91, %p92
    %p94 = scmp.ne.s32.totalorder %s80, %s81
    %p95 = scmp.eq.s32.totalorder %s17, 1
    %p96 = por %p94, %p95
    %p98 = scmp.ne.s32.totalorder %s81, %s97
    %p99 = scmp.eq.s32.totalorder %s17, 0
    %p100 = por %p98, %p99
    %s101 = ssub.s32 %s18, %s30
    %s102 = ssub.s32 %s19, %s26
    %s103 = sor.u32 %s101, %s102
    %p104 = scmp.eq.s32.totalorder %s103, 0
    %s106 = sadd.s32 %s105, 1
    %s107 = scalar_select %p104, %s105, %s106
    %p110 = pneg %p104
    %p111 = scmp.eq.s32.totalorder %s11, 1
    %p112 = por %p110, %p111
    %p113 = scmp.ne.s32.totalorder %s105, %s108
    %p114 = scmp.eq.s32.totalorder %s11, 0
    %p115 = por %p113, %p114
    %p116 = scmp.ne.s32.totalorder %s105, %s108
    %p117 = scmp.eq.s32.totalorder %s16, 1
    %p118 = por %p116, %p117
    %p119 = scmp.ne.s32.totalorder %s108, %s109
    %p120 = scmp.eq.s32.totalorder %s16, 0
    %p121 = por %p119, %p120
    %p122 = scmp.ne.s32.totalorder %s108, %s109
    %p123 = scmp.eq.s32.totalorder %s17, 1
    %p124 = por %p122, %p123
    %p126 = scmp.ne.s32.totalorder %s109, %s125
    %p127 = scmp.eq.s32.totalorder %s17, 0
    %p128 = por %p126, %p127
    %s129 = ssub.s32 %s18, %s30
    %s130 = ssub.s32 %s19, %s26
    %s131 = sor.u32 %s129, %s130
    %p132 = scmp.eq.s32.totalorder %s131, 0
    %s134 = sadd.s32 %s133, 1
    %s135 = scalar_select %p132, %s133, %s134
    %p138 = pneg %p132
    %p139 = scmp.eq.s32.totalorder %s11, 1
    %p140 = por %p138, %p139
    %p141 = scmp.ne.s32.totalorder %s133, %s136
    %p142 = scmp.eq.s32.totalorder %s11, 0
    %p143 = por %p141, %p142
    %p144 = scmp.ne.s32.totalorder %s133, %s136
    %p145 = scmp.eq.s32.totalorder %s16, 1
    %p146 = por %p144, %p145
    %p147 = scmp.ne.s32.totalorder %s136, %s137
    %p148 = scmp.eq.s32.totalorder %s16, 0
    %p149 = por %p147, %p148
    %p150 = scmp.ne.s32.totalorder %s136, %s137
    %p151 = scmp.eq.s32.totalorder %s17, 1
    %p152 = por %p150, %p151
    %p154 = scmp.ne.s32.totalorder %s137, %s153
    %p155 = scmp.eq.s32.totalorder %s17, 0
    %p156 = por %p154, %p155
    %p157 = scmp.le.s32.totalorder 1, %s11
    %p158 = scmp.lt.s32.totalorder %s11, 3
    %p159 = pnand %p157, %p158
    %p160 = pneg %p159
    // Predicated region
    $region9: #{_lambda_.3} parent=5 // pred_check
      _
    $region10: #{_lambda_.3} parent=5 // pred_check_branch
      %162 = sbr.rel (%p159) target = $region12
    $region11: #{_lambda_.3} parent=5 // pred_region
      %s163 = ssub.s32 %s11, 1
      // Predicated region
      $region13: #{_lambda_.3} parent=11 // pred_check
        %p164 = pneg %p44
      $region14: #{_lambda_.3} parent=11 // pred_check_branch
        %166 = sbr.rel (%p164) target = $region16
      $region15: #{_lambda_.3} parent=11 // pred_region
        _
      $region16: #{_lambda_.3} parent=11 // pred_fallthru
        _
      // Predicated region
      $region17: #{_lambda_.3} parent=11 // pred_check
        %p167 = pneg %p65
      $region18: #{_lambda_.3} parent=11 // pred_check_branch
        %169 = sbr.rel (%p167) target = $region20
      $region19: #{_lambda_.3} parent=11 // pred_region
        _
      $region20: #{_lambda_.3} parent=11 // pred_fallthru
        _
    $region12: #{_lambda_.3} parent=5 // pred_fallthru
      _
    %p170 = scmp.lt.s32.totalorder %s11, 2
    // Predicated region
    $region21: #{_lambda_.3} parent=5 // pred_check
      %p171 = pneg %p170
    $region22: #{_lambda_.3} parent=5 // pred_check_branch
      %173 = sbr.rel (%p171) target = $region24
    $region23: #{_lambda_.3} parent=5 // pred_region
      _
    $region24: #{_lambda_.3} parent=5 // pred_fallthru
      _
    %p174 = scmp.le.s32.totalorder 1, %s11
    %p175 = scmp.lt.s32.totalorder %s11, 3
    %p176 = pnand %p174, %p175
    %p177 = pneg %p176
    // Predicated region
    $region25: #{_lambda_.3} parent=5 // pred_check
      _
    $region26: #{_lambda_.3} parent=5 // pred_check_branch
      %179 = sbr.rel (%p176) target = $region28
    $region27: #{_lambda_.3} parent=5 // pred_region
      %s180 = ssub.s32 %s11, 1
      %p181 = pneg %p44
      %p182 = pneg %p41
      %p183 = pneg %p65
      %p184 = pneg %p62
      %p185 = pneg %p93
      %p186 = pneg %p90
      %s187 = smul.u32 4, %s21
      %p188 = scmp.lt.s32.totalorder %s20, 1
      %s189 = scalar_select %p188, %s20, 1
      %p190 = scmp.lt.s32.totalorder %s187, 3
      %s191 = scalar_select %p190, %s187, 3
      %s192 = smul.addr %s189, 4
      %s193 = sadd.s32 %s191, %s192
      %s194 = smul.addr %s193, 2
      %s195 = scalar_lea.vmem %s2, %s194
      %p196 = pneg %p121
      %p197 = pneg %p118
      %p198 = scmp.lt.s32.totalorder %s20, 1
      %s199 = scalar_select %p198, %s20, 1
      %p200 = scmp.lt.s32.totalorder %s21, 0
      %s201 = scalar_select %p200, %s21, 0
      %s202 = sadd.s32 %s201, %s199
      %s203 = scalar_lea.vmem %s3, %s202
      %p204 = pneg %p149
      %p205 = pneg %p146
      %p206 = scmp.lt.s32.totalorder %s20, 1
      %s207 = scalar_select %p206, %s20, 1
      %p208 = scmp.lt.s32.totalorder %s21, 0
      %s209 = scalar_select %p208, %s21, 0
      %s210 = sadd.s32 %s209, %s207
      %s211 = scalar_lea.vmem %s4, %s210
      %s212 = smul.u32 4, %s21
      %p213 = scmp.lt.s32.totalorder %s20, 1
      %s214 = scalar_select %p213, %s20, 1
      %p215 = scmp.lt.s32.totalorder %s212, 3
      %s216 = scalar_select %p215, %s212, 3
      %s217 = smul.addr %s214, 4
      %s218 = sadd.s32 %s216, %s217
      %s219 = smul.addr %s218, 2
      %s220 = scalar_lea.vmem %s2, %s219
      %s221 = smul.u32 4, %s21
      %p222 = scmp.lt.s32.totalorder %s20, 1
      %s223 = scalar_select %p222, %s20, 1
      %p224 = scmp.lt.s32.totalorder %s21, 0
      %s225 = scalar_select %p224, %s21, 0
      %s226 = sadd.s32 %s225, %s223
      %s227 = scalar_lea.vmem %s3, %s226
      %p228 = scmp.lt.s32.totalorder %s20, 1
      %s229 = scalar_select %p228, %s20, 1
      %p230 = scmp.lt.s32.totalorder %s21, 0
      %s231 = scalar_select %p230, %s21, 0
      %s232 = sadd.s32 %s231, %s229
      %s233 = scalar_lea.vmem %s4, %s232
      %s235 = smul.u32 %s21, 4
      %s236 = smul.u32 %s20, 5
      %s237 = sadd.s32 %s235, %s236
      %s238 = smul.addr %s237, 4
      %s239 = scalar_lea.vmem %s0, %s238
      %v240 = vld [vmem:[%s239] sm:$0x3]
      %v241 = vld [vmem:[%s1] sm:$0xf]
      %v242 = vld [vmem:[%s1 + $0x4] sm:$0xf]
      %v243 = vld [vmem:[%s1 + $0x8] sm:$0xf]
      %v244 = vld [vmem:[%s1 + $0xc] sm:$0xf]
      %v245 = vld [vmem:[%s1 + $0x10] sm:$0xf]
      %v246 = vld [vmem:[%s1 + $0x14] sm:$0xf]
      %v247 = vld [vmem:[%s1 + $0x18] sm:$0xf]
      %v248 = vld [vmem:[%s1 + $0x1c] sm:$0xf]
      %v249 = vld [vmem:[%s1 + $0x20] sm:$0xf]
      %v250 = vld [vmem:[%s1 + $0x24] sm:$0xf]
      %v251 = vld [vmem:[%s1 + $0x28] sm:$0xf]
      %v252 = vld [vmem:[%s1 + $0x2c] sm:$0xf]
      %v253 = vld [vmem:[%s1 + $0x30] sm:$0xf]
      %v254 = vld [vmem:[%s1 + $0x34] sm:$0xf]
      %v255 = vld [vmem:[%s1 + $0x38] sm:$0xf]
      %v256 = vld [vmem:[%s1 + $0x3c] sm:$0xf]
      %v257 = vld [vmem:[%s239] sm:$0x7]
      %s258 = scalar_lea.vmem %s1, 64
      %v259 = vld [vmem:[%s258] sm:$0xf]
      %v260 = vld [vmem:[%s258 + $0x4] sm:$0xf]
      %v261 = vld [vmem:[%s258 + $0x8] sm:$0xf]
      %v262 = vld [vmem:[%s258 + $0xc] sm:$0xf]
      %v263 = vld [vmem:[%s258 + $0x10] sm:$0xf]
      %v264 = vld [vmem:[%s258 + $0x14] sm:$0xf]
      %v265 = vld [vmem:[%s258 + $0x18] sm:$0xf]
      %v266 = vld [vmem:[%s258 + $0x1c] sm:$0xf]
      %v267 = vld [vmem:[%s258 + $0x20] sm:$0xf]
      %v268 = vld [vmem:[%s258 + $0x24] sm:$0xf]
      %v269 = vld [vmem:[%s258 + $0x28] sm:$0xf]
      %v270 = vld [vmem:[%s258 + $0x2c] sm:$0xf]
      %v271 = vld [vmem:[%s258 + $0x30] sm:$0xf]
      %v272 = vld [vmem:[%s258 + $0x34] sm:$0xf]
      %v273 = vld [vmem:[%s258 + $0x38] sm:$0xf]
      %v274 = vld [vmem:[%s258 + $0x3c] sm:$0xf]
      %v276 = vunpack.c.l.b16 %v257
      %v277 = vpack.c.b16 %v276, %v276
      %v279 = vshrl.u32 %v277, 16
      %v281 = vshll.u32 %v277, 16
      %v283 = vrot.slane %v281, 1
      %v284 = vor.u32 %v279, %v283
      %v302 = vunpack.c.l.b16 %v259
      %v303 = vunpack.c.l.b16 %v260
      %v304 = vunpack.c.l.b16 %v261
      %v305 = vunpack.c.l.b16 %v262
      %v306 = vunpack.c.l.b16 %v263
      %v307 = vunpack.c.l.b16 %v264
      %v308 = vunpack.c.l.b16 %v265
      %v309 = vunpack.c.l.b16 %v266
      %v310 = vunpack.c.l.b16 %v267
      %v311 = vunpack.c.l.b16 %v268
      %v312 = vunpack.c.l.b16 %v269
      %v313 = vunpack.c.l.b16 %v270
      %v314 = vunpack.c.l.b16 %v271
      %v315 = vunpack.c.l.b16 %v272
      %v316 = vunpack.c.l.b16 %v273
      %v317 = vunpack.c.l.b16 %v274
      %v318 = vpack.c.b16 %v303, %v302
      %v319 = vpack.c.b16 %v305, %v304
      %v320 = vpack.c.b16 %v307, %v306
      %v321 = vpack.c.b16 %v309, %v308
      %v322 = vpack.c.b16 %v311, %v310
      %v323 = vpack.c.b16 %v313, %v312
      %v324 = vpack.c.b16 %v315, %v314
      %v325 = vpack.c.b16 %v317, %v316
      %334 = vmatprep.subr.bf16.mxu0 0
      %335 = vmatpush1.bf16.msra.mxu0 %v318
      %336 = vmatprep.subr.bf16.mxu0 0
      %337 = vmatpush1.bf16.msra.mxu0 %v319
      %338 = vmatprep.subr.bf16.mxu0 0
      %339 = vmatpush1.bf16.msra.mxu0 %v320
      %340 = vmatprep.subr.bf16.mxu0 0
      %341 = vmatpush1.bf16.msra.mxu0 %v321
      %342 = vmatprep.subr.bf16.mxu0 0
      %343 = vmatpush1.bf16.msra.mxu0 %v322
      %344 = vmatprep.subr.bf16.mxu0 0
      %345 = vmatpush1.bf16.msra.mxu0 %v323
      %346 = vmatprep.subr.bf16.mxu0 0
      %347 = vmatpush1.bf16.msra.mxu0 %v324
      %348 = vmatprep.subr.bf16.mxu0 0
      %349 = vmatpush1.bf16.msra.mxu0 %v325
      %350 = vmatprep.subr.bf16.mxu0 0
      %351 = vmatpush1.bf16.msra.mxu0 0
      %352 = vmatprep.subr.bf16.mxu0 0
      %353 = vmatpush1.bf16.msra.mxu0 0
      %354 = vmatprep.subr.bf16.mxu0 0
      %355 = vmatpush1.bf16.msra.mxu0 0
      %356 = vmatprep.subr.bf16.mxu0 0
      %357 = vmatpush1.bf16.msra.mxu0 0
      %358 = vmatprep.subr.bf16.mxu0 0
      %359 = vmatpush1.bf16.msra.mxu0 0
      %360 = vmatprep.subr.bf16.mxu0 0
      %361 = vmatpush1.bf16.msra.mxu0 0
      %362 = vmatprep.subr.bf16.mxu0 0
      %363 = vmatpush1.bf16.msra.mxu0 0
      %364 = vmatprep.subr.bf16.mxu0 0
      %365 = vmatpush1.bf16.msra.mxu0 0
      %366 = vmatprep.mubr.bf16.mxu0 0
      %367 = vmatmul.mubr.bf16.gmra.mrb[0].mxu0 %v284
      %v368 = vpop.f32.mrb[0].mxu0
      %v369 = vadd.f32 0.0, %v368
      %v370 = vpop.f32.mrb[0].mxu0
      %v371 = vpop.f32.mrb[0].mxu0
      %v372 = vpop.f32.mrb[0].mxu0
      %373 = vdwg.mxu0
      %v390 = vunpack.c.l.b16 %v241
      %v391 = vunpack.c.l.b16 %v242
      %v392 = vunpack.c.l.b16 %v243
      %v393 = vunpack.c.l.b16 %v244
      %v394 = vunpack.c.l.b16 %v245
      %v395 = vunpack.c.l.b16 %v246
      %v396 = vunpack.c.l.b16 %v247
      %v397 = vunpack.c.l.b16 %v248
      %v398 = vunpack.c.l.b16 %v249
      %v399 = vunpack.c.l.b16 %v250
      %v400 = vunpack.c.l.b16 %v251
      %v401 = vunpack.c.l.b16 %v252
      %v402 = vunpack.c.l.b16 %v253
      %v403 = vunpack.c.l.b16 %v254
      %v404 = vunpack.c.l.b16 %v255
      %v405 = vunpack.c.l.b16 %v256
      %v406 = vpack.c.b16 %v391, %v390
      %v407 = vpack.c.b16 %v393, %v392
      %v408 = vpack.c.b16 %v395, %v394
      %v409 = vpack.c.b16 %v397, %v396
      %v410 = vpack.c.b16 %v399, %v398
      %v411 = vpack.c.b16 %v401, %v400
      %v412 = vpack.c.b16 %v403, %v402
      %v413 = vpack.c.b16 %v405, %v404
      %422 = vmatprep.subr.bf16.mxu0 0
      %423 = vmatpush1.bf16.msra.mxu0 %v406
      %424 = vmatprep.subr.bf16.mxu0 0
      %425 = vmatpush1.bf16.msra.mxu0 %v407
      %426 = vmatprep.subr.bf16.mxu0 0
      %427 = vmatpush1.bf16.msra.mxu0 %v408
      %428 = vmatprep.subr.bf16.mxu0 0
      %429 = vmatpush1.bf16.msra.mxu0 %v409
      %430 = vmatprep.subr.bf16.mxu0 0
      %431 = vmatpush1.bf16.msra.mxu0 %v410
      %432 = vmatprep.subr.bf16.mxu0 0
      %433 = vmatpush1.bf16.msra.mxu0 %v411
      %434 = vmatprep.subr.bf16.mxu0 0
      %435 = vmatpush1.bf16.msra.mxu0 %v412
      %436 = vmatprep.subr.bf16.mxu0 0
      %437 = vmatpush1.bf16.msra.mxu0 %v413
      %438 = vmatprep.subr.bf16.mxu0 0
      %439 = vmatpush1.bf16.msra.mxu0 0
      %440 = vmatprep.subr.bf16.mxu0 0
      %441 = vmatpush1.bf16.msra.mxu0 0
      %442 = vmatprep.subr.bf16.mxu0 0
      %443 = vmatpush1.bf16.msra.mxu0 0
      %444 = vmatprep.subr.bf16.mxu0 0
      %445 = vmatpush1.bf16.msra.mxu0 0
      %446 = vmatprep.subr.bf16.mxu0 0
      %447 = vmatpush1.bf16.msra.mxu0 0
      %448 = vmatprep.subr.bf16.mxu0 0
      %449 = vmatpush1.bf16.msra.mxu0 0
      %450 = vmatprep.subr.bf16.mxu0 0
      %451 = vmatpush1.bf16.msra.mxu0 0
      %452 = vmatprep.subr.bf16.mxu0 0
      %453 = vmatpush1.bf16.msra.mxu0 0
      %454 = vmatprep.mubr.bf16.mxu0 0
      %455 = vmatmul.mubr.bf16.gmra.mrb[0].mxu0 %v240
      %v456 = vpop.f32.mrb[0].mxu0
      %v457 = vadd.f32 %v369, %v456
      %v458 = vpop.f32.mrb[0].mxu0
      %v459 = vpop.f32.mrb[0].mxu0
      %v460 = vpop.f32.mrb[0].mxu0
      %461 = vdwg.mxu0
      %s462 = sadd.s32 %s235, 1
      %s463 = sadd.s32 %s462, %s236
      %s464 = smul.addr %s463, 4
      %s465 = scalar_lea.vmem %s0, %s464
      %v466 = vld [vmem:[%s465] sm:$0x3]
      %s467 = scalar_lea.vmem %s1, 128
      %v468 = vld [vmem:[%s467] sm:$0xf]
      %v469 = vld [vmem:[%s467 + $0x4] sm:$0xf]
      %v470 = vld [vmem:[%s467 + $0x8] sm:$0xf]
      %v471 = vld [vmem:[%s467 + $0xc] sm:$0xf]
      %v472 = vld [vmem:[%s467 + $0x10] sm:$0xf]
      %v473 = vld [vmem:[%s467 + $0x14] sm:$0xf]
      %v474 = vld [vmem:[%s467 + $0x18] sm:$0xf]
      %v475 = vld [vmem:[%s467 + $0x1c] sm:$0xf]
      %v476 = vld [vmem:[%s467 + $0x20] sm:$0xf]
      %v477 = vld [vmem:[%s467 + $0x24] sm:$0xf]
      %v478 = vld [vmem:[%s467 + $0x28] sm:$0xf]
      %v479 = vld [vmem:[%s467 + $0x2c] sm:$0xf]
      %v480 = vld [vmem:[%s467 + $0x30] sm:$0xf]
      %v481 = vld [vmem:[%s467 + $0x34] sm:$0xf]
      %v482 = vld [vmem:[%s467 + $0x38] sm:$0xf]
      %v483 = vld [vmem:[%s467 + $0x3c] sm:$0xf]
      %v500 = vunpack.c.l.b16 %v468
      %v501 = vunpack.c.l.b16 %v469
      %v502 = vunpack.c.l.b16 %v470
      %v503 = vunpack.c.l.b16 %v471
      %v504 = vunpack.c.l.b16 %v472
      %v505 = vunpack.c.l.b16 %v473
      %v506 = vunpack.c.l.b16 %v474
      %v507 = vunpack.c.l.b16 %v475
      %v508 = vunpack.c.l.b16 %v476
      %v509 = vunpack.c.l.b16 %v477
      %v510 = vunpack.c.l.b16 %v478
      %v511 = vunpack.c.l.b16 %v479
      %v512 = vunpack.c.l.b16 %v480
      %v513 = vunpack.c.l.b16 %v481
      %v514 = vunpack.c.l.b16 %v482
      %v515 = vunpack.c.l.b16 %v483
      %v516 = vpack.c.b16 %v501, %v500
      %v517 = vpack.c.b16 %v503, %v502
      %v518 = vpack.c.b16 %v505, %v504
      %v519 = vpack.c.b16 %v507, %v506
      %v520 = vpack.c.b16 %v509, %v508
      %v521 = vpack.c.b16 %v511, %v510
      %v522 = vpack.c.b16 %v513, %v512
      %v523 = vpack.c.b16 %v515, %v514
      %532 = vmatprep.subr.bf16.mxu0 0
      %533 = vmatpush1.bf16.msra.mxu0 %v516
      %534 = vmatprep.subr.bf16.mxu0 0
      %535 = vmatpush1.bf16.msra.mxu0 %v517
      %536 = vmatprep.subr.bf16.mxu0 0
      %537 = vmatpush1.bf16.msra.mxu0 %v518
      %538 = vmatprep.subr.bf16.mxu0 0
      %539 = vmatpush1.bf16.msra.mxu0 %v519
      %540 = vmatprep.subr.bf16.mxu0 0
      %541 = vmatpush1.bf16.msra.mxu0 %v520
      %542 = vmatprep.subr.bf16.mxu0 0
      %543 = vmatpush1.bf16.msra.mxu0 %v521
      %544 = vmatprep.subr.bf16.mxu0 0
      %545 = vmatpush1.bf16.msra.mxu0 %v522
      %546 = vmatprep.subr.bf16.mxu0 0
      %547 = vmatpush1.bf16.msra.mxu0 %v523
      %548 = vmatprep.subr.bf16.mxu0 0
      %549 = vmatpush1.bf16.msra.mxu0 0
      %550 = vmatprep.subr.bf16.mxu0 0
      %551 = vmatpush1.bf16.msra.mxu0 0
      %552 = vmatprep.subr.bf16.mxu0 0
      %553 = vmatpush1.bf16.msra.mxu0 0
      %554 = vmatprep.subr.bf16.mxu0 0
      %555 = vmatpush1.bf16.msra.mxu0 0
      %556 = vmatprep.subr.bf16.mxu0 0
      %557 = vmatpush1.bf16.msra.mxu0 0
      %558 = vmatprep.subr.bf16.mxu0 0
      %559 = vmatpush1.bf16.msra.mxu0 0
      %560 = vmatprep.subr.bf16.mxu0 0
      %561 = vmatpush1.bf16.msra.mxu0 0
      %562 = vmatprep.subr.bf16.mxu0 0
      %563 = vmatpush1.bf16.msra.mxu0 0
      %564 = vmatprep.mubr.bf16.mxu0 0
      %565 = vmatmul.mubr.bf16.gmra.mrb[0].mxu0 %v466
      %v566 = vpop.f32.mrb[0].mxu0
      %v567 = vadd.f32 0.0, %v566
      %v568 = vpop.f32.mrb[0].mxu0
      %v569 = vpop.f32.mrb[0].mxu0
      %v570 = vpop.f32.mrb[0].mxu0
      %571 = vdwg.mxu0
      %v572 = vadd.f32 %v457, %v567
      %v573 = vld [vmem:[%s465] sm:$0x7]
      %s574 = scalar_lea.vmem %s1, 192
      %v575 = vld [vmem:[%s574] sm:$0xf]
      %v576 = vld [vmem:[%s574 + $0x4] sm:$0xf]
      %v577 = vld [vmem:[%s574 + $0x8] sm:$0xf]
      %v578 = vld [vmem:[%s574 + $0xc] sm:$0xf]
      %v579 = vld [vmem:[%s574 + $0x10] sm:$0xf]
      %v580 = vld [vmem:[%s574 + $0x14] sm:$0xf]
      %v581 = vld [vmem:[%s574 + $0x18] sm:$0xf]
      %v582 = vld [vmem:[%s574 + $0x1c] sm:$0xf]
      %v583 = vld [vmem:[%s574 + $0x20] sm:$0xf]
      %v584 = vld [vmem:[%s574 + $0x24] sm:$0xf]
      %v585 = vld [vmem:[%s574 + $0x28] sm:$0xf]
      %v586 = vld [vmem:[%s574 + $0x2c] sm:$0xf]
      %v587 = vld [vmem:[%s574 + $0x30] sm:$0xf]
      %v588 = vld [vmem:[%s574 + $0x34] sm:$0xf]
      %v589 = vld [vmem:[%s574 + $0x38] sm:$0xf]
      %v590 = vld [vmem:[%s574 + $0x3c] sm:$0xf]
      %v592 = vunpack.c.l.b16 %v573
      %v593 = vpack.c.b16 %v592, %v592
      %v595 = vshrl.u32 %v593, 16
      %v597 = vshll.u32 %v593, 16
      %v599 = vrot.slane %v597, 1
      %v600 = vor.u32 %v595, %v599
      %v618 = vunpack.c.l.b16 %v575
      %v619 = vunpack.c.l.b16 %v576
      %v620 = vunpack.c.l.b16 %v577
      %v621 = vunpack.c.l.b16 %v578
      %v622 = vunpack.c.l.b16 %v579
      %v623 = vunpack.c.l.b16 %v580
      %v624 = vunpack.c.l.b16 %v581
      %v625 = vunpack.c.l.b16 %v582
      %v626 = vunpack.c.l.b16 %v583
      %v627 = vunpack.c.l.b16 %v584
      %v628 = vunpack.c.l.b16 %v585
      %v629 = vunpack.c.l.b16 %v586
      %v630 = vunpack.c.l.b16 %v587
      %v631 = vunpack.c.l.b16 %v588
      %v632 = vunpack.c.l.b16 %v589
      %v633 = vunpack.c.l.b16 %v590
      %v634 = vpack.c.b16 %v619, %v618
      %v635 = vpack.c.b16 %v621, %v620
      %v636 = vpack.c.b16 %v623, %v622
      %v637 = vpack.c.b16 %v625, %v624
      %v638 = vpack.c.b16 %v627, %v626
      %v639 = vpack.c.b16 %v629, %v628
      %v640 = vpack.c.b16 %v631, %v630
      %v641 = vpack.c.b16 %v633, %v632
      %650 = vmatprep.subr.bf16.mxu0 0
      %651 = vmatpush1.bf16.msra.mxu0 %v634
      %652 = vmatprep.subr.bf16.mxu0 0
      %653 = vmatpush1.bf16.msra.mxu0 %v635
      %654 = vmatprep.subr.bf16.mxu0 0
      %655 = vmatpush1.bf16.msra.mxu0 %v636
      %656 = vmatprep.subr.bf16.mxu0 0
      %657 = vmatpush1.bf16.msra.mxu0 %v637
      %658 = vmatprep.subr.bf16.mxu0 0
      %659 = vmatpush1.bf16.msra.mxu0 %v638
      %660 = vmatprep.subr.bf16.mxu0 0
      %661 = vmatpush1.bf16.msra.mxu0 %v639
      %662 = vmatprep.subr.bf16.mxu0 0
      %663 = vmatpush1.bf16.msra.mxu0 %v640
      %664 = vmatprep.subr.bf16.mxu0 0
      %665 = vmatpush1.bf16.msra.mxu0 %v641
      %666 = vmatprep.subr.bf16.mxu0 0
      %667 = vmatpush1.bf16.msra.mxu0 0
      %668 = vmatprep.subr.bf16.mxu0 0
      %669 = vmatpush1.bf16.msra.mxu0 0
      %670 = vmatprep.subr.bf16.mxu0 0
      %671 = vmatpush1.bf16.msra.mxu0 0
      %672 = vmatprep.subr.bf16.mxu0 0
      %673 = vmatpush1.bf16.msra.mxu0 0
      %674 = vmatprep.subr.bf16.mxu0 0
      %675 = vmatpush1.bf16.msra.mxu0 0
      %676 = vmatprep.subr.bf16.mxu0 0
      %677 = vmatpush1.bf16.msra.mxu0 0
      %678 = vmatprep.subr.bf16.mxu0 0
      %679 = vmatpush1.bf16.msra.mxu0 0
      %680 = vmatprep.subr.bf16.mxu0 0
      %681 = vmatpush1.bf16.msra.mxu0 0
      %682 = vmatprep.mubr.bf16.mxu0 0
      %683 = vmatmul.mubr.bf16.gmra.mrb[0].mxu0 %v600
      %v684 = vpop.f32.mrb[0].mxu0
      %v685 = vadd.f32 0.0, %v684
      %v686 = vpop.f32.mrb[0].mxu0
      %v687 = vpop.f32.mrb[0].mxu0
      %v688 = vpop.f32.mrb[0].mxu0
      %689 = vdwg.mxu0
      %v690 = vadd.f32 %v572, %v685
      %v691 = vpack.c.bf16 %v690, %v690
      %vm692 = vcmask 517120
      %693 = vst.msk [vmem:[%s220] sm:$0x3] %vm692, %v691
      %vm694 = vcmask 519168
      %v695 = vsel %vm694, %v690, 0.0
      %v696 = vrot.slane %v695, 4
      %v697 = vadd.f32 %v695, %v696
      %v698 = vrot.slane %v697, 2
      %v699 = vadd.f32 %v697, %v698
      %v700 = vrot.slane %v699, 1
      %v701 = vadd.f32 %v699, %v700
      %v702 = vadd.f32 %v701, 0.0
      %v703 = vmul.f32 %v690, %v690
      %v704 = vsel %vm694, %v703, 0.0
      %v705 = vrot.slane %v704, 4
      %v706 = vadd.f32 %v704, %v705
      %v707 = vrot.slane %v706, 2
      %v708 = vadd.f32 %v706, %v707
      %v709 = vrot.slane %v708, 1
      %v710 = vadd.f32 %v708, %v709
      %v711 = vadd.f32 %v710, 0.0
      %v712 = vld [vmem:[%s465] sm:$0x3]
      %v713 = vld [vmem:[%s1] sm:$0xf]
      %v714 = vld [vmem:[%s1 + $0x4] sm:$0xf]
      %v715 = vld [vmem:[%s1 + $0x8] sm:$0xf]
      %v716 = vld [vmem:[%s1 + $0xc] sm:$0xf]
      %v717 = vld [vmem:[%s1 + $0x10] sm:$0xf]
      %v718 = vld [vmem:[%s1 + $0x14] sm:$0xf]
      %v719 = vld [vmem:[%s1 + $0x18] sm:$0xf]
      %v720 = vld [vmem:[%s1 + $0x1c] sm:$0xf]
      %v721 = vld [vmem:[%s1 + $0x20] sm:$0xf]
      %v722 = vld [vmem:[%s1 + $0x24] sm:$0xf]
      %v723 = vld [vmem:[%s1 + $0x28] sm:$0xf]
      %v724 = vld [vmem:[%s1 + $0x2c] sm:$0xf]
      %v725 = vld [vmem:[%s1 + $0x30] sm:$0xf]
      %v726 = vld [vmem:[%s1 + $0x34] sm:$0xf]
      %v727 = vld [vmem:[%s1 + $0x38] sm:$0xf]
      %v728 = vld [vmem:[%s1 + $0x3c] sm:$0xf]
      %v729 = vld [vmem:[%s465] sm:$0x7]
      %v730 = vld [vmem:[%s258] sm:$0xf]
      %v731 = vld [vmem:[%s258 + $0x4] sm:$0xf]
      %v732 = vld [vmem:[%s258 + $0x8] sm:$0xf]
      %v733 = vld [vmem:[%s258 + $0xc] sm:$0xf]
      %v734 = vld [vmem:[%s258 + $0x10] sm:$0xf]
      %v735 = vld [vmem:[%s258 + $0x14] sm:$0xf]
      %v736 = vld [vmem:[%s258 + $0x18] sm:$0xf]
      %v737 = vld [vmem:[%s258 + $0x1c] sm:$0xf]
      %v738 = vld [vmem:[%s258 + $0x20] sm:$0xf]
      %v739 = vld [vmem:[%s258 + $0x24] sm:$0xf]
      %v740 = vld [vmem:[%s258 + $0x28] sm:$0xf]
      %v741 = vld [vmem:[%s258 + $0x2c] sm:$0xf]
      %v742 = vld [vmem:[%s258 + $0x30] sm:$0xf]
      %v743 = vld [vmem:[%s258 + $0x34] sm:$0xf]
      %v744 = vld [vmem:[%s258 + $0x38] sm:$0xf]
      %v745 = vld [vmem:[%s258 + $0x3c] sm:$0xf]
      %v747 = vunpack.c.l.b16 %v729
      %v748 = vpack.c.b16 %v747, %v747
      %v750 = vshrl.u32 %v748, 16
      %v752 = vshll.u32 %v748, 16
      %v754 = vrot.slane %v752, 1
      %v755 = vor.u32 %v750, %v754
      %v773 = vunpack.c.l.b16 %v730
      %v774 = vunpack.c.l.b16 %v731
      %v775 = vunpack.c.l.b16 %v732
      %v776 = vunpack.c.l.b16 %v733
      %v777 = vunpack.c.l.b16 %v734
      %v778 = vunpack.c.l.b16 %v735
      %v779 = vunpack.c.l.b16 %v736
      %v780 = vunpack.c.l.b16 %v737
      %v781 = vunpack.c.l.b16 %v738
      %v782 = vunpack.c.l.b16 %v739
      %v783 = vunpack.c.l.b16 %v740
      %v784 = vunpack.c.l.b16 %v741
      %v785 = vunpack.c.l.b16 %v742
      %v786 = vunpack.c.l.b16 %v743
      %v787 = vunpack.c.l.b16 %v744
      %v788 = vunpack.c.l.b16 %v745
      %v789 = vpack.c.b16 %v774, %v773
      %v790 = vpack.c.b16 %v776, %v775
      %v791 = vpack.c.b16 %v778, %v777
      %v792 = vpack.c.b16 %v780, %v779
      %v793 = vpack.c.b16 %v782, %v781
      %v794 = vpack.c.b16 %v784, %v783
      %v795 = vpack.c.b16 %v786, %v785
      %v796 = vpack.c.b16 %v788, %v787
      %805 = vmatprep.subr.bf16.mxu0 0
      %806 = vmatpush1.bf16.msra.mxu0 %v789
      %807 = vmatprep.subr.bf16.mxu0 0
      %808 = vmatpush1.bf16.msra.mxu0 %v790
      %809 = vmatprep.subr.bf16.mxu0 0
      %810 = vmatpush1.bf16.msra.mxu0 %v791
      %811 = vmatprep.subr.bf16.mxu0 0
      %812 = vmatpush1.bf16.msra.mxu0 %v792
      %813 = vmatprep.subr.bf16.mxu0 0
      %814 = vmatpush1.bf16.msra.mxu0 %v793
      %815 = vmatprep.subr.bf16.mxu0 0
      %816 = vmatpush1.bf16.msra.mxu0 %v794
      %817 = vmatprep.subr.bf16.mxu0 0
      %818 = vmatpush1.bf16.msra.mxu0 %v795
      %819 = vmatprep.subr.bf16.mxu0 0
      %820 = vmatpush1.bf16.msra.mxu0 %v796
      %821 = vmatprep.subr.bf16.mxu0 0
      %822 = vmatpush1.bf16.msra.mxu0 0
      %823 = vmatprep.subr.bf16.mxu0 0
      %824 = vmatpush1.bf16.msra.mxu0 0
      %825 = vmatprep.subr.bf16.mxu0 0
      %826 = vmatpush1.bf16.msra.mxu0 0
      %827 = vmatprep.subr.bf16.mxu0 0
      %828 = vmatpush1.bf16.msra.mxu0 0
      %829 = vmatprep.subr.bf16.mxu0 0
      %830 = vmatpush1.bf16.msra.mxu0 0
      %831 = vmatprep.subr.bf16.mxu0 0
      %832 = vmatpush1.bf16.msra.mxu0 0
      %833 = vmatprep.subr.bf16.mxu0 0
      %834 = vmatpush1.bf16.msra.mxu0 0
      %835 = vmatprep.subr.bf16.mxu0 0
      %836 = vmatpush1.bf16.msra.mxu0 0
      %837 = vmatprep.mubr.bf16.mxu0 0
      %838 = vmatmul.mubr.bf16.gmra.mrb[0].mxu0 %v755
      %v839 = vpop.f32.mrb[0].mxu0
      %v840 = vadd.f32 0.0, %v839
      %v841 = vpop.f32.mrb[0].mxu0
      %v842 = vpop.f32.mrb[0].mxu0
      %v843 = vpop.f32.mrb[0].mxu0
      %844 = vdwg.mxu0
      %v861 = vunpack.c.l.b16 %v713
      %v862 = vunpack.c.l.b16 %v714
      %v863 = vunpack.c.l.b16 %v715
      %v864 = vunpack.c.l.b16 %v716
      %v865 = vunpack.c.l.b16 %v717
      %v866 = vunpack.c.l.b16 %v718
      %v867 = vunpack.c.l.b16 %v719
      %v868 = vunpack.c.l.b16 %v720
      %v869 = vunpack.c.l.b16 %v721
      %v870 = vunpack.c.l.b16 %v722
      %v871 = vunpack.c.l.b16 %v723
      %v872 = vunpack.c.l.b16 %v724
      %v873 = vunpack.c.l.b16 %v725
      %v874 = vunpack.c.l.b16 %v726
      %v875 = vunpack.c.l.b16 %v727
      %v876 = vunpack.c.l.b16 %v728
      %v877 = vpack.c.b16 %v862, %v861
      %v878 = vpack.c.b16 %v864, %v863
      %v879 = vpack.c.b16 %v866, %v865
      %v880 = vpack.c.b16 %v868, %v867
      %v881 = vpack.c.b16 %v870, %v869
      %v882 = vpack.c.b16 %v872, %v871
      %v883 = vpack.c.b16 %v874, %v873
      %v884 = vpack.c.b16 %v876, %v875
      %893 = vmatprep.subr.bf16.mxu0 0
      %894 = vmatpush1.bf16.msra.mxu0 %v877
      %895 = vmatprep.subr.bf16.mxu0 0
      %896 = vmatpush1.bf16.msra.mxu0 %v878
      %897 = vmatprep.subr.bf16.mxu0 0
      %898 = vmatpush1.bf16.msra.mxu0 %v879
      %899 = vmatprep.subr.bf16.mxu0 0
      %900 = vmatpush1.bf16.msra.mxu0 %v880
      %901 = vmatprep.subr.bf16.mxu0 0
      %902 = vmatpush1.bf16.msra.mxu0 %v881
      %903 = vmatprep.subr.bf16.mxu0 0
      %904 = vmatpush1.bf16.msra.mxu0 %v882
      %905 = vmatprep.subr.bf16.mxu0 0
      %906 = vmatpush1.bf16.msra.mxu0 %v883
      %907 = vmatprep.subr.bf16.mxu0 0
      %908 = vmatpush1.bf16.msra.mxu0 %v884
      %909 = vmatprep.subr.bf16.mxu0 0
      %910 = vmatpush1.bf16.msra.mxu0 0
      %911 = vmatprep.subr.bf16.mxu0 0
      %912 = vmatpush1.bf16.msra.mxu0 0
      %913 = vmatprep.subr.bf16.mxu0 0
      %914 = vmatpush1.bf16.msra.mxu0 0
      %915 = vmatprep.subr.bf16.mxu0 0
      %916 = vmatpush1.bf16.msra.mxu0 0
      %917 = vmatprep.subr.bf16.mxu0 0
      %918 = vmatpush1.bf16.msra.mxu0 0
      %919 = vmatprep.subr.bf16.mxu0 0
      %920 = vmatpush1.bf16.msra.mxu0 0
      %921 = vmatprep.subr.bf16.mxu0 0
      %922 = vmatpush1.bf16.msra.mxu0 0
      %923 = vmatprep.subr.bf16.mxu0 0
      %924 = vmatpush1.bf16.msra.mxu0 0
      %925 = vmatprep.mubr.bf16.mxu0 0
      %926 = vmatmul.mubr.bf16.gmra.mrb[0].mxu0 %v712
      %v927 = vpop.f32.mrb[0].mxu0
      %v928 = vadd.f32 %v840, %v927
      %v929 = vpop.f32.mrb[0].mxu0
      %v930 = vpop.f32.mrb[0].mxu0
      %v931 = vpop.f32.mrb[0].mxu0
      %932 = vdwg.mxu0
      %s933 = sadd.s32 %s235, 2
      %s934 = sadd.s32 %s933, %s236
      %s935 = smul.addr %s934, 4
      %s936 = scalar_lea.vmem %s0, %s935
      %v937 = vld [vmem:[%s936] sm:$0x3]
      %v938 = vld [vmem:[%s467] sm:$0xf]
      %v939 = vld [vmem:[%s467 + $0x4] sm:$0xf]
      %v940 = vld [vmem:[%s467 + $0x8] sm:$0xf]
      %v941 = vld [vmem:[%s467 + $0xc] sm:$0xf]
      %v942 = vld [vmem:[%s467 + $0x10] sm:$0xf]
      %v943 = vld [vmem:[%s467 + $0x14] sm:$0xf]
      %v944 = vld [vmem:[%s467 + $0x18] sm:$0xf]
      %v945 = vld [vmem:[%s467 + $0x1c] sm:$0xf]
      %v946 = vld [vmem:[%s467 + $0x20] sm:$0xf]
      %v947 = vld [vmem:[%s467 + $0x24] sm:$0xf]
      %v948 = vld [vmem:[%s467 + $0x28] sm:$0xf]
      %v949 = vld [vmem:[%s467 + $0x2c] sm:$0xf]
      %v950 = vld [vmem:[%s467 + $0x30] sm:$0xf]
      %v951 = vld [vmem:[%s467 + $0x34] sm:$0xf]
      %v952 = vld [vmem:[%s467 + $0x38] sm:$0xf]
      %v953 = vld [vmem:[%s467 + $0x3c] sm:$0xf]
      %v970 = vunpack.c.l.b16 %v938
      %v971 = vunpack.c.l.b16 %v939
      %v972 = vunpack.c.l.b16 %v940
      %v973 = vunpack.c.l.b16 %v941
      %v974 = vunpack.c.l.b16 %v942
      %v975 = vunpack.c.l.b16 %v943
      %v976 = vunpack.c.l.b16 %v944
      %v977 = vunpack.c.l.b16 %v945
      %v978 = vunpack.c.l.b16 %v946
      %v979 = vunpack.c.l.b16 %v947
      %v980 = vunpack.c.l.b16 %v948
      %v981 = vunpack.c.l.b16 %v949
      %v982 = vunpack.c.l.b16 %v950
      %v983 = vunpack.c.l.b16 %v951
      %v984 = vunpack.c.l.b16 %v952
      %v985 = vunpack.c.l.b16 %v953
      %v986 = vpack.c.b16 %v971, %v970
      %v987 = vpack.c.b16 %v973, %v972
      %v988 = vpack.c.b16 %v975, %v974
      %v989 = vpack.c.b16 %v977, %v976
      %v990 = vpack.c.b16 %v979, %v978
      %v991 = vpack.c.b16 %v981, %v980
      %v992 = vpack.c.b16 %v983, %v982
      %v993 = vpack.c.b16 %v985, %v984
      %1002 = vmatprep.subr.bf16.mxu0 0
      %1003 = vmatpush1.bf16.msra.mxu0 %v986
      %1004 = vmatprep.subr.bf16.mxu0 0
      %1005 = vmatpush1.bf16.msra.mxu0 %v987
      %1006 = vmatprep.subr.bf16.mxu0 0
      %1007 = vmatpush1.bf16.msra.mxu0 %v988
      %1008 = vmatprep.subr.bf16.mxu0 0
      %1009 = vmatpush1.bf16.msra.mxu0 %v989
      %1010 = vmatprep.subr.bf16.mxu0 0
      %1011 = vmatpush1.bf16.msra.mxu0 %v990
      %1012 = vmatprep.subr.bf16.mxu0 0
      %1013 = vmatpush1.bf16.msra.mxu0 %v991
      %1014 = vmatprep.subr.bf16.mxu0 0
      %1015 = vmatpush1.bf16.msra.mxu0 %v992
      %1016 = vmatprep.subr.bf16.mxu0 0
      %1017 = vmatpush1.bf16.msra.mxu0 %v993
      %1018 = vmatprep.subr.bf16.mxu0 0
      %1019 = vmatpush1.bf16.msra.mxu0 0
      %1020 = vmatprep.subr.bf16.mxu0 0
      %1021 = vmatpush1.bf16.msra.mxu0 0
      %1022 = vmatprep.subr.bf16.mxu0 0
      %1023 = vmatpush1.bf16.msra.mxu0 0
      %1024 = vmatprep.subr.bf16.mxu0 0
      %1025 = vmatpush1.bf16.msra.mxu0 0
      %1026 = vmatprep.subr.bf16.mxu0 0
      %1027 = vmatpush1.bf16.msra.mxu0 0
      %1028 = vmatprep.subr.bf16.mxu0 0
      %1029 = vmatpush1.bf16.msra.mxu0 0
      %1030 = vmatprep.subr.bf16.mxu0 0
      %1031 = vmatpush1.bf16.msra.mxu0 0
      %1032 = vmatprep.subr.bf16.mxu0 0
      %1033 = vmatpush1.bf16.msra.mxu0 0
      %1034 = vmatprep.mubr.bf16.mxu0 0
      %1035 = vmatmul.mubr.bf16.gmra.mrb[0].mxu0 %v937
      %v1036 = vpop.f32.mrb[0].mxu0
      %v1037 = vadd.f32 0.0, %v1036
      %v1038 = vpop.f32.mrb[0].mxu0
      %v1039 = vpop.f32.mrb[0].mxu0
      %v1040 = vpop.f32.mrb[0].mxu0
      %1041 = vdwg.mxu0
      %v1042 = vadd.f32 %v928, %v1037
      %v1043 = vld [vmem:[%s936] sm:$0x7]
      %v1044 = vld [vmem:[%s574] sm:$0xf]
      %v1045 = vld [vmem:[%s574 + $0x4] sm:$0xf]
      %v1046 = vld [vmem:[%s574 + $0x8] sm:$0xf]
      %v1047 = vld [vmem:[%s574 + $0xc] sm:$0xf]
      %v1048 = vld [vmem:[%s574 + $0x10] sm:$0xf]
      %v1049 = vld [vmem:[%s574 + $0x14] sm:$0xf]
      %v1050 = vld [vmem:[%s574 + $0x18] sm:$0xf]
      %v1051 = vld [vmem:[%s574 + $0x1c] sm:$0xf]
      %v1052 = vld [vmem:[%s574 + $0x20] sm:$0xf]
      %v1053 = vld [vmem:[%s574 + $0x24] sm:$0xf]
      %v1054 = vld [vmem:[%s574 + $0x28] sm:$0xf]
      %v1055 = vld [vmem:[%s574 + $0x2c] sm:$0xf]
      %v1056 = vld [vmem:[%s574 + $0x30] sm:$0xf]
      %v1057 = vld [vmem:[%s574 + $0x34] sm:$0xf]
      %v1058 = vld [vmem:[%s574 + $0x38] sm:$0xf]
      %v1059 = vld [vmem:[%s574 + $0x3c] sm:$0xf]
      %v1061 = vunpack.c.l.b16 %v1043
      %v1062 = vpack.c.b16 %v1061, %v1061
      %v1064 = vshrl.u32 %v1062, 16
      %v1066 = vshll.u32 %v1062, 16
      %v1068 = vrot.slane %v1066, 1
      %v1069 = vor.u32 %v1064, %v1068
      %v1087 = vunpack.c.l.b16 %v1044
      %v1088 = vunpack.c.l.b16 %v1045
      %v1089 = vunpack.c.l.b16 %v1046
      %v1090 = vunpack.c.l.b16 %v1047
      %v1091 = vunpack.c.l.b16 %v1048
      %v1092 = vunpack.c.l.b16 %v1049
      %v1093 = vunpack.c.l.b16 %v1050
      %v1094 = vunpack.c.l.b16 %v1051
      %v1095 = vunpack.c.l.b16 %v1052
      %v1096 = vunpack.c.l.b16 %v1053
      %v1097 = vunpack.c.l.b16 %v1054
      %v1098 = vunpack.c.l.b16 %v1055
      %v1099 = vunpack.c.l.b16 %v1056
      %v1100 = vunpack.c.l.b16 %v1057
      %v1101 = vunpack.c.l.b16 %v1058
      %v1102 = vunpack.c.l.b16 %v1059
      %v1103 = vpack.c.b16 %v1088, %v1087
      %v1104 = vpack.c.b16 %v1090, %v1089
      %v1105 = vpack.c.b16 %v1092, %v1091
      %v1106 = vpack.c.b16 %v1094, %v1093
      %v1107 = vpack.c.b16 %v1096, %v1095
      %v1108 = vpack.c.b16 %v1098, %v1097
      %v1109 = vpack.c.b16 %v1100, %v1099
      %v1110 = vpack.c.b16 %v1102, %v1101
      %1119 = vmatprep.subr.bf16.mxu0 0
      %1120 = vmatpush1.bf16.msra.mxu0 %v1103
      %1121 = vmatprep.subr.bf16.mxu0 0
      %1122 = vmatpush1.bf16.msra.mxu0 %v1104
      %1123 = vmatprep.subr.bf16.mxu0 0
      %1124 = vmatpush1.bf16.msra.mxu0 %v1105
      %1125 = vmatprep.subr.bf16.mxu0 0
      %1126 = vmatpush1.bf16.msra.mxu0 %v1106
      %1127 = vmatprep.subr.bf16.mxu0 0
      %1128 = vmatpush1.bf16.msra.mxu0 %v1107
      %1129 = vmatprep.subr.bf16.mxu0 0
      %1130 = vmatpush1.bf16.msra.mxu0 %v1108
      %1131 = vmatprep.subr.bf16.mxu0 0
      %1132 = vmatpush1.bf16.msra.mxu0 %v1109
      %1133 = vmatprep.subr.bf16.mxu0 0
      %1134 = vmatpush1.bf16.msra.mxu0 %v1110
      %1135 = vmatprep.subr.bf16.mxu0 0
      %1136 = vmatpush1.bf16.msra.mxu0 0
      %1137 = vmatprep.subr.bf16.mxu0 0
      %1138 = vmatpush1.bf16.msra.mxu0 0
      %1139 = vmatprep.subr.bf16.mxu0 0
      %1140 = vmatpush1.bf16.msra.mxu0 0
      %1141 = vmatprep.subr.bf16.mxu0 0
      %1142 = vmatpush1.bf16.msra.mxu0 0
      %1143 = vmatprep.subr.bf16.mxu0 0
      %1144 = vmatpush1.bf16.msra.mxu0 0
      %1145 = vmatprep.subr.bf16.mxu0 0
      %1146 = vmatpush1.bf16.msra.mxu0 0
      %1147 = vmatprep.subr.bf16.mxu0 0
      %1148 = vmatpush1.bf16.msra.mxu0 0
      %1149 = vmatprep.subr.bf16.mxu0 0
      %1150 = vmatpush1.bf16.msra.mxu0 0
      %1151 = vmatprep.mubr.bf16.mxu0 0
      %1152 = vmatmul.mubr.bf16.gmra.mrb[0].mxu0 %v1069
      %v1153 = vpop.f32.mrb[0].mxu0
      %v1154 = vadd.f32 0.0, %v1153
      %v1155 = vpop.f32.mrb[0].mxu0
      %v1156 = vpop.f32.mrb[0].mxu0
      %v1157 = vpop.f32.mrb[0].mxu0
      %1158 = vdwg.mxu0
      %v1159 = vadd.f32 %v1042, %v1154
      %v1160 = vpack.c.bf16 %v1159, %v1159
      %s1161 = scalar_lea.vmem %s220, 2
      %1162 = vst.msk [vmem:[%s1161] sm:$0x3] %vm692, %v1160
      %v1163 = vsel %vm694, %v1159, 0.0
      %v1164 = vrot.slane %v1163, 4
      %v1165 = vadd.f32 %v1163, %v1164
      %v1166 = vrot.slane %v1165, 2
      %v1167 = vadd.f32 %v1165, %v1166
      %v1168 = vrot.slane %v1167, 1
      %v1169 = vadd.f32 %v1167, %v1168
      %v1170 = vadd.f32 %v702, %v1169
      %v1171 = vmul.f32 %v1159, %v1159
      %v1172 = vsel %vm694, %v1171, 0.0
      %v1173 = vrot.slane %v1172, 4
      %v1174 = vadd.f32 %v1172, %v1173
      %v1175 = vrot.slane %v1174, 2
      %v1176 = vadd.f32 %v1174, %v1175
      %v1177 = vrot.slane %v1176, 1
      %v1178 = vadd.f32 %v1176, %v1177
      %v1179 = vadd.f32 %v711, %v1178
      %v1180 = vld [vmem:[%s936] sm:$0x3]
      %v1181 = vld [vmem:[%s1] sm:$0xf]
      %v1182 = vld [vmem:[%s1 + $0x4] sm:$0xf]
      %v1183 = vld [vmem:[%s1 + $0x8] sm:$0xf]
      %v1184 = vld [vmem:[%s1 + $0xc] sm:$0xf]
      %v1185 = vld [vmem:[%s1 + $0x10] sm:$0xf]
      %v1186 = vld [vmem:[%s1 + $0x14] sm:$0xf]
      %v1187 = vld [vmem:[%s1 + $0x18] sm:$0xf]
      %v1188 = vld [vmem:[%s1 + $0x1c] sm:$0xf]
      %v1189 = vld [vmem:[%s1 + $0x20] sm:$0xf]
      %v1190 = vld [vmem:[%s1 + $0x24] sm:$0xf]
      %v1191 = vld [vmem:[%s1 + $0x28] sm:$0xf]
      %v1192 = vld [vmem:[%s1 + $0x2c] sm:$0xf]
      %v1193 = vld [vmem:[%s1 + $0x30] sm:$0xf]
      %v1194 = vld [vmem:[%s1 + $0x34] sm:$0xf]
      %v1195 = vld [vmem:[%s1 + $0x38] sm:$0xf]
      %v1196 = vld [vmem:[%s1 + $0x3c] sm:$0xf]
      %v1197 = vld [vmem:[%s936] sm:$0x7]
      %v1198 = vld [vmem:[%s258] sm:$0xf]
      %v1199 = vld [vmem:[%s258 + $0x4] sm:$0xf]
      %v1200 = vld [vmem:[%s258 + $0x8] sm:$0xf]
      %v1201 = vld [vmem:[%s258 + $0xc] sm:$0xf]
      %v1202 = vld [vmem:[%s258 + $0x10] sm:$0xf]
      %v1203 = vld [vmem:[%s258 + $0x14] sm:$0xf]
      %v1204 = vld [vmem:[%s258 + $0x18] sm:$0xf]
      %v1205 = vld [vmem:[%s258 + $0x1c] sm:$0xf]
      %v1206 = vld [vmem:[%s258 + $0x20] sm:$0xf]
      %v1207 = vld [vmem:[%s258 + $0x24] sm:$0xf]
      %v1208 = vld [vmem:[%s258 + $0x28] sm:$0xf]
      %v1209 = vld [vmem:[%s258 + $0x2c] sm:$0xf]
      %v1210 = vld [vmem:[%s258 + $0x30] sm:$0xf]
      %v1211 = vld [vmem:[%s258 + $0x34] sm:$0xf]
      %v1212 = vld [vmem:[%s258 + $0x38] sm:$0xf]
      %v1213 = vld [vmem:[%s258 + $0x3c] sm:$0xf]
      %v1215 = vunpack.c.l.b16 %v1197
      %v1216 = vpack.c.b16 %v1215, %v1215
      %v1218 = vshrl.u32 %v1216, 16
      %v1220 = vshll.u32 %v1216, 16
      %v1222 = vrot.slane %v1220, 1
      %v1223 = vor.u32 %v1218, %v1222
      %v1241 = vunpack.c.l.b16 %v1198
      %v1242 = vunpack.c.l.b16 %v1199
      %v1243 = vunpack.c.l.b16 %v1200
      %v1244 = vunpack.c.l.b16 %v1201
      %v1245 = vunpack.c.l.b16 %v1202
      %v1246 = vunpack.c.l.b16 %v1203
      %v1247 = vunpack.c.l.b16 %v1204
      %v1248 = vunpack.c.l.b16 %v1205
      %v1249 = vunpack.c.l.b16 %v1206
      %v1250 = vunpack.c.l.b16 %v1207
      %v1251 = vunpack.c.l.b16 %v1208
      %v1252 = vunpack.c.l.b16 %v1209
      %v1253 = vunpack.c.l.b16 %v1210
      %v1254 = vunpack.c.l.b16 %v1211
      %v1255 = vunpack.c.l.b16 %v1212
      %v1256 = vunpack.c.l.b16 %v1213
      %v1257 = vpack.c.b16 %v1242, %v1241
      %v1258 = vpack.c.b16 %v1244, %v1243
      %v1259 = vpack.c.b16 %v1246, %v1245
      %v1260 = vpack.c.b16 %v1248, %v1247
      %v1261 = vpack.c.b16 %v1250, %v1249
      %v1262 = vpack.c.b16 %v1252, %v1251
      %v1263 = vpack.c.b16 %v1254, %v1253
      %v1264 = vpack.c.b16 %v1256, %v1255
      %1273 = vmatprep.subr.bf16.mxu0 0
      %1274 = vmatpush1.bf16.msra.mxu0 %v1257
      %1275 = vmatprep.subr.bf16.mxu0 0
      %1276 = vmatpush1.bf16.msra.mxu0 %v1258
      %1277 = vmatprep.subr.bf16.mxu0 0
      %1278 = vmatpush1.bf16.msra.mxu0 %v1259
      %1279 = vmatprep.subr.bf16.mxu0 0
      %1280 = vmatpush1.bf16.msra.mxu0 %v1260
      %1281 = vmatprep.subr.bf16.mxu0 0
      %1282 = vmatpush1.bf16.msra.mxu0 %v1261
      %1283 = vmatprep.subr.bf16.mxu0 0
      %1284 = vmatpush1.bf16.msra.mxu0 %v1262
      %1285 = vmatprep.subr.bf16.mxu0 0
      %1286 = vmatpush1.bf16.msra.mxu0 %v1263
      %1287 = vmatprep.subr.bf16.mxu0 0
      %1288 = vmatpush1.bf16.msra.mxu0 %v1264
      %1289 = vmatprep.subr.bf16.mxu0 0
      %1290 = vmatpush1.bf16.msra.mxu0 0
      %1291 = vmatprep.subr.bf16.mxu0 0
      %1292 = vmatpush1.bf16.msra.mxu0 0
      %1293 = vmatprep.subr.bf16.mxu0 0
      %1294 = vmatpush1.bf16.msra.mxu0 0
      %1295 = vmatprep.subr.bf16.mxu0 0
      %1296 = vmatpush1.bf16.msra.mxu0 0
      %1297 = vmatprep.subr.bf16.mxu0 0
      %1298 = vmatpush1.bf16.msra.mxu0 0
      %1299 = vmatprep.subr.bf16.mxu0 0
      %1300 = vmatpush1.bf16.msra.mxu0 0
      %1301 = vmatprep.subr.bf16.mxu0 0
      %1302 = vmatpush1.bf16.msra.mxu0 0
      %1303 = vmatprep.subr.bf16.mxu0 0
      %1304 = vmatpush1.bf16.msra.mxu0 0
      %1305 = vmatprep.mubr.bf16.mxu0 0
      %1306 = vmatmul.mubr.bf16.gmra.mrb[0].mxu0 %v1223
      %v1307 = vpop.f32.mrb[0].mxu0
      %v1308 = vadd.f32 0.0, %v1307
      %v1309 = vpop.f32.mrb[0].mxu0
      %v1310 = vpop.f32.mrb[0].mxu0
      %v1311 = vpop.f32.mrb[0].mxu0
      %1312 = vdwg.mxu0
      %v1329 = vunpack.c.l.b16 %v1181
      %v1330 = vunpack.c.l.b16 %v1182
      %v1331 = vunpack.c.l.b16 %v1183
      %v1332 = vunpack.c.l.b16 %v1184
      %v1333 = vunpack.c.l.b16 %v1185
      %v1334 = vunpack.c.l.b16 %v1186
      %v1335 = vunpack.c.l.b16 %v1187
      %v1336 = vunpack.c.l.b16 %v1188
      %v1337 = vunpack.c.l.b16 %v1189
      %v1338 = vunpack.c.l.b16 %v1190
      %v1339 = vunpack.c.l.b16 %v1191
      %v1340 = vunpack.c.l.b16 %v1192
      %v1341 = vunpack.c.l.b16 %v1193
      %v1342 = vunpack.c.l.b16 %v1194
      %v1343 = vunpack.c.l.b16 %v1195
      %v1344 = vunpack.c.l.b16 %v1196
      %v1345 = vpack.c.b16 %v1330, %v1329
      %v1346 = vpack.c.b16 %v1332, %v1331
      %v1347 = vpack.c.b16 %v1334, %v1333
      %v1348 = vpack.c.b16 %v1336, %v1335
      %v1349 = vpack.c.b16 %v1338, %v1337
      %v1350 = vpack.c.b16 %v1340, %v1339
      %v1351 = vpack.c.b16 %v1342, %v1341
      %v1352 = vpack.c.b16 %v1344, %v1343
      %1361 = vmatprep.subr.bf16.mxu0 0
      %1362 = vmatpush1.bf16.msra.mxu0 %v1345
      %1363 = vmatprep.subr.bf16.mxu0 0
      %1364 = vmatpush1.bf16.msra.mxu0 %v1346
      %1365 = vmatprep.subr.bf16.mxu0 0
      %1366 = vmatpush1.bf16.msra.mxu0 %v1347
      %1367 = vmatprep.subr.bf16.mxu0 0
      %1368 = vmatpush1.bf16.msra.mxu0 %v1348
      %1369 = vmatprep.subr.bf16.mxu0 0
      %1370 = vmatpush1.bf16.msra.mxu0 %v1349
      %1371 = vmatprep.subr.bf16.mxu0 0
      %1372 = vmatpush1.bf16.msra.mxu0 %v1350
      %1373 = vmatprep.subr.bf16.mxu0 0
      %1374 = vmatpush1.bf16.msra.mxu0 %v1351
      %1375 = vmatprep.subr.bf16.mxu0 0
      %1376 = vmatpush1.bf16.msra.mxu0 %v1352
      %1377 = vmatprep.subr.bf16.mxu0 0
      %1378 = vmatpush1.bf16.msra.mxu0 0
      %1379 = vmatprep.subr.bf16.mxu0 0
      %1380 = vmatpush1.bf16.msra.mxu0 0
      %1381 = vmatprep.subr.bf16.mxu0 0
      %1382 = vmatpush1.bf16.msra.mxu0 0
      %1383 = vmatprep.subr.bf16.mxu0 0
      %1384 = vmatpush1.bf16.msra.mxu0 0
      %1385 = vmatprep.subr.bf16.mxu0 0
      %1386 = vmatpush1.bf16.msra.mxu0 0
      %1387 = vmatprep.subr.bf16.mxu0 0
      %1388 = vmatpush1.bf16.msra.mxu0 0
      %1389 = vmatprep.subr.bf16.mxu0 0
      %1390 = vmatpush1.bf16.msra.mxu0 0
      %1391 = vmatprep.subr.bf16.mxu0 0
      %1392 = vmatpush1.bf16.msra.mxu0 0
      %1393 = vmatprep.mubr.bf16.mxu0 0
      %1394 = vmatmul.mubr.bf16.gmra.mrb[0].mxu0 %v1180
      %v1395 = vpop.f32.mrb[0].mxu0
      %v1396 = vadd.f32 %v1308, %v1395
      %v1397 = vpop.f32.mrb[0].mxu0
      %v1398 = vpop.f32.mrb[0].mxu0
      %v1399 = vpop.f32.mrb[0].mxu0
      %1400 = vdwg.mxu0
      %s1401 = sadd.s32 %s235, 3
      %s1402 = sadd.s32 %s1401, %s236
      %s1403 = smul.addr %s1402, 4
      %s1404 = scalar_lea.vmem %s0, %s1403
      %v1405 = vld [vmem:[%s1404] sm:$0x3]
      %v1406 = vld [vmem:[%s467] sm:$0xf]
      %v1407 = vld [vmem:[%s467 + $0x4] sm:$0xf]
      %v1408 = vld [vmem:[%s467 + $0x8] sm:$0xf]
      %v1409 = vld [vmem:[%s467 + $0xc] sm:$0xf]
      %v1410 = vld [vmem:[%s467 + $0x10] sm:$0xf]
      %v1411 = vld [vmem:[%s467 + $0x14] sm:$0xf]
      %v1412 = vld [vmem:[%s467 + $0x18] sm:$0xf]
      %v1413 = vld [vmem:[%s467 + $0x1c] sm:$0xf]
      %v1414 = vld [vmem:[%s467 + $0x20] sm:$0xf]
      %v1415 = vld [vmem:[%s467 + $0x24] sm:$0xf]
      %v1416 = vld [vmem:[%s467 + $0x28] sm:$0xf]
      %v1417 = vld [vmem:[%s467 + $0x2c] sm:$0xf]
      %v1418 = vld [vmem:[%s467 + $0x30] sm:$0xf]
      %v1419 = vld [vmem:[%s467 + $0x34] sm:$0xf]
      %v1420 = vld [vmem:[%s467 + $0x38] sm:$0xf]
      %v1421 = vld [vmem:[%s467 + $0x3c] sm:$0xf]
      %v1438 = vunpack.c.l.b16 %v1406
      %v1439 = vunpack.c.l.b16 %v1407
      %v1440 = vunpack.c.l.b16 %v1408
      %v1441 = vunpack.c.l.b16 %v1409
      %v1442 = vunpack.c.l.b16 %v1410
      %v1443 = vunpack.c.l.b16 %v1411
      %v1444 = vunpack.c.l.b16 %v1412
      %v1445 = vunpack.c.l.b16 %v1413
      %v1446 = vunpack.c.l.b16 %v1414
      %v1447 = vunpack.c.l.b16 %v1415
      %v1448 = vunpack.c.l.b16 %v1416
      %v1449 = vunpack.c.l.b16 %v1417
      %v1450 = vunpack.c.l.b16 %v1418
      %v1451 = vunpack.c.l.b16 %v1419
      %v1452 = vunpack.c.l.b16 %v1420
      %v1453 = vunpack.c.l.b16 %v1421
      %v1454 = vpack.c.b16 %v1439, %v1438
      %v1455 = vpack.c.b16 %v1441, %v1440
      %v1456 = vpack.c.b16 %v1443, %v1442
      %v1457 = vpack.c.b16 %v1445, %v1444
      %v1458 = vpack.c.b16 %v1447, %v1446
      %v1459 = vpack.c.b16 %v1449, %v1448
      %v1460 = vpack.c.b16 %v1451, %v1450
      %v1461 = vpack.c.b16 %v1453, %v1452
      %1470 = vmatprep.subr.bf16.mxu0 0
      %1471 = vmatpush1.bf16.msra.mxu0 %v1454
      %1472 = vmatprep.subr.bf16.mxu0 0
      %1473 = vmatpush1.bf16.msra.mxu0 %v1455
      %1474 = vmatprep.subr.bf16.mxu0 0
      %1475 = vmatpush1.bf16.msra.mxu0 %v1456
      %1476 = vmatprep.subr.bf16.mxu0 0
      %1477 = vmatpush1.bf16.msra.mxu0 %v1457
      %1478 = vmatprep.subr.bf16.mxu0 0
      %1479 = vmatpush1.bf16.msra.mxu0 %v1458
      %1480 = vmatprep.subr.bf16.mxu0 0
      %1481 = vmatpush1.bf16.msra.mxu0 %v1459
      %1482 = vmatprep.subr.bf16.mxu0 0
      %1483 = vmatpush1.bf16.msra.mxu0 %v1460
      %1484 = vmatprep.subr.bf16.mxu0 0
      %1485 = vmatpush1.bf16.msra.mxu0 %v1461
      %1486 = vmatprep.subr.bf16.mxu0 0
      %1487 = vmatpush1.bf16.msra.mxu0 0
      %1488 = vmatprep.subr.bf16.mxu0 0
      %1489 = vmatpush1.bf16.msra.mxu0 0
      %1490 = vmatprep.subr.bf16.mxu0 0
      %1491 = vmatpush1.bf16.msra.mxu0 0
      %1492 = vmatprep.subr.bf16.mxu0 0
      %1493 = vmatpush1.bf16.msra.mxu0 0
      %1494 = vmatprep.subr.bf16.mxu0 0
      %1495 = vmatpush1.bf16.msra.mxu0 0
      %1496 = vmatprep.subr.bf16.mxu0 0
      %1497 = vmatpush1.bf16.msra.mxu0 0
      %1498 = vmatprep.subr.bf16.mxu0 0
      %1499 = vmatpush1.bf16.msra.mxu0 0
      %1500 = vmatprep.subr.bf16.mxu0 0
      %1501 = vmatpush1.bf16.msra.mxu0 0
      %1502 = vmatprep.mubr.bf16.mxu0 0
      %1503 = vmatmul.mubr.bf16.gmra.mrb[0].mxu0 %v1405
      %v1504 = vpop.f32.mrb[0].mxu0
      %v1505 = vadd.f32 0.0, %v1504
      %v1506 = vpop.f32.mrb[0].mxu0
      %v1507 = vpop.f32.mrb[0].mxu0
      %v1508 = vpop.f32.mrb[0].mxu0
      %1509 = vdwg.mxu0
      %v1510 = vadd.f32 %v1396, %v1505
      %v1511 = vld [vmem:[%s1404] sm:$0x7]
      %v1512 = vld [vmem:[%s574] sm:$0xf]
      %v1513 = vld [vmem:[%s574 + $0x4] sm:$0xf]
      %v1514 = vld [vmem:[%s574 + $0x8] sm:$0xf]
      %v1515 = vld [vmem:[%s574 + $0xc] sm:$0xf]
      %v1516 = vld [vmem:[%s574 + $0x10] sm:$0xf]
      %v1517 = vld [vmem:[%s574 + $0x14] sm:$0xf]
      %v1518 = vld [vmem:[%s574 + $0x18] sm:$0xf]
      %v1519 = vld [vmem:[%s574 + $0x1c] sm:$0xf]
      %v1520 = vld [vmem:[%s574 + $0x20] sm:$0xf]
      %v1521 = vld [vmem:[%s574 + $0x24] sm:$0xf]
      %v1522 = vld [vmem:[%s574 + $0x28] sm:$0xf]
      %v1523 = vld [vmem:[%s574 + $0x2c] sm:$0xf]
      %v1524 = vld [vmem:[%s574 + $0x30] sm:$0xf]
      %v1525 = vld [vmem:[%s574 + $0x34] sm:$0xf]
      %v1526 = vld [vmem:[%s574 + $0x38] sm:$0xf]
      %v1527 = vld [vmem:[%s574 + $0x3c] sm:$0xf]
      %v1529 = vunpack.c.l.b16 %v1511
      %v1530 = vpack.c.b16 %v1529, %v1529
      %v1532 = vshrl.u32 %v1530, 16
      %v1534 = vshll.u32 %v1530, 16
      %v1536 = vrot.slane %v1534, 1
      %v1537 = vor.u32 %v1532, %v1536
      %v1555 = vunpack.c.l.b16 %v1512
      %v1556 = vunpack.c.l.b16 %v1513
      %v1557 = vunpack.c.l.b16 %v1514
      %v1558 = vunpack.c.l.b16 %v1515
      %v1559 = vunpack.c.l.b16 %v1516
      %v1560 = vunpack.c.l.b16 %v1517
      %v1561 = vunpack.c.l.b16 %v1518
      %v1562 = vunpack.c.l.b16 %v1519
      %v1563 = vunpack.c.l.b16 %v1520
      %v1564 = vunpack.c.l.b16 %v1521
      %v1565 = vunpack.c.l.b16 %v1522
      %v1566 = vunpack.c.l.b16 %v1523
      %v1567 = vunpack.c.l.b16 %v1524
      %v1568 = vunpack.c.l.b16 %v1525
      %v1569 = vunpack.c.l.b16 %v1526
      %v1570 = vunpack.c.l.b16 %v1527
      %v1571 = vpack.c.b16 %v1556, %v1555
      %v1572 = vpack.c.b16 %v1558, %v1557
      %v1573 = vpack.c.b16 %v1560, %v1559
      %v1574 = vpack.c.b16 %v1562, %v1561
      %v1575 = vpack.c.b16 %v1564, %v1563
      %v1576 = vpack.c.b16 %v1566, %v1565
      %v1577 = vpack.c.b16 %v1568, %v1567
      %v1578 = vpack.c.b16 %v1570, %v1569
      %1587 = vmatprep.subr.bf16.mxu0 0
      %1588 = vmatpush1.bf16.msra.mxu0 %v1571
      %1589 = vmatprep.subr.bf16.mxu0 0
      %1590 = vmatpush1.bf16.msra.mxu0 %v1572
      %1591 = vmatprep.subr.bf16.mxu0 0
      %1592 = vmatpush1.bf16.msra.mxu0 %v1573
      %1593 = vmatprep.subr.bf16.mxu0 0
      %1594 = vmatpush1.bf16.msra.mxu0 %v1574
      %1595 = vmatprep.subr.bf16.mxu0 0
      %1596 = vmatpush1.bf16.msra.mxu0 %v1575
      %1597 = vmatprep.subr.bf16.mxu0 0
      %1598 = vmatpush1.bf16.msra.mxu0 %v1576
      %1599 = vmatprep.subr.bf16.mxu0 0
      %1600 = vmatpush1.bf16.msra.mxu0 %v1577
      %1601 = vmatprep.subr.bf16.mxu0 0
      %1602 = vmatpush1.bf16.msra.mxu0 %v1578
      %1603 = vmatprep.subr.bf16.mxu0 0
      %1604 = vmatpush1.bf16.msra.mxu0 0
      %1605 = vmatprep.subr.bf16.mxu0 0
      %1606 = vmatpush1.bf16.msra.mxu0 0
      %1607 = vmatprep.subr.bf16.mxu0 0
      %1608 = vmatpush1.bf16.msra.mxu0 0
      %1609 = vmatprep.subr.bf16.mxu0 0
      %1610 = vmatpush1.bf16.msra.mxu0 0
      %1611 = vmatprep.subr.bf16.mxu0 0
      %1612 = vmatpush1.bf16.msra.mxu0 0
      %1613 = vmatprep.subr.bf16.mxu0 0
      %1614 = vmatpush1.bf16.msra.mxu0 0
      %1615 = vmatprep.subr.bf16.mxu0 0
      %1616 = vmatpush1.bf16.msra.mxu0 0
      %1617 = vmatprep.subr.bf16.mxu0 0
      %1618 = vmatpush1.bf16.msra.mxu0 0
      %1619 = vmatprep.mubr.bf16.mxu0 0
      %1620 = vmatmul.mubr.bf16.gmra.mrb[0].mxu0 %v1537
      %v1621 = vpop.f32.mrb[0].mxu0
      %v1622 = vadd.f32 0.0, %v1621
      %v1623 = vpop.f32.mrb[0].mxu0
      %v1624 = vpop.f32.mrb[0].mxu0
      %v1625 = vpop.f32.mrb[0].mxu0
      %1626 = vdwg.mxu0
      %v1627 = vadd.f32 %v1510, %v1622
      %v1628 = vpack.c.bf16 %v1627, %v1627
      %s1629 = scalar_lea.vmem %s220, 4
      %1630 = vst.msk [vmem:[%s1629] sm:$0x3] %vm692, %v1628
      %v1631 = vsel %vm694, %v1627, 0.0
      %v1632 = vrot.slane %v1631, 4
      %v1633 = vadd.f32 %v1631, %v1632
      %v1634 = vrot.slane %v1633, 2
      %v1635 = vadd.f32 %v1633, %v1634
      %v1636 = vrot.slane %v1635, 1
      %v1637 = vadd.f32 %v1635, %v1636
      %v1638 = vadd.f32 %v1170, %v1637
      %v1639 = vmul.f32 %v1627, %v1627
      %v1640 = vsel %vm694, %v1639, 0.0
      %v1641 = vrot.slane %v1640, 4
      %v1642 = vadd.f32 %v1640, %v1641
      %v1643 = vrot.slane %v1642, 2
      %v1644 = vadd.f32 %v1642, %v1643
      %v1645 = vrot.slane %v1644, 1
      %v1646 = vadd.f32 %v1644, %v1645
      %v1647 = vadd.f32 %v1179, %v1646
      %v1648 = vld [vmem:[%s1404] sm:$0x3]
      %v1649 = vld [vmem:[%s1] sm:$0xf]
      %v1650 = vld [vmem:[%s1 + $0x4] sm:$0xf]
      %v1651 = vld [vmem:[%s1 + $0x8] sm:$0xf]
      %v1652 = vld [vmem:[%s1 + $0xc] sm:$0xf]
      %v1653 = vld [vmem:[%s1 + $0x10] sm:$0xf]
      %v1654 = vld [vmem:[%s1 + $0x14] sm:$0xf]
      %v1655 = vld [vmem:[%s1 + $0x18] sm:$0xf]
      %v1656 = vld [vmem:[%s1 + $0x1c] sm:$0xf]
      %v1657 = vld [vmem:[%s1 + $0x20] sm:$0xf]
      %v1658 = vld [vmem:[%s1 + $0x24] sm:$0xf]
      %v1659 = vld [vmem:[%s1 + $0x28] sm:$0xf]
      %v1660 = vld [vmem:[%s1 + $0x2c] sm:$0xf]
      %v1661 = vld [vmem:[%s1 + $0x30] sm:$0xf]
      %v1662 = vld [vmem:[%s1 + $0x34] sm:$0xf]
      %v1663 = vld [vmem:[%s1 + $0x38] sm:$0xf]
      %v1664 = vld [vmem:[%s1 + $0x3c] sm:$0xf]
      %v1665 = vld [vmem:[%s1404] sm:$0x7]
      %v1666 = vld [vmem:[%s258] sm:$0xf]
      %v1667 = vld [vmem:[%s258 + $0x4] sm:$0xf]
      %v1668 = vld [vmem:[%s258 + $0x8] sm:$0xf]
      %v1669 = vld [vmem:[%s258 + $0xc] sm:$0xf]
      %v1670 = vld [vmem:[%s258 + $0x10] sm:$0xf]
      %v1671 = vld [vmem:[%s258 + $0x14] sm:$0xf]
      %v1672 = vld [vmem:[%s258 + $0x18] sm:$0xf]
      %v1673 = vld [vmem:[%s258 + $0x1c] sm:$0xf]
      %v1674 = vld [vmem:[%s258 + $0x20] sm:$0xf]
      %v1675 = vld [vmem:[%s258 + $0x24] sm:$0xf]
      %v1676 = vld [vmem:[%s258 + $0x28] sm:$0xf]
      %v1677 = vld [vmem:[%s258 + $0x2c] sm:$0xf]
      %v1678 = vld [vmem:[%s258 + $0x30] sm:$0xf]
      %v1679 = vld [vmem:[%s258 + $0x34] sm:$0xf]
      %v1680 = vld [vmem:[%s258 + $0x38] sm:$0xf]
      %v1681 = vld [vmem:[%s258 + $0x3c] sm:$0xf]
      %v1683 = vunpack.c.l.b16 %v1665
      %v1684 = vpack.c.b16 %v1683, %v1683
      %v1686 = vshrl.u32 %v1684, 16
      %v1688 = vshll.u32 %v1684, 16
      %v1690 = vrot.slane %v1688, 1
      %v1691 = vor.u32 %v1686, %v1690
      %v1709 = vunpack.c.l.b16 %v1666
      %v1710 = vunpack.c.l.b16 %v1667
      %v1711 = vunpack.c.l.b16 %v1668
      %v1712 = vunpack.c.l.b16 %v1669
      %v1713 = vunpack.c.l.b16 %v1670
      %v1714 = vunpack.c.l.b16 %v1671
      %v1715 = vunpack.c.l.b16 %v1672
      %v1716 = vunpack.c.l.b16 %v1673
      %v1717 = vunpack.c.l.b16 %v1674
      %v1718 = vunpack.c.l.b16 %v1675
      %v1719 = vunpack.c.l.b16 %v1676
      %v1720 = vunpack.c.l.b16 %v1677
      %v1721 = vunpack.c.l.b16 %v1678
      %v1722 = vunpack.c.l.b16 %v1679
      %v1723 = vunpack.c.l.b16 %v1680
      %v1724 = vunpack.c.l.b16 %v1681
      %v1725 = vpack.c.b16 %v1710, %v1709
      %v1726 = vpack.c.b16 %v1712, %v1711
      %v1727 = vpack.c.b16 %v1714, %v1713
      %v1728 = vpack.c.b16 %v1716, %v1715
      %v1729 = vpack.c.b16 %v1718, %v1717
      %v1730 = vpack.c.b16 %v1720, %v1719
      %v1731 = vpack.c.b16 %v1722, %v1721
      %v1732 = vpack.c.b16 %v1724, %v1723
      %1741 = vmatprep.subr.bf16.mxu0 0
      %1742 = vmatpush1.bf16.msra.mxu0 %v1725
      %1743 = vmatprep.subr.bf16.mxu0 0
      %1744 = vmatpush1.bf16.msra.mxu0 %v1726
      %1745 = vmatprep.subr.bf16.mxu0 0
      %1746 = vmatpush1.bf16.msra.mxu0 %v1727
      %1747 = vmatprep.subr.bf16.mxu0 0
      %1748 = vmatpush1.bf16.msra.mxu0 %v1728
      %1749 = vmatprep.subr.bf16.mxu0 0
      %1750 = vmatpush1.bf16.msra.mxu0 %v1729
      %1751 = vmatprep.subr.bf16.mxu0 0
      %1752 = vmatpush1.bf16.msra.mxu0 %v1730
      %1753 = vmatprep.subr.bf16.mxu0 0
      %1754 = vmatpush1.bf16.msra.mxu0 %v1731
      %1755 = vmatprep.subr.bf16.mxu0 0
      %1756 = vmatpush1.bf16.msra.mxu0 %v1732
      %1757 = vmatprep.subr.bf16.mxu0 0
      %1758 = vmatpush1.bf16.msra.mxu0 0
      %1759 = vmatprep.subr.bf16.mxu0 0
      %1760 = vmatpush1.bf16.msra.mxu0 0
      %1761 = vmatprep.subr.bf16.mxu0 0
      %1762 = vmatpush1.bf16.msra.mxu0 0
      %1763 = vmatprep.subr.bf16.mxu0 0
      %1764 = vmatpush1.bf16.msra.mxu0 0
      %1765 = vmatprep.subr.bf16.mxu0 0
      %1766 = vmatpush1.bf16.msra.mxu0 0
      %1767 = vmatprep.subr.bf16.mxu0 0
      %1768 = vmatpush1.bf16.msra.mxu0 0
      %1769 = vmatprep.subr.bf16.mxu0 0
      %1770 = vmatpush1.bf16.msra.mxu0 0
      %1771 = vmatprep.subr.bf16.mxu0 0
      %1772 = vmatpush1.bf16.msra.mxu0 0
      %1773 = vmatprep.mubr.bf16.mxu0 0
      %1774 = vmatmul.mubr.bf16.gmra.mrb[0].mxu0 %v1691
      %v1775 = vpop.f32.mrb[0].mxu0
      %v1776 = vadd.f32 0.0, %v1775
      %v1777 = vpop.f32.mrb[0].mxu0
      %v1778 = vpop.f32.mrb[0].mxu0
      %v1779 = vpop.f32.mrb[0].mxu0
      %1780 = vdwg.mxu0
      %v1797 = vunpack.c.l.b16 %v1649
      %v1798 = vunpack.c.l.b16 %v1650
      %v1799 = vunpack.c.l.b16 %v1651
      %v1800 = vunpack.c.l.b16 %v1652
      %v1801 = vunpack.c.l.b16 %v1653
      %v1802 = vunpack.c.l.b16 %v1654
      %v1803 = vunpack.c.l.b16 %v1655
      %v1804 = vunpack.c.l.b16 %v1656
      %v1805 = vunpack.c.l.b16 %v1657
      %v1806 = vunpack.c.l.b16 %v1658
      %v1807 = vunpack.c.l.b16 %v1659
      %v1808 = vunpack.c.l.b16 %v1660
      %v1809 = vunpack.c.l.b16 %v1661
      %v1810 = vunpack.c.l.b16 %v1662
      %v1811 = vunpack.c.l.b16 %v1663
      %v1812 = vunpack.c.l.b16 %v1664
      %v1813 = vpack.c.b16 %v1798, %v1797
      %v1814 = vpack.c.b16 %v1800, %v1799
      %v1815 = vpack.c.b16 %v1802, %v1801
      %v1816 = vpack.c.b16 %v1804, %v1803
      %v1817 = vpack.c.b16 %v1806, %v1805
      %v1818 = vpack.c.b16 %v1808, %v1807
      %v1819 = vpack.c.b16 %v1810, %v1809
      %v1820 = vpack.c.b16 %v1812, %v1811
      %1829 = vmatprep.subr.bf16.mxu0 0
      %1830 = vmatpush1.bf16.msra.mxu0 %v1813
      %1831 = vmatprep.subr.bf16.mxu0 0
      %1832 = vmatpush1.bf16.msra.mxu0 %v1814
      %1833 = vmatprep.subr.bf16.mxu0 0
      %1834 = vmatpush1.bf16.msra.mxu0 %v1815
      %1835 = vmatprep.subr.bf16.mxu0 0
      %1836 = vmatpush1.bf16.msra.mxu0 %v1816
      %1837 = vmatprep.subr.bf16.mxu0 0
      %1838 = vmatpush1.bf16.msra.mxu0 %v1817
      %1839 = vmatprep.subr.bf16.mxu0 0
      %1840 = vmatpush1.bf16.msra.mxu0 %v1818
      %1841 = vmatprep.subr.bf16.mxu0 0
      %1842 = vmatpush1.bf16.msra.mxu0 %v1819
      %1843 = vmatprep.subr.bf16.mxu0 0
      %1844 = vmatpush1.bf16.msra.mxu0 %v1820
      %1845 = vmatprep.subr.bf16.mxu0 0
      %1846 = vmatpush1.bf16.msra.mxu0 0
      %1847 = vmatprep.subr.bf16.mxu0 0
      %1848 = vmatpush1.bf16.msra.mxu0 0
      %1849 = vmatprep.subr.bf16.mxu0 0
      %1850 = vmatpush1.bf16.msra.mxu0 0
      %1851 = vmatprep.subr.bf16.mxu0 0
      %1852 = vmatpush1.bf16.msra.mxu0 0
      %1853 = vmatprep.subr.bf16.mxu0 0
      %1854 = vmatpush1.bf16.msra.mxu0 0
      %1855 = vmatprep.subr.bf16.mxu0 0
      %1856 = vmatpush1.bf16.msra.mxu0 0
      %1857 = vmatprep.subr.bf16.mxu0 0
      %1858 = vmatpush1.bf16.msra.mxu0 0
      %1859 = vmatprep.subr.bf16.mxu0 0
      %1860 = vmatpush1.bf16.msra.mxu0 0
      %1861 = vmatprep.mubr.bf16.mxu0 0
      %1862 = vmatmul.mubr.bf16.gmra.mrb[0].mxu0 %v1648
      %v1863 = vpop.f32.mrb[0].mxu0
      %v1864 = vadd.f32 %v1776, %v1863
      %v1865 = vpop.f32.mrb[0].mxu0
      %v1866 = vpop.f32.mrb[0].mxu0
      %v1867 = vpop.f32.mrb[0].mxu0
      %1868 = vdwg.mxu0
      %s1869 = sadd.s32 %s235, 4
      %s1870 = sadd.s32 %s1869, %s236
      %s1871 = smul.addr %s1870, 4
      %s1872 = scalar_lea.vmem %s0, %s1871
      %v1873 = vld [vmem:[%s1872] sm:$0x3]
      %v1874 = vld [vmem:[%s467] sm:$0xf]
      %v1875 = vld [vmem:[%s467 + $0x4] sm:$0xf]
      %v1876 = vld [vmem:[%s467 + $0x8] sm:$0xf]
      %v1877 = vld [vmem:[%s467 + $0xc] sm:$0xf]
      %v1878 = vld [vmem:[%s467 + $0x10] sm:$0xf]
      %v1879 = vld [vmem:[%s467 + $0x14] sm:$0xf]
      %v1880 = vld [vmem:[%s467 + $0x18] sm:$0xf]
      %v1881 = vld [vmem:[%s467 + $0x1c] sm:$0xf]
      %v1882 = vld [vmem:[%s467 + $0x20] sm:$0xf]
      %v1883 = vld [vmem:[%s467 + $0x24] sm:$0xf]
      %v1884 = vld [vmem:[%s467 + $0x28] sm:$0xf]
      %v1885 = vld [vmem:[%s467 + $0x2c] sm:$0xf]
      %v1886 = vld [vmem:[%s467 + $0x30] sm:$0xf]
      %v1887 = vld [vmem:[%s467 + $0x34] sm:$0xf]
      %v1888 = vld [vmem:[%s467 + $0x38] sm:$0xf]
      %v1889 = vld [vmem:[%s467 + $0x3c] sm:$0xf]
      %v1906 = vunpack.c.l.b16 %v1874
      %v1907 = vunpack.c.l.b16 %v1875
      %v1908 = vunpack.c.l.b16 %v1876
      %v1909 = vunpack.c.l.b16 %v1877
      %v1910 = vunpack.c.l.b16 %v1878
      %v1911 = vunpack.c.l.b16 %v1879
      %v1912 = vunpack.c.l.b16 %v1880
      %v1913 = vunpack.c.l.b16 %v1881
      %v1914 = vunpack.c.l.b16 %v1882
      %v1915 = vunpack.c.l.b16 %v1883
      %v1916 = vunpack.c.l.b16 %v1884
      %v1917 = vunpack.c.l.b16 %v1885
      %v1918 = vunpack.c.l.b16 %v1886
      %v1919 = vunpack.c.l.b16 %v1887
      %v1920 = vunpack.c.l.b16 %v1888
      %v1921 = vunpack.c.l.b16 %v1889
      %v1922 = vpack.c.b16 %v1907, %v1906
      %v1923 = vpack.c.b16 %v1909, %v1908
      %v1924 = vpack.c.b16 %v1911, %v1910
      %v1925 = vpack.c.b16 %v1913, %v1912
      %v1926 = vpack.c.b16 %v1915, %v1914
      %v1927 = vpack.c.b16 %v1917, %v1916
      %v1928 = vpack.c.b16 %v1919, %v1918
      %v1929 = vpack.c.b16 %v1921, %v1920
      %1938 = vmatprep.subr.bf16.mxu0 0
      %1939 = vmatpush1.bf16.msra.mxu0 %v1922
      %1940 = vmatprep.subr.bf16.mxu0 0
      %1941 = vmatpush1.bf16.msra.mxu0 %v1923
      %1942 = vmatprep.subr.bf16.mxu0 0
      %1943 = vmatpush1.bf16.msra.mxu0 %v1924
      %1944 = vmatprep.subr.bf16.mxu0 0
      %1945 = vmatpush1.bf16.msra.mxu0 %v1925
      %1946 = vmatprep.subr.bf16.mxu0 0
      %1947 = vmatpush1.bf16.msra.mxu0 %v1926
      %1948 = vmatprep.subr.bf16.mxu0 0
      %1949 = vmatpush1.bf16.msra.mxu0 %v1927
      %1950 = vmatprep.subr.bf16.mxu0 0
      %1951 = vmatpush1.bf16.msra.mxu0 %v1928
      %1952 = vmatprep.subr.bf16.mxu0 0
      %1953 = vmatpush1.bf16.msra.mxu0 %v1929
      %1954 = vmatprep.subr.bf16.mxu0 0
      %1955 = vmatpush1.bf16.msra.mxu0 0
      %1956 = vmatprep.subr.bf16.mxu0 0
      %1957 = vmatpush1.bf16.msra.mxu0 0
      %1958 = vmatprep.subr.bf16.mxu0 0
      %1959 = vmatpush1.bf16.msra.mxu0 0
      %1960 = vmatprep.subr.bf16.mxu0 0
      %1961 = vmatpush1.bf16.msra.mxu0 0
      %1962 = vmatprep.subr.bf16.mxu0 0
      %1963 = vmatpush1.bf16.msra.mxu0 0
      %1964 = vmatprep.subr.bf16.mxu0 0
      %1965 = vmatpush1.bf16.msra.mxu0 0
      %1966 = vmatprep.subr.bf16.mxu0 0
      %1967 = vmatpush1.bf16.msra.mxu0 0
      %1968 = vmatprep.subr.bf16.mxu0 0
      %1969 = vmatpush1.bf16.msra.mxu0 0
      %1970 = vmatprep.mubr.bf16.mxu0 0
      %1971 = vmatmul.mubr.bf16.gmra.mrb[0].mxu0 %v1873
      %v1972 = vpop.f32.mrb[0].mxu0
      %v1973 = vadd.f32 0.0, %v1972
      %v1974 = vpop.f32.mrb[0].mxu0
      %v1975 = vpop.f32.mrb[0].mxu0
      %v1976 = vpop.f32.mrb[0].mxu0
      %1977 = vdwg.mxu0
      %v1978 = vadd.f32 %v1864, %v1973
      %v1979 = vld [vmem:[%s1872] sm:$0x7]
      %v1980 = vld [vmem:[%s574] sm:$0xf]
      %v1981 = vld [vmem:[%s574 + $0x4] sm:$0xf]
      %v1982 = vld [vmem:[%s574 + $0x8] sm:$0xf]
      %v1983 = vld [vmem:[%s574 + $0xc] sm:$0xf]
      %v1984 = vld [vmem:[%s574 + $0x10] sm:$0xf]
      %v1985 = vld [vmem:[%s574 + $0x14] sm:$0xf]
      %v1986 = vld [vmem:[%s574 + $0x18] sm:$0xf]
      %v1987 = vld [vmem:[%s574 + $0x1c] sm:$0xf]
      %v1988 = vld [vmem:[%s574 + $0x20] sm:$0xf]
      %v1989 = vld [vmem:[%s574 + $0x24] sm:$0xf]
      %v1990 = vld [vmem:[%s574 + $0x28] sm:$0xf]
      %v1991 = vld [vmem:[%s574 + $0x2c] sm:$0xf]
      %v1992 = vld [vmem:[%s574 + $0x30] sm:$0xf]
      %v1993 = vld [vmem:[%s574 + $0x34] sm:$0xf]
      %v1994 = vld [vmem:[%s574 + $0x38] sm:$0xf]
      %v1995 = vld [vmem:[%s574 + $0x3c] sm:$0xf]
      %v1997 = vunpack.c.l.b16 %v1979
      %v1998 = vpack.c.b16 %v1997, %v1997
      %v2000 = vshrl.u32 %v1998, 16
      %v2002 = vshll.u32 %v1998, 16
      %v2004 = vrot.slane %v2002, 1
      %v2005 = vor.u32 %v2000, %v2004
      %v2023 = vunpack.c.l.b16 %v1980
      %v2024 = vunpack.c.l.b16 %v1981
      %v2025 = vunpack.c.l.b16 %v1982
      %v2026 = vunpack.c.l.b16 %v1983
      %v2027 = vunpack.c.l.b16 %v1984
      %v2028 = vunpack.c.l.b16 %v1985
      %v2029 = vunpack.c.l.b16 %v1986
      %v2030 = vunpack.c.l.b16 %v1987
      %v2031 = vunpack.c.l.b16 %v1988
      %v2032 = vunpack.c.l.b16 %v1989
      %v2033 = vunpack.c.l.b16 %v1990
      %v2034 = vunpack.c.l.b16 %v1991
      %v2035 = vunpack.c.l.b16 %v1992
      %v2036 = vunpack.c.l.b16 %v1993
      %v2037 = vunpack.c.l.b16 %v1994
      %v2038 = vunpack.c.l.b16 %v1995
      %v2039 = vpack.c.b16 %v2024, %v2023
      %v2040 = vpack.c.b16 %v2026, %v2025
      %v2041 = vpack.c.b16 %v2028, %v2027
      %v2042 = vpack.c.b16 %v2030, %v2029
      %v2043 = vpack.c.b16 %v2032, %v2031
      %v2044 = vpack.c.b16 %v2034, %v2033
      %v2045 = vpack.c.b16 %v2036, %v2035
      %v2046 = vpack.c.b16 %v2038, %v2037
      %2055 = vmatprep.subr.bf16.mxu0 0
      %2056 = vmatpush1.bf16.msra.mxu0 %v2039
      %2057 = vmatprep.subr.bf16.mxu0 0
      %2058 = vmatpush1.bf16.msra.mxu0 %v2040
      %2059 = vmatprep.subr.bf16.mxu0 0
      %2060 = vmatpush1.bf16.msra.mxu0 %v2041
      %2061 = vmatprep.subr.bf16.mxu0 0
      %2062 = vmatpush1.bf16.msra.mxu0 %v2042
      %2063 = vmatprep.subr.bf16.mxu0 0
      %2064 = vmatpush1.bf16.msra.mxu0 %v2043
      %2065 = vmatprep.subr.bf16.mxu0 0
      %2066 = vmatpush1.bf16.msra.mxu0 %v2044
      %2067 = vmatprep.subr.bf16.mxu0 0
      %2068 = vmatpush1.bf16.msra.mxu0 %v2045
      %2069 = vmatprep.subr.bf16.mxu0 0
      %2070 = vmatpush1.bf16.msra.mxu0 %v2046
      %2071 = vmatprep.subr.bf16.mxu0 0
      %2072 = vmatpush1.bf16.msra.mxu0 0
      %2073 = vmatprep.subr.bf16.mxu0 0
      %2074 = vmatpush1.bf16.msra.mxu0 0
      %2075 = vmatprep.subr.bf16.mxu0 0
      %2076 = vmatpush1.bf16.msra.mxu0 0
      %2077 = vmatprep.subr.bf16.mxu0 0
      %2078 = vmatpush1.bf16.msra.mxu0 0
      %2079 = vmatprep.subr.bf16.mxu0 0
      %2080 = vmatpush1.bf16.msra.mxu0 0
      %2081 = vmatprep.subr.bf16.mxu0 0
      %2082 = vmatpush1.bf16.msra.mxu0 0
      %2083 = vmatprep.subr.bf16.mxu0 0
      %2084 = vmatpush1.bf16.msra.mxu0 0
      %2085 = vmatprep.subr.bf16.mxu0 0
      %2086 = vmatpush1.bf16.msra.mxu0 0
      %2087 = vmatprep.mubr.bf16.mxu0 0
      %2088 = vmatmul.mubr.bf16.gmra.mrb[0].mxu0 %v2005
      %v2089 = vpop.f32.mrb[0].mxu0
      %v2090 = vadd.f32 0.0, %v2089
      %v2091 = vpop.f32.mrb[0].mxu0
      %v2092 = vpop.f32.mrb[0].mxu0
      %v2093 = vpop.f32.mrb[0].mxu0
      %2094 = vdwg.mxu0
      %v2095 = vadd.f32 %v1978, %v2090
      %v2096 = vpack.c.bf16 %v2095, %v2095
      %s2097 = scalar_lea.vmem %s220, 6
      %2098 = vst.msk [vmem:[%s2097] sm:$0x3] %vm692, %v2096
      %v2099 = vsel %vm694, %v2095, 0.0
      %v2100 = vrot.slane %v2099, 4
      %v2101 = vadd.f32 %v2099, %v2100
      %v2102 = vrot.slane %v2101, 2
      %v2103 = vadd.f32 %v2101, %v2102
      %v2104 = vrot.slane %v2103, 1
      %v2105 = vadd.f32 %v2103, %v2104
      %v2106 = vadd.f32 %v1638, %v2105
      %v2107 = vmul.f32 %v2095, %v2095
      %v2108 = vsel %vm694, %v2107, 0.0
      %v2109 = vrot.slane %v2108, 4
      %v2110 = vadd.f32 %v2108, %v2109
      %v2111 = vrot.slane %v2110, 2
      %v2112 = vadd.f32 %v2110, %v2111
      %v2113 = vrot.slane %v2112, 1
      %v2114 = vadd.f32 %v2112, %v2113
      %v2115 = vadd.f32 %v1647, %v2114
      %vm2116 = vcmask 516096
      %2117 = vst.msk [vmem:[%s227] sm:$0x1] %vm2116, %v2106
      %2118 = vst.msk [vmem:[%s233] sm:$0x1] %vm2116, %v2115
      %s2119 = smul.u32 4, %s21
      %p2120 = scmp.lt.s32.totalorder %s20, 1
      %s2121 = scalar_select %p2120, %s20, 1
      %p2122 = scmp.lt.s32.totalorder %s2119, 3
      %s2123 = scalar_select %p2122, %s2119, 3
      %s2124 = smul.addr %s2121, 4
      %s2125 = sadd.s32 %s2123, %s2124
      %s2126 = smul.addr %s2125, 2
      %s2127 = scalar_lea.vmem %s2, %s2126
      %p2128 = scmp.lt.s32.totalorder %s20, 1
      %s2129 = scalar_select %p2128, %s20, 1
      %p2130 = scmp.lt.s32.totalorder %s21, 0
      %s2131 = scalar_select %p2130, %s21, 0
      %s2132 = sadd.s32 %s2131, %s2129
      %s2133 = scalar_lea.vmem %s3, %s2132
      %p2134 = scmp.lt.s32.totalorder %s20, 1
      %s2135 = scalar_select %p2134, %s20, 1
      %p2136 = scmp.lt.s32.totalorder %s21, 0
      %s2137 = scalar_select %p2136, %s21, 0
      %s2138 = sadd.s32 %s2137, %s2135
      %s2139 = scalar_lea.vmem %s4, %s2138
      // Predicated region
      $region29: #{_lambda_.3} parent=27 // pred_check
        %p2140 = pneg %p90
      $region30: #{_lambda_.3} parent=27 // pred_check_branch
        %2142 = sbr.rel (%p2140) target = $region32
      $region31: #{_lambda_.3} parent=27 // pred_region
        %s2143 = smul.u32 4, %s21
      $region32: #{_lambda_.3} parent=27 // pred_fallthru
        _
      // Predicated region
      $region33: #{_lambda_.3} parent=27 // pred_check
        %p2144 = pneg %p118
      $region34: #{_lambda_.3} parent=27 // pred_check_branch
        %2146 = sbr.rel (%p2144) target = $region36
      $region35: #{_lambda_.3} parent=27 // pred_region
        _
      $region36: #{_lambda_.3} parent=27 // pred_fallthru
        _
      // Predicated region
      $region37: #{_lambda_.3} parent=27 // pred_check
        %p2147 = pneg %p146
      $region38: #{_lambda_.3} parent=27 // pred_check_branch
        %2149 = sbr.rel (%p2147) target = $region40
      $region39: #{_lambda_.3} parent=27 // pred_region
        _
      $region40: #{_lambda_.3} parent=27 // pred_fallthru
        _
    $region28: #{_lambda_.3} parent=5 // pred_fallthru
      _
    %p2150 = scmp.le.s32.totalorder 2, %s11
    // Predicated region
    $region41: #{_lambda_.3} parent=5 // pred_check
      %p2151 = pneg %p2150
    $region42: #{_lambda_.3} parent=5 // pred_check_branch
      %2153 = sbr.rel (%p2151) target = $region44
    $region43: #{_lambda_.3} parent=5 // pred_region
      %s2154 = ssub.s32 %s11, 2
      // Predicated region
      $region45: #{_lambda_.3} parent=43 // pred_check
        %p2155 = pneg %p96
      $region46: #{_lambda_.3} parent=43 // pred_check_branch
        %2157 = sbr.rel (%p2155) target = $region48
      $region47: #{_lambda_.3} parent=43 // pred_region
        %s2158 = smul.u32 4, %s23
        %p2159 = scmp.lt.s32.totalorder %s22, 1
        %s2160 = scalar_select %p2159, %s22, 1
        %p2161 = scmp.lt.s32.totalorder %s2158, 3
        %s2162 = scalar_select %p2161, %s2158, 3
        %s2163 = smul.addr %s2160, 4
        %s2164 = sadd.s32 %s2162, %s2163
        %s2165 = smul.addr %s2164, 2
        %s2166 = scalar_lea.vmem %s2, %s2165
      $region48: #{_lambda_.3} parent=43 // pred_fallthru
        _
      // Predicated region
      $region49: #{_lambda_.3} parent=43 // pred_check
        %p2167 = pneg %p124
      $region50: #{_lambda_.3} parent=43 // pred_check_branch
        %2169 = sbr.rel (%p2167) target = $region52
      $region51: #{_lambda_.3} parent=43 // pred_region
        %p2170 = scmp.lt.s32.totalorder %s22, 1
        %s2171 = scalar_select %p2170, %s22, 1
        %p2172 = scmp.lt.s32.totalorder %s23, 0
        %s2173 = scalar_select %p2172, %s23, 0
        %s2174 = sadd.s32 %s2173, %s2171
        %s2175 = scalar_lea.vmem %s3, %s2174
      $region52: #{_lambda_.3} parent=43 // pred_fallthru
        _
      // Predicated region
      $region53: #{_lambda_.3} parent=43 // pred_check
        %p2176 = pneg %p152
      $region54: #{_lambda_.3} parent=43 // pred_check_branch
        %2178 = sbr.rel (%p2176) target = $region56
      $region55: #{_lambda_.3} parent=43 // pred_region
        %p2179 = scmp.lt.s32.totalorder %s22, 1
        %s2180 = scalar_select %p2179, %s22, 1
        %p2181 = scmp.lt.s32.totalorder %s23, 0
        %s2182 = scalar_select %p2181, %s23, 0
        %s2183 = sadd.s32 %s2182, %s2180
        %s2184 = scalar_lea.vmem %s4, %s2183
      $region56: #{_lambda_.3} parent=43 // pred_fallthru
        _
    $region44: #{_lambda_.3} parent=5 // pred_fallthru
      _
  $region6: #{_lambda_.3} parent=0 // loop_footer
    %s15 = sadd.s32 1, %s11
  $region7: #{_lambda_.3} parent=0 // loop_footer_branch
    %10 = sbr.rel target = $region3
  $region8: #{_lambda_.3} parent=0 // loop_exit
    _

// kernel: _lambda_.2
$region0: #{_lambda_.2}
  #allocation0 [shape = 'u32[]', space=smem, size = 0x4, offset = 0x4, fixed_abs, tag = 'smem constant byte address 0x4 - core index']
  #allocation1 [shape = 'u32[144,128]{1,0:T(1,128)}', space=vmem, size = 0x12000, scoped, tag = 'internal scratch']
  %s0 = inlined_call_operand.vmem [shape: bf16[2,9,9,16], index: 0, kind: input, shape index: {}]
  %s1 = inlined_call_operand.vmem [shape: bf16[2,2,16,32], index: 1, kind: input, shape index: {}]
  %s2 = inlined_call_operand.vmem [shape: f32[1,32], index: 2, kind: input, shape index: {}]
  %s3 = inlined_call_operand.vmem [shape: bf16[2,8,8,32], index: 3, kind: output, shape index: {}]
  %s4 = sld [smem:[#allocation0]]
  $region45: #{_lambda_.2} parent=0
    _
  %s6 = ssub.s32 1, %s4
  %s7 = scalar_select 0, %s6, %s4
  loop: start=0, step=1, limit=4
  $region2: #{_lambda_.2} parent=0 // loop_pre_header
    _
  $region3: #{_lambda_.2} parent=0 // loop_header
    %s9 = sphi 0, %s13
    %p10 = scmp.ge.s32.totalorder %s9, 4
    %s16 = sphi 0, %s28
    %s17 = sphi 0, %s24
    %s18 = sphi 0, %s16
    %s19 = sphi 0, %s17
    %s20 = sphi 0, %s18
    %s21 = sphi 0, %s19
    %s29 = sphi 0, %s29
    %s31 = sphi 0, %s29
    %s32 = sphi 0, %s31
    %s46 = sphi 0, %s32
    %s50 = sphi 0, %s50
    %s52 = sphi 0, %s50
    %s53 = sphi 0, %s52
    %s67 = sphi 0, %s53
    %s71 = sphi 0, %s71
    %s73 = sphi 0, %s71
    %s74 = sphi 0, %s73
    %s88 = sphi 0, %s74
    %s96 = sphi 0, %s98
    %s99 = sphi 0, %s96
    %s100 = sphi 0, %s99
    %s116 = sphi 0, %s100
  $region4: #{_lambda_.2} parent=0 // loop_header_branch
    %12 = sbr.rel (%p10) target = $region8
  $region5: #{_lambda_.2} parent=0 // loop_body
    %s14 = ssub.s32 %s9, 1
    %s15 = ssub.s32 %s9, 2
    %s22 = sadd.s32 1, %s17
    %p23 = scmp.ge.s32.totalorder %s22, 1
    %s24 = scalar_select %p23, 0, %s22
    %s25 = sadd.s32 1, %s16
    %s26 = scalar_select %p23, %s25, %s16
    %p27 = scmp.ge.s32.totalorder %s26, 2
    %s28 = scalar_select %p27, 0, %s26
    %s30 = sadd.s32 %s29, 1
    %p33 = scmp.eq.s32.totalorder %s9, 1
    %p34 = scmp.ne.s32.totalorder %s29, %s31
    %p35 = scmp.eq.s32.totalorder %s9, 0
    %p36 = por %p34, %p35
    %p37 = scmp.ne.s32.totalorder %s29, %s31
    %p38 = scmp.eq.s32.totalorder %s14, 1
    %p39 = por %p37, %p38
    %p40 = scmp.ne.s32.totalorder %s31, %s32
    %p41 = scmp.eq.s32.totalorder %s14, 0
    %p42 = por %p40, %p41
    %p43 = scmp.ne.s32.totalorder %s31, %s32
    %p44 = scmp.eq.s32.totalorder %s15, 1
    %p45 = por %p43, %p44
    %p47 = scmp.ne.s32.totalorder %s32, %s46
    %p48 = scmp.eq.s32.totalorder %s15, 0
    %p49 = por %p47, %p48
    %s51 = sadd.s32 %s50, 1
    %p54 = scmp.eq.s32.totalorder %s9, 1
    %p55 = scmp.ne.s32.totalorder %s50, %s52
    %p56 = scmp.eq.s32.totalorder %s9, 0
    %p57 = por %p55, %p56
    %p58 = scmp.ne.s32.totalorder %s50, %s52
    %p59 = scmp.eq.s32.totalorder %s14, 1
    %p60 = por %p58, %p59
    %p61 = scmp.ne.s32.totalorder %s52, %s53
    %p62 = scmp.eq.s32.totalorder %s14, 0
    %p63 = por %p61, %p62
    %p64 = scmp.ne.s32.totalorder %s52, %s53
    %p65 = scmp.eq.s32.totalorder %s15, 1
    %p66 = por %p64, %p65
    %p68 = scmp.ne.s32.totalorder %s53, %s67
    %p69 = scmp.eq.s32.totalorder %s15, 0
    %p70 = por %p68, %p69
    %s72 = sadd.s32 %s71, 1
    %p75 = scmp.eq.s32.totalorder %s9, 1
    %p76 = scmp.ne.s32.totalorder %s71, %s73
    %p77 = scmp.eq.s32.totalorder %s9, 0
    %p78 = por %p76, %p77
    %p79 = scmp.ne.s32.totalorder %s71, %s73
    %p80 = scmp.eq.s32.totalorder %s14, 1
    %p81 = por %p79, %p80
    %p82 = scmp.ne.s32.totalorder %s73, %s74
    %p83 = scmp.eq.s32.totalorder %s14, 0
    %p84 = por %p82, %p83
    %p85 = scmp.ne.s32.totalorder %s73, %s74
    %p86 = scmp.eq.s32.totalorder %s15, 1
    %p87 = por %p85, %p86
    %p89 = scmp.ne.s32.totalorder %s74, %s88
    %p90 = scmp.eq.s32.totalorder %s15, 0
    %p91 = por %p89, %p90
    %s92 = ssub.s32 %s16, %s28
    %s93 = ssub.s32 %s17, %s24
    %s94 = sor.u32 %s92, %s93
    %p95 = scmp.eq.s32.totalorder %s94, 0
    %s97 = sadd.s32 %s96, 1
    %s98 = scalar_select %p95, %s96, %s97
    %p101 = pneg %p95
    %p102 = scmp.eq.s32.totalorder %s9, 1
    %p103 = por %p101, %p102
    %p104 = scmp.ne.s32.totalorder %s96, %s99
    %p105 = scmp.eq.s32.totalorder %s9, 0
    %p106 = por %p104, %p105
    %p107 = scmp.ne.s32.totalorder %s96, %s99
    %p108 = scmp.eq.s32.totalorder %s14, 1
    %p109 = por %p107, %p108
    %p110 = scmp.ne.s32.totalorder %s99, %s100
    %p111 = scmp.eq.s32.totalorder %s14, 0
    %p112 = por %p110, %p111
    %p113 = scmp.ne.s32.totalorder %s99, %s100
    %p114 = scmp.eq.s32.totalorder %s15, 1
    %p115 = por %p113, %p114
    %p117 = scmp.ne.s32.totalorder %s100, %s116
    %p118 = scmp.eq.s32.totalorder %s15, 0
    %p119 = por %p117, %p118
    %p120 = scmp.le.s32.totalorder 1, %s9
    %p121 = scmp.lt.s32.totalorder %s9, 3
    %p122 = pnand %p120, %p121
    %p123 = pneg %p122
    // Predicated region
    $region9: #{_lambda_.2} parent=5 // pred_check
      _
    $region10: #{_lambda_.2} parent=5 // pred_check_branch
      %125 = sbr.rel (%p122) target = $region12
    $region11: #{_lambda_.2} parent=5 // pred_region
      %s126 = ssub.s32 %s9, 1
      // Predicated region
      $region13: #{_lambda_.2} parent=11 // pred_check
        %p127 = pneg %p42
      $region14: #{_lambda_.2} parent=11 // pred_check_branch
        %129 = sbr.rel (%p127) target = $region16
      $region15: #{_lambda_.2} parent=11 // pred_region
        _
      $region16: #{_lambda_.2} parent=11 // pred_fallthru
        _
      // Predicated region
      $region17: #{_lambda_.2} parent=11 // pred_check
        %p130 = pneg %p63
      $region18: #{_lambda_.2} parent=11 // pred_check_branch
        %132 = sbr.rel (%p130) target = $region20
      $region19: #{_lambda_.2} parent=11 // pred_region
        _
      $region20: #{_lambda_.2} parent=11 // pred_fallthru
        _
      // Predicated region
      $region21: #{_lambda_.2} parent=11 // pred_check
        %p133 = pneg %p84
      $region22: #{_lambda_.2} parent=11 // pred_check_branch
        %135 = sbr.rel (%p133) target = $region24
      $region23: #{_lambda_.2} parent=11 // pred_region
        _
      $region24: #{_lambda_.2} parent=11 // pred_fallthru
        _
    $region12: #{_lambda_.2} parent=5 // pred_fallthru
      _
    %p136 = scmp.lt.s32.totalorder %s9, 2
    // Predicated region
    $region25: #{_lambda_.2} parent=5 // pred_check
      %p137 = pneg %p136
    $region26: #{_lambda_.2} parent=5 // pred_check_branch
      %139 = sbr.rel (%p137) target = $region28
    $region27: #{_lambda_.2} parent=5 // pred_region
      _
    $region28: #{_lambda_.2} parent=5 // pred_fallthru
      _
    %p140 = scmp.le.s32.totalorder 1, %s9
    %p141 = scmp.lt.s32.totalorder %s9, 3
    %p142 = pnand %p140, %p141
    %p143 = pneg %p142
    // Predicated region
    $region29: #{_lambda_.2} parent=5 // pred_check
      _
    $region30: #{_lambda_.2} parent=5 // pred_check_branch
      %145 = sbr.rel (%p142) target = $region32
    $region31: #{_lambda_.2} parent=5 // pred_region
      %s146 = ssub.s32 %s9, 1
      %p147 = pneg %p42
      %p148 = pneg %p39
      %p149 = pneg %p63
      %p150 = pneg %p60
      %p151 = pneg %p84
      %p152 = pneg %p81
      %p153 = pneg %p112
      %p154 = pneg %p109
      %s155 = smul.u32 8, %s19
      %p156 = scmp.lt.s32.totalorder %s18, 1
      %s157 = scalar_select %p156, %s18, 1
      %p158 = scmp.lt.s32.totalorder %s155, 7
      %s159 = scalar_select %p158, %s155, 7
      %s160 = smul.addr %s157, 8
      %s161 = sadd.s32 %s159, %s160
      %s162 = smul.addr %s161, 4
      %s163 = scalar_lea.vmem %s3, %s162
      %s164 = smul.u32 8, %s19
      %p165 = scmp.lt.s32.totalorder %s18, 1
      %s166 = scalar_select %p165, %s18, 1
      %p167 = scmp.lt.s32.totalorder %s164, 7
      %s168 = scalar_select %p167, %s164, 7
      %s169 = smul.addr %s166, 8
      %s170 = sadd.s32 %s168, %s169
      %s171 = smul.addr %s170, 4
      %s172 = scalar_lea.vmem %s3, %s171
      %s173 = smul.u32 8, %s19
      %s175 = smul.u32 %s19, 8
      %s176 = smul.u32 %s175, 2
      %s177 = smul.u32 %s18, 18
      %s178 = sadd.s32 %s176, %s177
      %s179 = smul.addr %s178, 4
      %s180 = scalar_lea.vmem %s0, %s179
      %v181 = vld [vmem:[%s180] sm:$0xf]
      %v182 = vld [vmem:[%s1] sm:$0xf]
      %v183 = vld [vmem:[%s1 + $0x4] sm:$0xf]
      %v184 = vld [vmem:[%s180 + $0x4] sm:$0x1]
      %s185 = scalar_lea.vmem %s1, 8
      %v186 = vld [vmem:[%s185] sm:$0xf]
      %v187 = vld [vmem:[%s185 + $0x4] sm:$0xf]
      %v190 = vunpack.c.l.b16 %v181
      %v191 = vunpack.c.l.b16 %v184
      %v192 = vpack.c.b16 %v191, %v190
      %v194 = vshrl.u32 %v192, 16
      %v196 = vshll.u32 %v192, 16
      %v198 = vrot.slane %v196, 1
      %v199 = vor.u32 %v194, %v198
      %v202 = vunpack.c.l.b16 %v186
      %v203 = vunpack.c.l.b16 %v187
      %v204 = vpack.c.b16 %v203, %v202
      %vm206 = vcmask 130048
      %v208 = vsel %vm206, %v199, 0
      %210 = vmatprep.subr.bf16.mxu0 0
      %211 = vmatpush1.bf16.msra.mxu0 %v204
      %212 = vmatprep.subr.bf16.mxu0 0
      %213 = vmatpush1.bf16.msra.mxu0 0
      %214 = vmatprep.subr.bf16.mxu0 0
      %215 = vmatpush1.bf16.msra.mxu0 0
      %216 = vmatprep.subr.bf16.mxu0 0
      %217 = vmatpush1.bf16.msra.mxu0 0
      %218 = vmatprep.subr.bf16.mxu0 0
      %219 = vmatpush1.bf16.msra.mxu0 0
      %220 = vmatprep.subr.bf16.mxu0 0
      %221 = vmatpush1.bf16.msra.mxu0 0
      %222 = vmatprep.subr.bf16.mxu0 0
      %223 = vmatpush1.bf16.msra.mxu0 0
      %224 = vmatprep.subr.bf16.mxu0 0
      %225 = vmatpush1.bf16.msra.mxu0 0
      %226 = vmatprep.subr.bf16.mxu0 0
      %227 = vmatpush1.bf16.msra.mxu0 0
      %228 = vmatprep.subr.bf16.mxu0 0
      %229 = vmatpush1.bf16.msra.mxu0 0
      %230 = vmatprep.subr.bf16.mxu0 0
      %231 = vmatpush1.bf16.msra.mxu0 0
      %232 = vmatprep.subr.bf16.mxu0 0
      %233 = vmatpush1.bf16.msra.mxu0 0
      %234 = vmatprep.subr.bf16.mxu0 0
      %235 = vmatpush1.bf16.msra.mxu0 0
      %236 = vmatprep.subr.bf16.mxu0 0
      %237 = vmatpush1.bf16.msra.mxu0 0
      %238 = vmatprep.subr.bf16.mxu0 0
      %239 = vmatpush1.bf16.msra.mxu0 0
      %240 = vmatprep.subr.bf16.mxu0 0
      %241 = vmatpush1.bf16.msra.mxu0 0
      %242 = vmatprep.mubr.bf16.mxu0 0
      %243 = vmatmul.mubr.bf16.gmra.mrb[0].mxu0 %v208
      %v244 = vpop.f32.mrb[0].mxu0
      %v245 = vadd.f32 0.0, %v244
      %v246 = vpop.f32.mrb[0].mxu0
      %v247 = vpop.f32.mrb[0].mxu0
      %v248 = vpop.f32.mrb[0].mxu0
      %249 = vdwg.mxu0
      %v252 = vunpack.c.l.b16 %v182
      %v253 = vunpack.c.l.b16 %v183
      %v254 = vpack.c.b16 %v253, %v252
      %v257 = vsel %vm206, %v181, 0
      %259 = vmatprep.subr.bf16.mxu0 0
      %260 = vmatpush1.bf16.msra.mxu0 %v254
      %261 = vmatprep.subr.bf16.mxu0 0
      %262 = vmatpush1.bf16.msra.mxu0 0
      %263 = vmatprep.subr.bf16.mxu0 0
      %264 = vmatpush1.bf16.msra.mxu0 0
      %265 = vmatprep.subr.bf16.mxu0 0
      %266 = vmatpush1.bf16.msra.mxu0 0
      %267 = vmatprep.subr.bf16.mxu0 0
      %268 = vmatpush1.bf16.msra.mxu0 0
      %269 = vmatprep.subr.bf16.mxu0 0
      %270 = vmatpush1.bf16.msra.mxu0 0
      %271 = vmatprep.subr.bf16.mxu0 0
      %272 = vmatpush1.bf16.msra.mxu0 0
      %273 = vmatprep.subr.bf16.mxu0 0
      %274 = vmatpush1.bf16.msra.mxu0 0
      %275 = vmatprep.subr.bf16.mxu0 0
      %276 = vmatpush1.bf16.msra.mxu0 0
      %277 = vmatprep.subr.bf16.mxu0 0
      %278 = vmatpush1.bf16.msra.mxu0 0
      %279 = vmatprep.subr.bf16.mxu0 0
      %280 = vmatpush1.bf16.msra.mxu0 0
      %281 = vmatprep.subr.bf16.mxu0 0
      %282 = vmatpush1.bf16.msra.mxu0 0
      %283 = vmatprep.subr.bf16.mxu0 0
      %284 = vmatpush1.bf16.msra.mxu0 0
      %285 = vmatprep.subr.bf16.mxu0 0
      %286 = vmatpush1.bf16.msra.mxu0 0
      %287 = vmatprep.subr.bf16.mxu0 0
      %288 = vmatpush1.bf16.msra.mxu0 0
      %289 = vmatprep.subr.bf16.mxu0 0
      %290 = vmatpush1.bf16.msra.mxu0 0
      %291 = vmatprep.mubr.bf16.mxu0 0
      %292 = vmatmul.mubr.bf16.gmra.mrb[0].mxu0 %v257
      %v293 = vpop.f32.mrb[0].mxu0
      %v294 = vadd.f32 %v245, %v293
      %v295 = vpop.f32.mrb[0].mxu0
      %v296 = vpop.f32.mrb[0].mxu0
      %v297 = vpop.f32.mrb[0].mxu0
      %298 = vdwg.mxu0
      %s299 = sadd.s32 %s175, 1
      %s300 = smul.u32 %s299, 2
      %s301 = sadd.s32 %s300, %s177
      %s302 = smul.addr %s301, 4
      %s303 = scalar_lea.vmem %s0, %s302
      %v304 = vld [vmem:[%s303] sm:$0xf]
      %s305 = scalar_lea.vmem %s1, 16
      %v306 = vld [vmem:[%s305] sm:$0xf]
      %v307 = vld [vmem:[%s305 + $0x4] sm:$0xf]
      %v310 = vunpack.c.l.b16 %v306
      %v311 = vunpack.c.l.b16 %v307
      %v312 = vpack.c.b16 %v311, %v310
      %v315 = vsel %vm206, %v304, 0
      %317 = vmatprep.subr.bf16.mxu0 0
      %318 = vmatpush1.bf16.msra.mxu0 %v312
      %319 = vmatprep.subr.bf16.mxu0 0
      %320 = vmatpush1.bf16.msra.mxu0 0
      %321 = vmatprep.subr.bf16.mxu0 0
      %322 = vmatpush1.bf16.msra.mxu0 0
      %323 = vmatprep.subr.bf16.mxu0 0
      %324 = vmatpush1.bf16.msra.mxu0 0
      %325 = vmatprep.subr.bf16.mxu0 0
      %326 = vmatpush1.bf16.msra.mxu0 0
      %327 = vmatprep.subr.bf16.mxu0 0
      %328 = vmatpush1.bf16.msra.mxu0 0
      %329 = vmatprep.subr.bf16.mxu0 0
      %330 = vmatpush1.bf16.msra.mxu0 0
      %331 = vmatprep.subr.bf16.mxu0 0
      %332 = vmatpush1.bf16.msra.mxu0 0
      %333 = vmatprep.subr.bf16.mxu0 0
      %334 = vmatpush1.bf16.msra.mxu0 0
      %335 = vmatprep.subr.bf16.mxu0 0
      %336 = vmatpush1.bf16.msra.mxu0 0
      %337 = vmatprep.subr.bf16.mxu0 0
      %338 = vmatpush1.bf16.msra.mxu0 0
      %339 = vmatprep.subr.bf16.mxu0 0
      %340 = vmatpush1.bf16.msra.mxu0 0
      %341 = vmatprep.subr.bf16.mxu0 0
      %342 = vmatpush1.bf16.msra.mxu0 0
      %343 = vmatprep.subr.bf16.mxu0 0
      %344 = vmatpush1.bf16.msra.mxu0 0
      %345 = vmatprep.subr.bf16.mxu0 0
      %346 = vmatpush1.bf16.msra.mxu0 0
      %347 = vmatprep.subr.bf16.mxu0 0
      %348 = vmatpush1.bf16.msra.mxu0 0
      %349 = vmatprep.mubr.bf16.mxu0 0
      %350 = vmatmul.mubr.bf16.gmra.mrb[0].mxu0 %v315
      %v351 = vpop.f32.mrb[0].mxu0
      %v352 = vadd.f32 0.0, %v351
      %v353 = vpop.f32.mrb[0].mxu0
      %v354 = vpop.f32.mrb[0].mxu0
      %v355 = vpop.f32.mrb[0].mxu0
      %356 = vdwg.mxu0
      %v357 = vadd.f32 %v294, %v352
      %v358 = vld [vmem:[%s303] sm:$0xf]
      %v359 = vld [vmem:[%s303 + $0x4] sm:$0x1]
      %s360 = scalar_lea.vmem %s1, 24
      %v361 = vld [vmem:[%s360] sm:$0xf]
      %v362 = vld [vmem:[%s360 + $0x4] sm:$0xf]
      %v365 = vunpack.c.l.b16 %v358
      %v366 = vunpack.c.l.b16 %v359
      %v367 = vpack.c.b16 %v366, %v365
      %v369 = vshrl.u32 %v367, 16
      %v371 = vshll.u32 %v367, 16
      %v373 = vrot.slane %v371, 1
      %v374 = vor.u32 %v369, %v373
      %v377 = vunpack.c.l.b16 %v361
      %v378 = vunpack.c.l.b16 %v362
      %v379 = vpack.c.b16 %v378, %v377
      %v382 = vsel %vm206, %v374, 0
      %384 = vmatprep.subr.bf16.mxu0 0
      %385 = vmatpush1.bf16.msra.mxu0 %v379
      %386 = vmatprep.subr.bf16.mxu0 0
      %387 = vmatpush1.bf16.msra.mxu0 0
      %388 = vmatprep.subr.bf16.mxu0 0
      %389 = vmatpush1.bf16.msra.mxu0 0
      %390 = vmatprep.subr.bf16.mxu0 0
      %391 = vmatpush1.bf16.msra.mxu0 0
      %392 = vmatprep.subr.bf16.mxu0 0
      %393 = vmatpush1.bf16.msra.mxu0 0
      %394 = vmatprep.subr.bf16.mxu0 0
      %395 = vmatpush1.bf16.msra.mxu0 0
      %396 = vmatprep.subr.bf16.mxu0 0
      %397 = vmatpush1.bf16.msra.mxu0 0
      %398 = vmatprep.subr.bf16.mxu0 0
      %399 = vmatpush1.bf16.msra.mxu0 0
      %400 = vmatprep.subr.bf16.mxu0 0
      %401 = vmatpush1.bf16.msra.mxu0 0
      %402 = vmatprep.subr.bf16.mxu0 0
      %403 = vmatpush1.bf16.msra.mxu0 0
      %404 = vmatprep.subr.bf16.mxu0 0
      %405 = vmatpush1.bf16.msra.mxu0 0
      %406 = vmatprep.subr.bf16.mxu0 0
      %407 = vmatpush1.bf16.msra.mxu0 0
      %408 = vmatprep.subr.bf16.mxu0 0
      %409 = vmatpush1.bf16.msra.mxu0 0
      %410 = vmatprep.subr.bf16.mxu0 0
      %411 = vmatpush1.bf16.msra.mxu0 0
      %412 = vmatprep.subr.bf16.mxu0 0
      %413 = vmatpush1.bf16.msra.mxu0 0
      %414 = vmatprep.subr.bf16.mxu0 0
      %415 = vmatpush1.bf16.msra.mxu0 0
      %416 = vmatprep.mubr.bf16.mxu0 0
      %417 = vmatmul.mubr.bf16.gmra.mrb[0].mxu0 %v382
      %v418 = vpop.f32.mrb[0].mxu0
      %v419 = vadd.f32 0.0, %v418
      %v420 = vpop.f32.mrb[0].mxu0
      %v421 = vpop.f32.mrb[0].mxu0
      %v422 = vpop.f32.mrb[0].mxu0
      %423 = vdwg.mxu0
      %v424 = vadd.f32 %v357, %v419
      %v425 = vld [vmem:[%s2] sm:$0x1]
      %v427 = vlaneseq
      %v428 = vshrl.u32 %v427, 7
      %v429 = vsub.s32 0, %v428
      %v430 = vrot.slane %v425, %v429
      %v432 = vadd.f32 %v424, %v430
      %vm433 = vcmp.ge.f32.partialorder %v432, 0.0
      %v434 = vmul.f32 %v432, 0.01
      %v435 = vsel %vm433, %v432, %v434
      %v436 = vpack.c.bf16 %v435, %v435
      %vm437 = vcmask 257024
      %438 = vst.msk [vmem:[%s172] sm:$0xf] %vm437, %v436
      %v439 = vld [vmem:[%s303] sm:$0xf]
      %v440 = vld [vmem:[%s1] sm:$0xf]
      %v441 = vld [vmem:[%s1 + $0x4] sm:$0xf]
      %v442 = vld [vmem:[%s303 + $0x4] sm:$0x1]
      %v443 = vld [vmem:[%s185] sm:$0xf]
      %v444 = vld [vmem:[%s185 + $0x4] sm:$0xf]
      %v447 = vunpack.c.l.b16 %v439
      %v448 = vunpack.c.l.b16 %v442
      %v449 = vpack.c.b16 %v448, %v447
      %v451 = vshrl.u32 %v449, 16
      %v453 = vshll.u32 %v449, 16
      %v455 = vrot.slane %v453, 1
      %v456 = vor.u32 %v451, %v455
      %v459 = vunpack.c.l.b16 %v443
      %v460 = vunpack.c.l.b16 %v444
      %v461 = vpack.c.b16 %v460, %v459
      %v464 = vsel %vm206, %v456, 0
      %466 = vmatprep.subr.bf16.mxu0 0
      %467 = vmatpush1.bf16.msra.mxu0 %v461
      %468 = vmatprep.subr.bf16.mxu0 0
      %469 = vmatpush1.bf16.msra.mxu0 0
      %470 = vmatprep.subr.bf16.mxu0 0
      %471 = vmatpush1.bf16.msra.mxu0 0
      %472 = vmatprep.subr.bf16.mxu0 0
      %473 = vmatpush1.bf16.msra.mxu0 0
      %474 = vmatprep.subr.bf16.mxu0 0
      %475 = vmatpush1.bf16.msra.mxu0 0
      %476 = vmatprep.subr.bf16.mxu0 0
      %477 = vmatpush1.bf16.msra.mxu0 0
      %478 = vmatprep.subr.bf16.mxu0 0
      %479 = vmatpush1.bf16.msra.mxu0 0
      %480 = vmatprep.subr.bf16.mxu0 0
      %481 = vmatpush1.bf16.msra.mxu0 0
      %482 = vmatprep.subr.bf16.mxu0 0
      %483 = vmatpush1.bf16.msra.mxu0 0
      %484 = vmatprep.subr.bf16.mxu0 0
      %485 = vmatpush1.bf16.msra.mxu0 0
      %486 = vmatprep.subr.bf16.mxu0 0
      %487 = vmatpush1.bf16.msra.mxu0 0
      %488 = vmatprep.subr.bf16.mxu0 0
      %489 = vmatpush1.bf16.msra.mxu0 0
      %490 = vmatprep.subr.bf16.mxu0 0
      %491 = vmatpush1.bf16.msra.mxu0 0
      %492 = vmatprep.subr.bf16.mxu0 0
      %493 = vmatpush1.bf16.msra.mxu0 0
      %494 = vmatprep.subr.bf16.mxu0 0
      %495 = vmatpush1.bf16.msra.mxu0 0
      %496 = vmatprep.subr.bf16.mxu0 0
      %497 = vmatpush1.bf16.msra.mxu0 0
      %498 = vmatprep.mubr.bf16.mxu0 0
      %499 = vmatmul.mubr.bf16.gmra.mrb[0].mxu0 %v464
      %v500 = vpop.f32.mrb[0].mxu0
      %v501 = vadd.f32 0.0, %v500
      %v502 = vpop.f32.mrb[0].mxu0
      %v503 = vpop.f32.mrb[0].mxu0
      %v504 = vpop.f32.mrb[0].mxu0
      %505 = vdwg.mxu0
      %v508 = vunpack.c.l.b16 %v440
      %v509 = vunpack.c.l.b16 %v441
      %v510 = vpack.c.b16 %v509, %v508
      %v513 = vsel %vm206, %v439, 0
      %515 = vmatprep.subr.bf16.mxu0 0
      %516 = vmatpush1.bf16.msra.mxu0 %v510
      %517 = vmatprep.subr.bf16.mxu0 0
      %518 = vmatpush1.bf16.msra.mxu0 0
      %519 = vmatprep.subr.bf16.mxu0 0
      %520 = vmatpush1.bf16.msra.mxu0 0
      %521 = vmatprep.subr.bf16.mxu0 0
      %522 = vmatpush1.bf16.msra.mxu0 0
      %523 = vmatprep.subr.bf16.mxu0 0
      %524 = vmatpush1.bf16.msra.mxu0 0
      %525 = vmatprep.subr.bf16.mxu0 0
      %526 = vmatpush1.bf16.msra.mxu0 0
      %527 = vmatprep.subr.bf16.mxu0 0
      %528 = vmatpush1.bf16.msra.mxu0 0
      %529 = vmatprep.subr.bf16.mxu0 0
      %530 = vmatpush1.bf16.msra.mxu0 0
      %531 = vmatprep.subr.bf16.mxu0 0
      %532 = vmatpush1.bf16.msra.mxu0 0
      %533 = vmatprep.subr.bf16.mxu0 0
      %534 = vmatpush1.bf16.msra.mxu0 0
      %535 = vmatprep.subr.bf16.mxu0 0
      %536 = vmatpush1.bf16.msra.mxu0 0
      %537 = vmatprep.subr.bf16.mxu0 0
      %538 = vmatpush1.bf16.msra.mxu0 0
      %539 = vmatprep.subr.bf16.mxu0 0
      %540 = vmatpush1.bf16.msra.mxu0 0
      %541 = vmatprep.subr.bf16.mxu0 0
      %542 = vmatpush1.bf16.msra.mxu0 0
      %543 = vmatprep.subr.bf16.mxu0 0
      %544 = vmatpush1.bf16.msra.mxu0 0
      %545 = vmatprep.subr.bf16.mxu0 0
      %546 = vmatpush1.bf16.msra.mxu0 0
      %547 = vmatprep.mubr.bf16.mxu0 0
      %548 = vmatmul.mubr.bf16.gmra.mrb[0].mxu0 %v513
      %v549 = vpop.f32.mrb[0].mxu0
      %v550 = vadd.f32 %v501, %v549
      %v551 = vpop.f32.mrb[0].mxu0
      %v552 = vpop.f32.mrb[0].mxu0
      %v553 = vpop.f32.mrb[0].mxu0
      %554 = vdwg.mxu0
      %s555 = sadd.s32 %s175, 2
      %s556 = smul.u32 %s555, 2
      %s557 = sadd.s32 %s556, %s177
      %s558 = smul.addr %s557, 4
      %s559 = scalar_lea.vmem %s0, %s558
      %v560 = vld [vmem:[%s559] sm:$0xf]
      %v561 = vld [vmem:[%s305] sm:$0xf]
      %v562 = vld [vmem:[%s305 + $0x4] sm:$0xf]
      %v565 = vunpack.c.l.b16 %v561
      %v566 = vunpack.c.l.b16 %v562
      %v567 = vpack.c.b16 %v566, %v565
      %v570 = vsel %vm206, %v560, 0
      %572 = vmatprep.subr.bf16.mxu0 0
      %573 = vmatpush1.bf16.msra.mxu0 %v567
      %574 = vmatprep.subr.bf16.mxu0 0
      %575 = vmatpush1.bf16.msra.mxu0 0
      %576 = vmatprep.subr.bf16.mxu0 0
      %577 = vmatpush1.bf16.msra.mxu0 0
      %578 = vmatprep.subr.bf16.mxu0 0
      %579 = vmatpush1.bf16.msra.mxu0 0
      %580 = vmatprep.subr.bf16.mxu0 0
      %581 = vmatpush1.bf16.msra.mxu0 0
      %582 = vmatprep.subr.bf16.mxu0 0
      %583 = vmatpush1.bf16.msra.mxu0 0
      %584 = vmatprep.subr.bf16.mxu0 0
      %585 = vmatpush1.bf16.msra.mxu0 0
      %586 = vmatprep.subr.bf16.mxu0 0
      %587 = vmatpush1.bf16.msra.mxu0 0
      %588 = vmatprep.subr.bf16.mxu0 0
      %589 = vmatpush1.bf16.msra.mxu0 0
      %590 = vmatprep.subr.bf16.mxu0 0
      %591 = vmatpush1.bf16.msra.mxu0 0
      %592 = vmatprep.subr.bf16.mxu0 0
      %593 = vmatpush1.bf16.msra.mxu0 0
      %594 = vmatprep.subr.bf16.mxu0 0
      %595 = vmatpush1.bf16.msra.mxu0 0
      %596 = vmatprep.subr.bf16.mxu0 0
      %597 = vmatpush1.bf16.msra.mxu0 0
      %598 = vmatprep.subr.bf16.mxu0 0
      %599 = vmatpush1.bf16.msra.mxu0 0
      %600 = vmatprep.subr.bf16.mxu0 0
      %601 = vmatpush1.bf16.msra.mxu0 0
      %602 = vmatprep.subr.bf16.mxu0 0
      %603 = vmatpush1.bf16.msra.mxu0 0
      %604 = vmatprep.mubr.bf16.mxu0 0
      %605 = vmatmul.mubr.bf16.gmra.mrb[0].mxu0 %v570
      %v606 = vpop.f32.mrb[0].mxu0
      %v607 = vadd.f32 0.0, %v606
      %v608 = vpop.f32.mrb[0].mxu0
      %v609 = vpop.f32.mrb[0].mxu0
      %v610 = vpop.f32.mrb[0].mxu0
      %611 = vdwg.mxu0
      %v612 = vadd.f32 %v550, %v607
      %v613 = vld [vmem:[%s559] sm:$0xf]
      %v614 = vld [vmem:[%s559 + $0x4] sm:$0x1]
      %v615 = vld [vmem:[%s360] sm:$0xf]
      %v616 = vld [vmem:[%s360 + $0x4] sm:$0xf]
      %v619 = vunpack.c.l.b16 %v613
      %v620 = vunpack.c.l.b16 %v614
      %v621 = vpack.c.b16 %v620, %v619
      %v623 = vshrl.u32 %v621, 16
      %v625 = vshll.u32 %v621, 16
      %v627 = vrot.slane %v625, 1
      %v628 = vor.u32 %v623, %v627
      %v631 = vunpack.c.l.b16 %v615
      %v632 = vunpack.c.l.b16 %v616
      %v633 = vpack.c.b16 %v632, %v631
      %v636 = vsel %vm206, %v628, 0
      %638 = vmatprep.subr.bf16.mxu0 0
      %639 = vmatpush1.bf16.msra.mxu0 %v633
      %640 = vmatprep.subr.bf16.mxu0 0
      %641 = vmatpush1.bf16.msra.mxu0 0
      %642 = vmatprep.subr.bf16.mxu0 0
      %643 = vmatpush1.bf16.msra.mxu0 0
      %644 = vmatprep.subr.bf16.mxu0 0
      %645 = vmatpush1.bf16.msra.mxu0 0
      %646 = vmatprep.subr.bf16.mxu0 0
      %647 = vmatpush1.bf16.msra.mxu0 0
      %648 = vmatprep.subr.bf16.mxu0 0
      %649 = vmatpush1.bf16.msra.mxu0 0
      %650 = vmatprep.subr.bf16.mxu0 0
      %651 = vmatpush1.bf16.msra.mxu0 0
      %652 = vmatprep.subr.bf16.mxu0 0
      %653 = vmatpush1.bf16.msra.mxu0 0
      %654 = vmatprep.subr.bf16.mxu0 0
      %655 = vmatpush1.bf16.msra.mxu0 0
      %656 = vmatprep.subr.bf16.mxu0 0
      %657 = vmatpush1.bf16.msra.mxu0 0
      %658 = vmatprep.subr.bf16.mxu0 0
      %659 = vmatpush1.bf16.msra.mxu0 0
      %660 = vmatprep.subr.bf16.mxu0 0
      %661 = vmatpush1.bf16.msra.mxu0 0
      %662 = vmatprep.subr.bf16.mxu0 0
      %663 = vmatpush1.bf16.msra.mxu0 0
      %664 = vmatprep.subr.bf16.mxu0 0
      %665 = vmatpush1.bf16.msra.mxu0 0
      %666 = vmatprep.subr.bf16.mxu0 0
      %667 = vmatpush1.bf16.msra.mxu0 0
      %668 = vmatprep.subr.bf16.mxu0 0
      %669 = vmatpush1.bf16.msra.mxu0 0
      %670 = vmatprep.mubr.bf16.mxu0 0
      %671 = vmatmul.mubr.bf16.gmra.mrb[0].mxu0 %v636
      %v672 = vpop.f32.mrb[0].mxu0
      %v673 = vadd.f32 0.0, %v672
      %v674 = vpop.f32.mrb[0].mxu0
      %v675 = vpop.f32.mrb[0].mxu0
      %v676 = vpop.f32.mrb[0].mxu0
      %677 = vdwg.mxu0
      %v678 = vadd.f32 %v612, %v673
      %v679 = vld [vmem:[%s2] sm:$0x1]
      %v681 = vlaneseq
      %v682 = vshrl.u32 %v681, 7
      %v683 = vsub.s32 0, %v682
      %v684 = vrot.slane %v679, %v683
      %v686 = vadd.f32 %v678, %v684
      %vm687 = vcmp.ge.f32.partialorder %v686, 0.0
      %v688 = vmul.f32 %v686, 0.01
      %v689 = vsel %vm687, %v686, %v688
      %v690 = vpack.c.bf16 %v689, %v689
      %s691 = scalar_lea.vmem %s172, 4
      %692 = vst.msk [vmem:[%s691] sm:$0xf] %vm437, %v690
      %v693 = vld [vmem:[%s559] sm:$0xf]
      %v694 = vld [vmem:[%s1] sm:$0xf]
      %v695 = vld [vmem:[%s1 + $0x4] sm:$0xf]
      %v696 = vld [vmem:[%s559 + $0x4] sm:$0x1]
      %v697 = vld [vmem:[%s185] sm:$0xf]
      %v698 = vld [vmem:[%s185 + $0x4] sm:$0xf]
      %v701 = vunpack.c.l.b16 %v693
      %v702 = vunpack.c.l.b16 %v696
      %v703 = vpack.c.b16 %v702, %v701
      %v705 = vshrl.u32 %v703, 16
      %v707 = vshll.u32 %v703, 16
      %v709 = vrot.slane %v707, 1
      %v710 = vor.u32 %v705, %v709
      %v713 = vunpack.c.l.b16 %v697
      %v714 = vunpack.c.l.b16 %v698
      %v715 = vpack.c.b16 %v714, %v713
      %v718 = vsel %vm206, %v710, 0
      %720 = vmatprep.subr.bf16.mxu0 0
      %721 = vmatpush1.bf16.msra.mxu0 %v715
      %722 = vmatprep.subr.bf16.mxu0 0
      %723 = vmatpush1.bf16.msra.mxu0 0
      %724 = vmatprep.subr.bf16.mxu0 0
      %725 = vmatpush1.bf16.msra.mxu0 0
      %726 = vmatprep.subr.bf16.mxu0 0
      %727 = vmatpush1.bf16.msra.mxu0 0
      %728 = vmatprep.subr.bf16.mxu0 0
      %729 = vmatpush1.bf16.msra.mxu0 0
      %730 = vmatprep.subr.bf16.mxu0 0
      %731 = vmatpush1.bf16.msra.mxu0 0
      %732 = vmatprep.subr.bf16.mxu0 0
      %733 = vmatpush1.bf16.msra.mxu0 0
      %734 = vmatprep.subr.bf16.mxu0 0
      %735 = vmatpush1.bf16.msra.mxu0 0
      %736 = vmatprep.subr.bf16.mxu0 0
      %737 = vmatpush1.bf16.msra.mxu0 0
      %738 = vmatprep.subr.bf16.mxu0 0
      %739 = vmatpush1.bf16.msra.mxu0 0
      %740 = vmatprep.subr.bf16.mxu0 0
      %741 = vmatpush1.bf16.msra.mxu0 0
      %742 = vmatprep.subr.bf16.mxu0 0
      %743 = vmatpush1.bf16.msra.mxu0 0
      %744 = vmatprep.subr.bf16.mxu0 0
      %745 = vmatpush1.bf16.msra.mxu0 0
      %746 = vmatprep.subr.bf16.mxu0 0
      %747 = vmatpush1.bf16.msra.mxu0 0
      %748 = vmatprep.subr.bf16.mxu0 0
      %749 = vmatpush1.bf16.msra.mxu0 0
      %750 = vmatprep.subr.bf16.mxu0 0
      %751 = vmatpush1.bf16.msra.mxu0 0
      %752 = vmatprep.mubr.bf16.mxu0 0
      %753 = vmatmul.mubr.bf16.gmra.mrb[0].mxu0 %v718
      %v754 = vpop.f32.mrb[0].mxu0
      %v755 = vadd.f32 0.0, %v754
      %v756 = vpop.f32.mrb[0].mxu0
      %v757 = vpop.f32.mrb[0].mxu0
      %v758 = vpop.f32.mrb[0].mxu0
      %759 = vdwg.mxu0
      %v762 = vunpack.c.l.b16 %v694
      %v763 = vunpack.c.l.b16 %v695
      %v764 = vpack.c.b16 %v763, %v762
      %v767 = vsel %vm206, %v693, 0
      %769 = vmatprep.subr.bf16.mxu0 0
      %770 = vmatpush1.bf16.msra.mxu0 %v764
      %771 = vmatprep.subr.bf16.mxu0 0
      %772 = vmatpush1.bf16.msra.mxu0 0
      %773 = vmatprep.subr.bf16.mxu0 0
      %774 = vmatpush1.bf16.msra.mxu0 0
      %775 = vmatprep.subr.bf16.mxu0 0
      %776 = vmatpush1.bf16.msra.mxu0 0
      %777 = vmatprep.subr.bf16.mxu0 0
      %778 = vmatpush1.bf16.msra.mxu0 0
      %779 = vmatprep.subr.bf16.mxu0 0
      %780 = vmatpush1.bf16.msra.mxu0 0
      %781 = vmatprep.subr.bf16.mxu0 0
      %782 = vmatpush1.bf16.msra.mxu0 0
      %783 = vmatprep.subr.bf16.mxu0 0
      %784 = vmatpush1.bf16.msra.mxu0 0
      %785 = vmatprep.subr.bf16.mxu0 0
      %786 = vmatpush1.bf16.msra.mxu0 0
      %787 = vmatprep.subr.bf16.mxu0 0
      %788 = vmatpush1.bf16.msra.mxu0 0
      %789 = vmatprep.subr.bf16.mxu0 0
      %790 = vmatpush1.bf16.msra.mxu0 0
      %791 = vmatprep.subr.bf16.mxu0 0
      %792 = vmatpush1.bf16.msra.mxu0 0
      %793 = vmatprep.subr.bf16.mxu0 0
      %794 = vmatpush1.bf16.msra.mxu0 0
      %795 = vmatprep.subr.bf16.mxu0 0
      %796 = vmatpush1.bf16.msra.mxu0 0
      %797 = vmatprep.subr.bf16.mxu0 0
      %798 = vmatpush1.bf16.msra.mxu0 0
      %799 = vmatprep.subr.bf16.mxu0 0
      %800 = vmatpush1.bf16.msra.mxu0 0
      %801 = vmatprep.mubr.bf16.mxu0 0
      %802 = vmatmul.mubr.bf16.gmra.mrb[0].mxu0 %v767
      %v803 = vpop.f32.mrb[0].mxu0
      %v804 = vadd.f32 %v755, %v803
      %v805 = vpop.f32.mrb[0].mxu0
      %v806 = vpop.f32.mrb[0].mxu0
      %v807 = vpop.f32.mrb[0].mxu0
      %808 = vdwg.mxu0
      %s809 = sadd.s32 %s175, 3
      %s810 = smul.u32 %s809, 2
      %s811 = sadd.s32 %s810, %s177
      %s812 = smul.addr %s811, 4
      %s813 = scalar_lea.vmem %s0, %s812
      %v814 = vld [vmem:[%s813] sm:$0xf]
      %v815 = vld [vmem:[%s305] sm:$0xf]
      %v816 = vld [vmem:[%s305 + $0x4] sm:$0xf]
      %v819 = vunpack.c.l.b16 %v815
      %v820 = vunpack.c.l.b16 %v816
      %v821 = vpack.c.b16 %v820, %v819
      %v824 = vsel %vm206, %v814, 0
      %826 = vmatprep.subr.bf16.mxu0 0
      %827 = vmatpush1.bf16.msra.mxu0 %v821
      %828 = vmatprep.subr.bf16.mxu0 0
      %829 = vmatpush1.bf16.msra.mxu0 0
      %830 = vmatprep.subr.bf16.mxu0 0
      %831 = vmatpush1.bf16.msra.mxu0 0
      %832 = vmatprep.subr.bf16.mxu0 0
      %833 = vmatpush1.bf16.msra.mxu0 0
      %834 = vmatprep.subr.bf16.mxu0 0
      %835 = vmatpush1.bf16.msra.mxu0 0
      %836 = vmatprep.subr.bf16.mxu0 0
      %837 = vmatpush1.bf16.msra.mxu0 0
      %838 = vmatprep.subr.bf16.mxu0 0
      %839 = vmatpush1.bf16.msra.mxu0 0
      %840 = vmatprep.subr.bf16.mxu0 0
      %841 = vmatpush1.bf16.msra.mxu0 0
      %842 = vmatprep.subr.bf16.mxu0 0
      %843 = vmatpush1.bf16.msra.mxu0 0
      %844 = vmatprep.subr.bf16.mxu0 0
      %845 = vmatpush1.bf16.msra.mxu0 0
      %846 = vmatprep.subr.bf16.mxu0 0
      %847 = vmatpush1.bf16.msra.mxu0 0
      %848 = vmatprep.subr.bf16.mxu0 0
      %849 = vmatpush1.bf16.msra.mxu0 0
      %850 = vmatprep.subr.bf16.mxu0 0
      %851 = vmatpush1.bf16.msra.mxu0 0
      %852 = vmatprep.subr.bf16.mxu0 0
      %853 = vmatpush1.bf16.msra.mxu0 0
      %854 = vmatprep.subr.bf16.mxu0 0
      %855 = vmatpush1.bf16.msra.mxu0 0
      %856 = vmatprep.subr.bf16.mxu0 0
      %857 = vmatpush1.bf16.msra.mxu0 0
      %858 = vmatprep.mubr.bf16.mxu0 0
      %859 = vmatmul.mubr.bf16.gmra.mrb[0].mxu0 %v824
      %v860 = vpop.f32.mrb[0].mxu0
      %v861 = vadd.f32 0.0, %v860
      %v862 = vpop.f32.mrb[0].mxu0
      %v863 = vpop.f32.mrb[0].mxu0
      %v864 = vpop.f32.mrb[0].mxu0
      %865 = vdwg.mxu0
      %v866 = vadd.f32 %v804, %v861
      %v867 = vld [vmem:[%s813] sm:$0xf]
      %v868 = vld [vmem:[%s813 + $0x4] sm:$0x1]
      %v869 = vld [vmem:[%s360] sm:$0xf]
      %v870 = vld [vmem:[%s360 + $0x4] sm:$0xf]
      %v873 = vunpack.c.l.b16 %v867
      %v874 = vunpack.c.l.b16 %v868
      %v875 = vpack.c.b16 %v874, %v873
      %v877 = vshrl.u32 %v875, 16
      %v879 = vshll.u32 %v875, 16
      %v881 = vrot.slane %v879, 1
      %v882 = vor.u32 %v877, %v881
      %v885 = vunpack.c.l.b16 %v869
      %v886 = vunpack.c.l.b16 %v870
      %v887 = vpack.c.b16 %v886, %v885
      %v890 = vsel %vm206, %v882, 0
      %892 = vmatprep.subr.bf16.mxu0 0
      %893 = vmatpush1.bf16.msra.mxu0 %v887
      %894 = vmatprep.subr.bf16.mxu0 0
      %895 = vmatpush1.bf16.msra.mxu0 0
      %896 = vmatprep.subr.bf16.mxu0 0
      %897 = vmatpush1.bf16.msra.mxu0 0
      %898 = vmatprep.subr.bf16.mxu0 0
      %899 = vmatpush1.bf16.msra.mxu0 0
      %900 = vmatprep.subr.bf16.mxu0 0
      %901 = vmatpush1.bf16.msra.mxu0 0
      %902 = vmatprep.subr.bf16.mxu0 0
      %903 = vmatpush1.bf16.msra.mxu0 0
      %904 = vmatprep.subr.bf16.mxu0 0
      %905 = vmatpush1.bf16.msra.mxu0 0
      %906 = vmatprep.subr.bf16.mxu0 0
      %907 = vmatpush1.bf16.msra.mxu0 0
      %908 = vmatprep.subr.bf16.mxu0 0
      %909 = vmatpush1.bf16.msra.mxu0 0
      %910 = vmatprep.subr.bf16.mxu0 0
      %911 = vmatpush1.bf16.msra.mxu0 0
      %912 = vmatprep.subr.bf16.mxu0 0
      %913 = vmatpush1.bf16.msra.mxu0 0
      %914 = vmatprep.subr.bf16.mxu0 0
      %915 = vmatpush1.bf16.msra.mxu0 0
      %916 = vmatprep.subr.bf16.mxu0 0
      %917 = vmatpush1.bf16.msra.mxu0 0
      %918 = vmatprep.subr.bf16.mxu0 0
      %919 = vmatpush1.bf16.msra.mxu0 0
      %920 = vmatprep.subr.bf16.mxu0 0
      %921 = vmatpush1.bf16.msra.mxu0 0
      %922 = vmatprep.subr.bf16.mxu0 0
      %923 = vmatpush1.bf16.msra.mxu0 0
      %924 = vmatprep.mubr.bf16.mxu0 0
      %925 = vmatmul.mubr.bf16.gmra.mrb[0].mxu0 %v890
      %v926 = vpop.f32.mrb[0].mxu0
      %v927 = vadd.f32 0.0, %v926
      %v928 = vpop.f32.mrb[0].mxu0
      %v929 = vpop.f32.mrb[0].mxu0
      %v930 = vpop.f32.mrb[0].mxu0
      %931 = vdwg.mxu0
      %v932 = vadd.f32 %v866, %v927
      %v933 = vld [vmem:[%s2] sm:$0x1]
      %v935 = vlaneseq
      %v936 = vshrl.u32 %v935, 7
      %v937 = vsub.s32 0, %v936
      %v938 = vrot.slane %v933, %v937
      %v940 = vadd.f32 %v932, %v938
      %vm941 = vcmp.ge.f32.partialorder %v940, 0.0
      %v942 = vmul.f32 %v940, 0.01
      %v943 = vsel %vm941, %v940, %v942
      %v944 = vpack.c.bf16 %v943, %v943
      %s945 = scalar_lea.vmem %s172, 8
      %946 = vst.msk [vmem:[%s945] sm:$0xf] %vm437, %v944
      %v947 = vld [vmem:[%s813] sm:$0xf]
      %v948 = vld [vmem:[%s1] sm:$0xf]
      %v949 = vld [vmem:[%s1 + $0x4] sm:$0xf]
      %v950 = vld [vmem:[%s813 + $0x4] sm:$0x1]
      %v951 = vld [vmem:[%s185] sm:$0xf]
      %v952 = vld [vmem:[%s185 + $0x4] sm:$0xf]
      %v955 = vunpack.c.l.b16 %v947
      %v956 = vunpack.c.l.b16 %v950
      %v957 = vpack.c.b16 %v956, %v955
      %v959 = vshrl.u32 %v957, 16
      %v961 = vshll.u32 %v957, 16
      %v963 = vrot.slane %v961, 1
      %v964 = vor.u32 %v959, %v963
      %v967 = vunpack.c.l.b16 %v951
      %v968 = vunpack.c.l.b16 %v952
      %v969 = vpack.c.b16 %v968, %v967
      %v972 = vsel %vm206, %v964, 0
      %974 = vmatprep.subr.bf16.mxu0 0
      %975 = vmatpush1.bf16.msra.mxu0 %v969
      %976 = vmatprep.subr.bf16.mxu0 0
      %977 = vmatpush1.bf16.msra.mxu0 0
      %978 = vmatprep.subr.bf16.mxu0 0
      %979 = vmatpush1.bf16.msra.mxu0 0
      %980 = vmatprep.subr.bf16.mxu0 0
      %981 = vmatpush1.bf16.msra.mxu0 0
      %982 = vmatprep.subr.bf16.mxu0 0
      %983 = vmatpush1.bf16.msra.mxu0 0
      %984 = vmatprep.subr.bf16.mxu0 0
      %985 = vmatpush1.bf16.msra.mxu0 0
      %986 = vmatprep.subr.bf16.mxu0 0
      %987 = vmatpush1.bf16.msra.mxu0 0
      %988 = vmatprep.subr.bf16.mxu0 0
      %989 = vmatpush1.bf16.msra.mxu0 0
      %990 = vmatprep.subr.bf16.mxu0 0
      %991 = vmatpush1.bf16.msra.mxu0 0
      %992 = vmatprep.subr.bf16.mxu0 0
      %993 = vmatpush1.bf16.msra.mxu0 0
      %994 = vmatprep.subr.bf16.mxu0 0
      %995 = vmatpush1.bf16.msra.mxu0 0
      %996 = vmatprep.subr.bf16.mxu0 0
      %997 = vmatpush1.bf16.msra.mxu0 0
      %998 = vmatprep.subr.bf16.mxu0 0
      %999 = vmatpush1.bf16.msra.mxu0 0
      %1000 = vmatprep.subr.bf16.mxu0 0
      %1001 = vmatpush1.bf16.msra.mxu0 0
      %1002 = vmatprep.subr.bf16.mxu0 0
      %1003 = vmatpush1.bf16.msra.mxu0 0
      %1004 = vmatprep.subr.bf16.mxu0 0
      %1005 = vmatpush1.bf16.msra.mxu0 0
      %1006 = vmatprep.mubr.bf16.mxu0 0
      %1007 = vmatmul.mubr.bf16.gmra.mrb[0].mxu0 %v972
      %v1008 = vpop.f32.mrb[0].mxu0
      %v1009 = vadd.f32 0.0, %v1008
      %v1010 = vpop.f32.mrb[0].mxu0
      %v1011 = vpop.f32.mrb[0].mxu0
      %v1012 = vpop.f32.mrb[0].mxu0
      %1013 = vdwg.mxu0
      %v1016 = vunpack.c.l.b16 %v948
      %v1017 = vunpack.c.l.b16 %v949
      %v1018 = vpack.c.b16 %v1017, %v1016
      %v1021 = vsel %vm206, %v947, 0
      %1023 = vmatprep.subr.bf16.mxu0 0
      %1024 = vmatpush1.bf16.msra.mxu0 %v1018
      %1025 = vmatprep.subr.bf16.mxu0 0
      %1026 = vmatpush1.bf16.msra.mxu0 0
      %1027 = vmatprep.subr.bf16.mxu0 0
      %1028 = vmatpush1.bf16.msra.mxu0 0
      %1029 = vmatprep.subr.bf16.mxu0 0
      %1030 = vmatpush1.bf16.msra.mxu0 0
      %1031 = vmatprep.subr.bf16.mxu0 0
      %1032 = vmatpush1.bf16.msra.mxu0 0
      %1033 = vmatprep.subr.bf16.mxu0 0
      %1034 = vmatpush1.bf16.msra.mxu0 0
      %1035 = vmatprep.subr.bf16.mxu0 0
      %1036 = vmatpush1.bf16.msra.mxu0 0
      %1037 = vmatprep.subr.bf16.mxu0 0
      %1038 = vmatpush1.bf16.msra.mxu0 0
      %1039 = vmatprep.subr.bf16.mxu0 0
      %1040 = vmatpush1.bf16.msra.mxu0 0
      %1041 = vmatprep.subr.bf16.mxu0 0
      %1042 = vmatpush1.bf16.msra.mxu0 0
      %1043 = vmatprep.subr.bf16.mxu0 0
      %1044 = vmatpush1.bf16.msra.mxu0 0
      %1045 = vmatprep.subr.bf16.mxu0 0
      %1046 = vmatpush1.bf16.msra.mxu0 0
      %1047 = vmatprep.subr.bf16.mxu0 0
      %1048 = vmatpush1.bf16.msra.mxu0 0
      %1049 = vmatprep.subr.bf16.mxu0 0
      %1050 = vmatpush1.bf16.msra.mxu0 0
      %1051 = vmatprep.subr.bf16.mxu0 0
      %1052 = vmatpush1.bf16.msra.mxu0 0
      %1053 = vmatprep.subr.bf16.mxu0 0
      %1054 = vmatpush1.bf16.msra.mxu0 0
      %1055 = vmatprep.mubr.bf16.mxu0 0
      %1056 = vmatmul.mubr.bf16.gmra.mrb[0].mxu0 %v1021
      %v1057 = vpop.f32.mrb[0].mxu0
      %v1058 = vadd.f32 %v1009, %v1057
      %v1059 = vpop.f32.mrb[0].mxu0
      %v1060 = vpop.f32.mrb[0].mxu0
      %v1061 = vpop.f32.mrb[0].mxu0
      %1062 = vdwg.mxu0
      %s1063 = sadd.s32 %s175, 4
      %s1064 = smul.u32 %s1063, 2
      %s1065 = sadd.s32 %s1064, %s177
      %s1066 = smul.addr %s1065, 4
      %s1067 = scalar_lea.vmem %s0, %s1066
      %v1068 = vld [vmem:[%s1067] sm:$0xf]
      %v1069 = vld [vmem:[%s305] sm:$0xf]
      %v1070 = vld [vmem:[%s305 + $0x4] sm:$0xf]
      %v1073 = vunpack.c.l.b16 %v1069
      %v1074 = vunpack.c.l.b16 %v1070
      %v1075 = vpack.c.b16 %v1074, %v1073
      %v1078 = vsel %vm206, %v1068, 0
      %1080 = vmatprep.subr.bf16.mxu0 0
      %1081 = vmatpush1.bf16.msra.mxu0 %v1075
      %1082 = vmatprep.subr.bf16.mxu0 0
      %1083 = vmatpush1.bf16.msra.mxu0 0
      %1084 = vmatprep.subr.bf16.mxu0 0
      %1085 = vmatpush1.bf16.msra.mxu0 0
      %1086 = vmatprep.subr.bf16.mxu0 0
      %1087 = vmatpush1.bf16.msra.mxu0 0
      %1088 = vmatprep.subr.bf16.mxu0 0
      %1089 = vmatpush1.bf16.msra.mxu0 0
      %1090 = vmatprep.subr.bf16.mxu0 0
      %1091 = vmatpush1.bf16.msra.mxu0 0
      %1092 = vmatprep.subr.bf16.mxu0 0
      %1093 = vmatpush1.bf16.msra.mxu0 0
      %1094 = vmatprep.subr.bf16.mxu0 0
      %1095 = vmatpush1.bf16.msra.mxu0 0
      %1096 = vmatprep.subr.bf16.mxu0 0
      %1097 = vmatpush1.bf16.msra.mxu0 0
      %1098 = vmatprep.subr.bf16.mxu0 0
      %1099 = vmatpush1.bf16.msra.mxu0 0
      %1100 = vmatprep.subr.bf16.mxu0 0
      %1101 = vmatpush1.bf16.msra.mxu0 0
      %1102 = vmatprep.subr.bf16.mxu0 0
      %1103 = vmatpush1.bf16.msra.mxu0 0
      %1104 = vmatprep.subr.bf16.mxu0 0
      %1105 = vmatpush1.bf16.msra.mxu0 0
      %1106 = vmatprep.subr.bf16.mxu0 0
      %1107 = vmatpush1.bf16.msra.mxu0 0
      %1108 = vmatprep.subr.bf16.mxu0 0
      %1109 = vmatpush1.bf16.msra.mxu0 0
      %1110 = vmatprep.subr.bf16.mxu0 0
      %1111 = vmatpush1.bf16.msra.mxu0 0
      %1112 = vmatprep.mubr.bf16.mxu0 0
      %1113 = vmatmul.mubr.bf16.gmra.mrb[0].mxu0 %v1078
      %v1114 = vpop.f32.mrb[0].mxu0
      %v1115 = vadd.f32 0.0, %v1114
      %v1116 = vpop.f32.mrb[0].mxu0
      %v1117 = vpop.f32.mrb[0].mxu0
      %v1118 = vpop.f32.mrb[0].mxu0
      %1119 = vdwg.mxu0
      %v1120 = vadd.f32 %v1058, %v1115
      %v1121 = vld [vmem:[%s1067] sm:$0xf]
      %v1122 = vld [vmem:[%s1067 + $0x4] sm:$0x1]
      %v1123 = vld [vmem:[%s360] sm:$0xf]
      %v1124 = vld [vmem:[%s360 + $0x4] sm:$0xf]
      %v1127 = vunpack.c.l.b16 %v1121
      %v1128 = vunpack.c.l.b16 %v1122
      %v1129 = vpack.c.b16 %v1128, %v1127
      %v1131 = vshrl.u32 %v1129, 16
      %v1133 = vshll.u32 %v1129, 16
      %v1135 = vrot.slane %v1133, 1
      %v1136 = vor.u32 %v1131, %v1135
      %v1139 = vunpack.c.l.b16 %v1123
      %v1140 = vunpack.c.l.b16 %v1124
      %v1141 = vpack.c.b16 %v1140, %v1139
      %v1144 = vsel %vm206, %v1136, 0
      %1146 = vmatprep.subr.bf16.mxu0 0
      %1147 = vmatpush1.bf16.msra.mxu0 %v1141
      %1148 = vmatprep.subr.bf16.mxu0 0
      %1149 = vmatpush1.bf16.msra.mxu0 0
      %1150 = vmatprep.subr.bf16.mxu0 0
      %1151 = vmatpush1.bf16.msra.mxu0 0
      %1152 = vmatprep.subr.bf16.mxu0 0
      %1153 = vmatpush1.bf16.msra.mxu0 0
      %1154 = vmatprep.subr.bf16.mxu0 0
      %1155 = vmatpush1.bf16.msra.mxu0 0
      %1156 = vmatprep.subr.bf16.mxu0 0
      %1157 = vmatpush1.bf16.msra.mxu0 0
      %1158 = vmatprep.subr.bf16.mxu0 0
      %1159 = vmatpush1.bf16.msra.mxu0 0
      %1160 = vmatprep.subr.bf16.mxu0 0
      %1161 = vmatpush1.bf16.msra.mxu0 0
      %1162 = vmatprep.subr.bf16.mxu0 0
      %1163 = vmatpush1.bf16.msra.mxu0 0
      %1164 = vmatprep.subr.bf16.mxu0 0
      %1165 = vmatpush1.bf16.msra.mxu0 0
      %1166 = vmatprep.subr.bf16.mxu0 0
      %1167 = vmatpush1.bf16.msra.mxu0 0
      %1168 = vmatprep.subr.bf16.mxu0 0
      %1169 = vmatpush1.bf16.msra.mxu0 0
      %1170 = vmatprep.subr.bf16.mxu0 0
      %1171 = vmatpush1.bf16.msra.mxu0 0
      %1172 = vmatprep.subr.bf16.mxu0 0
      %1173 = vmatpush1.bf16.msra.mxu0 0
      %1174 = vmatprep.subr.bf16.mxu0 0
      %1175 = vmatpush1.bf16.msra.mxu0 0
      %1176 = vmatprep.subr.bf16.mxu0 0
      %1177 = vmatpush1.bf16.msra.mxu0 0
      %1178 = vmatprep.mubr.bf16.mxu0 0
      %1179 = vmatmul.mubr.bf16.gmra.mrb[0].mxu0 %v1144
      %v1180 = vpop.f32.mrb[0].mxu0
      %v1181 = vadd.f32 0.0, %v1180
      %v1182 = vpop.f32.mrb[0].mxu0
      %v1183 = vpop.f32.mrb[0].mxu0
      %v1184 = vpop.f32.mrb[0].mxu0
      %1185 = vdwg.mxu0
      %v1186 = vadd.f32 %v1120, %v1181
      %v1187 = vld [vmem:[%s2] sm:$0x1]
      %v1189 = vlaneseq
      %v1190 = vshrl.u32 %v1189, 7
      %v1191 = vsub.s32 0, %v1190
      %v1192 = vrot.slane %v1187, %v1191
      %v1194 = vadd.f32 %v1186, %v1192
      %vm1195 = vcmp.ge.f32.partialorder %v1194, 0.0
      %v1196 = vmul.f32 %v1194, 0.01
      %v1197 = vsel %vm1195, %v1194, %v1196
      %v1198 = vpack.c.bf16 %v1197, %v1197
      %s1199 = scalar_lea.vmem %s172, 12
      %1200 = vst.msk [vmem:[%s1199] sm:$0xf] %vm437, %v1198
      %v1201 = vld [vmem:[%s1067] sm:$0xf]
      %v1202 = vld [vmem:[%s1] sm:$0xf]
      %v1203 = vld [vmem:[%s1 + $0x4] sm:$0xf]
      %v1204 = vld [vmem:[%s1067 + $0x4] sm:$0x1]
      %v1205 = vld [vmem:[%s185] sm:$0xf]
      %v1206 = vld [vmem:[%s185 + $0x4] sm:$0xf]
      %v1209 = vunpack.c.l.b16 %v1201
      %v1210 = vunpack.c.l.b16 %v1204
      %v1211 = vpack.c.b16 %v1210, %v1209
      %v1213 = vshrl.u32 %v1211, 16
      %v1215 = vshll.u32 %v1211, 16
      %v1217 = vrot.slane %v1215, 1
      %v1218 = vor.u32 %v1213, %v1217
      %v1221 = vunpack.c.l.b16 %v1205
      %v1222 = vunpack.c.l.b16 %v1206
      %v1223 = vpack.c.b16 %v1222, %v1221
      %v1226 = vsel %vm206, %v1218, 0
      %1228 = vmatprep.subr.bf16.mxu0 0
      %1229 = vmatpush1.bf16.msra.mxu0 %v1223
      %1230 = vmatprep.subr.bf16.mxu0 0
      %1231 = vmatpush1.bf16.msra.mxu0 0
      %1232 = vmatprep.subr.bf16.mxu0 0
      %1233 = vmatpush1.bf16.msra.mxu0 0
      %1234 = vmatprep.subr.bf16.mxu0 0
      %1235 = vmatpush1.bf16.msra.mxu0 0
      %1236 = vmatprep.subr.bf16.mxu0 0
      %1237 = vmatpush1.bf16.msra.mxu0 0
      %1238 = vmatprep.subr.bf16.mxu0 0
      %1239 = vmatpush1.bf16.msra.mxu0 0
      %1240 = vmatprep.subr.bf16.mxu0 0
      %1241 = vmatpush1.bf16.msra.mxu0 0
      %1242 = vmatprep.subr.bf16.mxu0 0
      %1243 = vmatpush1.bf16.msra.mxu0 0
      %1244 = vmatprep.subr.bf16.mxu0 0
      %1245 = vmatpush1.bf16.msra.mxu0 0
      %1246 = vmatprep.subr.bf16.mxu0 0
      %1247 = vmatpush1.bf16.msra.mxu0 0
      %1248 = vmatprep.subr.bf16.mxu0 0
      %1249 = vmatpush1.bf16.msra.mxu0 0
      %1250 = vmatprep.subr.bf16.mxu0 0
      %1251 = vmatpush1.bf16.msra.mxu0 0
      %1252 = vmatprep.subr.bf16.mxu0 0
      %1253 = vmatpush1.bf16.msra.mxu0 0
      %1254 = vmatprep.subr.bf16.mxu0 0
      %1255 = vmatpush1.bf16.msra.mxu0 0
      %1256 = vmatprep.subr.bf16.mxu0 0
      %1257 = vmatpush1.bf16.msra.mxu0 0
      %1258 = vmatprep.subr.bf16.mxu0 0
      %1259 = vmatpush1.bf16.msra.mxu0 0
      %1260 = vmatprep.mubr.bf16.mxu0 0
      %1261 = vmatmul.mubr.bf16.gmra.mrb[0].mxu0 %v1226
      %v1262 = vpop.f32.mrb[0].mxu0
      %v1263 = vadd.f32 0.0, %v1262
      %v1264 = vpop.f32.mrb[0].mxu0
      %v1265 = vpop.f32.mrb[0].mxu0
      %v1266 = vpop.f32.mrb[0].mxu0
      %1267 = vdwg.mxu0
      %v1270 = vunpack.c.l.b16 %v1202
      %v1271 = vunpack.c.l.b16 %v1203
      %v1272 = vpack.c.b16 %v1271, %v1270
      %v1275 = vsel %vm206, %v1201, 0
      %1277 = vmatprep.subr.bf16.mxu0 0
      %1278 = vmatpush1.bf16.msra.mxu0 %v1272
      %1279 = vmatprep.subr.bf16.mxu0 0
      %1280 = vmatpush1.bf16.msra.mxu0 0
      %1281 = vmatprep.subr.bf16.mxu0 0
      %1282 = vmatpush1.bf16.msra.mxu0 0
      %1283 = vmatprep.subr.bf16.mxu0 0
      %1284 = vmatpush1.bf16.msra.mxu0 0
      %1285 = vmatprep.subr.bf16.mxu0 0
      %1286 = vmatpush1.bf16.msra.mxu0 0
      %1287 = vmatprep.subr.bf16.mxu0 0
      %1288 = vmatpush1.bf16.msra.mxu0 0
      %1289 = vmatprep.subr.bf16.mxu0 0
      %1290 = vmatpush1.bf16.msra.mxu0 0
      %1291 = vmatprep.subr.bf16.mxu0 0
      %1292 = vmatpush1.bf16.msra.mxu0 0
      %1293 = vmatprep.subr.bf16.mxu0 0
      %1294 = vmatpush1.bf16.msra.mxu0 0
      %1295 = vmatprep.subr.bf16.mxu0 0
      %1296 = vmatpush1.bf16.msra.mxu0 0
      %1297 = vmatprep.subr.bf16.mxu0 0
      %1298 = vmatpush1.bf16.msra.mxu0 0
      %1299 = vmatprep.subr.bf16.mxu0 0
      %1300 = vmatpush1.bf16.msra.mxu0 0
      %1301 = vmatprep.subr.bf16.mxu0 0
      %1302 = vmatpush1.bf16.msra.mxu0 0
      %1303 = vmatprep.subr.bf16.mxu0 0
      %1304 = vmatpush1.bf16.msra.mxu0 0
      %1305 = vmatprep.subr.bf16.mxu0 0
      %1306 = vmatpush1.bf16.msra.mxu0 0
      %1307 = vmatprep.subr.bf16.mxu0 0
      %1308 = vmatpush1.bf16.msra.mxu0 0
      %1309 = vmatprep.mubr.bf16.mxu0 0
      %1310 = vmatmul.mubr.bf16.gmra.mrb[0].mxu0 %v1275
      %v1311 = vpop.f32.mrb[0].mxu0
      %v1312 = vadd.f32 %v1263, %v1311
      %v1313 = vpop.f32.mrb[0].mxu0
      %v1314 = vpop.f32.mrb[0].mxu0
      %v1315 = vpop.f32.mrb[0].mxu0
      %1316 = vdwg.mxu0
      %s1317 = sadd.s32 %s175, 5
      %s1318 = smul.u32 %s1317, 2
      %s1319 = sadd.s32 %s1318, %s177
      %s1320 = smul.addr %s1319, 4
      %s1321 = scalar_lea.vmem %s0, %s1320
      %v1322 = vld [vmem:[%s1321] sm:$0xf]
      %v1323 = vld [vmem:[%s305] sm:$0xf]
      %v1324 = vld [vmem:[%s305 + $0x4] sm:$0xf]
      %v1327 = vunpack.c.l.b16 %v1323
      %v1328 = vunpack.c.l.b16 %v1324
      %v1329 = vpack.c.b16 %v1328, %v1327
      %v1332 = vsel %vm206, %v1322, 0
      %1334 = vmatprep.subr.bf16.mxu0 0
      %1335 = vmatpush1.bf16.msra.mxu0 %v1329
      %1336 = vmatprep.subr.bf16.mxu0 0
      %1337 = vmatpush1.bf16.msra.mxu0 0
      %1338 = vmatprep.subr.bf16.mxu0 0
      %1339 = vmatpush1.bf16.msra.mxu0 0
      %1340 = vmatprep.subr.bf16.mxu0 0
      %1341 = vmatpush1.bf16.msra.mxu0 0
      %1342 = vmatprep.subr.bf16.mxu0 0
      %1343 = vmatpush1.bf16.msra.mxu0 0
      %1344 = vmatprep.subr.bf16.mxu0 0
      %1345 = vmatpush1.bf16.msra.mxu0 0
      %1346 = vmatprep.subr.bf16.mxu0 0
      %1347 = vmatpush1.bf16.msra.mxu0 0
      %1348 = vmatprep.subr.bf16.mxu0 0
      %1349 = vmatpush1.bf16.msra.mxu0 0
      %1350 = vmatprep.subr.bf16.mxu0 0
      %1351 = vmatpush1.bf16.msra.mxu0 0
      %1352 = vmatprep.subr.bf16.mxu0 0
      %1353 = vmatpush1.bf16.msra.mxu0 0
      %1354 = vmatprep.subr.bf16.mxu0 0
      %1355 = vmatpush1.bf16.msra.mxu0 0
      %1356 = vmatprep.subr.bf16.mxu0 0
      %1357 = vmatpush1.bf16.msra.mxu0 0
      %1358 = vmatprep.subr.bf16.mxu0 0
      %1359 = vmatpush1.bf16.msra.mxu0 0
      %1360 = vmatprep.subr.bf16.mxu0 0
      %1361 = vmatpush1.bf16.msra.mxu0 0
      %1362 = vmatprep.subr.bf16.mxu0 0
      %1363 = vmatpush1.bf16.msra.mxu0 0
      %1364 = vmatprep.subr.bf16.mxu0 0
      %1365 = vmatpush1.bf16.msra.mxu0 0
      %1366 = vmatprep.mubr.bf16.mxu0 0
      %1367 = vmatmul.mubr.bf16.gmra.mrb[0].mxu0 %v1332
      %v1368 = vpop.f32.mrb[0].mxu0
      %v1369 = vadd.f32 0.0, %v1368
      %v1370 = vpop.f32.mrb[0].mxu0
      %v1371 = vpop.f32.mrb[0].mxu0
      %v1372 = vpop.f32.mrb[0].mxu0
      %1373 = vdwg.mxu0
      %v1374 = vadd.f32 %v1312, %v1369
      %v1375 = vld [vmem:[%s1321] sm:$0xf]
      %v1376 = vld [vmem:[%s1321 + $0x4] sm:$0x1]
      %v1377 = vld [vmem:[%s360] sm:$0xf]
      %v1378 = vld [vmem:[%s360 + $0x4] sm:$0xf]
      %v1381 = vunpack.c.l.b16 %v1375
      %v1382 = vunpack.c.l.b16 %v1376
      %v1383 = vpack.c.b16 %v1382, %v1381
      %v1385 = vshrl.u32 %v1383, 16
      %v1387 = vshll.u32 %v1383, 16
      %v1389 = vrot.slane %v1387, 1
      %v1390 = vor.u32 %v1385, %v1389
      %v1393 = vunpack.c.l.b16 %v1377
      %v1394 = vunpack.c.l.b16 %v1378
      %v1395 = vpack.c.b16 %v1394, %v1393
      %v1398 = vsel %vm206, %v1390, 0
      %1400 = vmatprep.subr.bf16.mxu0 0
      %1401 = vmatpush1.bf16.msra.mxu0 %v1395
      %1402 = vmatprep.subr.bf16.mxu0 0
      %1403 = vmatpush1.bf16.msra.mxu0 0
      %1404 = vmatprep.subr.bf16.mxu0 0
      %1405 = vmatpush1.bf16.msra.mxu0 0
      %1406 = vmatprep.subr.bf16.mxu0 0
      %1407 = vmatpush1.bf16.msra.mxu0 0
      %1408 = vmatprep.subr.bf16.mxu0 0
      %1409 = vmatpush1.bf16.msra.mxu0 0
      %1410 = vmatprep.subr.bf16.mxu0 0
      %1411 = vmatpush1.bf16.msra.mxu0 0
      %1412 = vmatprep.subr.bf16.mxu0 0
      %1413 = vmatpush1.bf16.msra.mxu0 0
      %1414 = vmatprep.subr.bf16.mxu0 0
      %1415 = vmatpush1.bf16.msra.mxu0 0
      %1416 = vmatprep.subr.bf16.mxu0 0
      %1417 = vmatpush1.bf16.msra.mxu0 0
      %1418 = vmatprep.subr.bf16.mxu0 0
      %1419 = vmatpush1.bf16.msra.mxu0 0
      %1420 = vmatprep.subr.bf16.mxu0 0
      %1421 = vmatpush1.bf16.msra.mxu0 0
      %1422 = vmatprep.subr.bf16.mxu0 0
      %1423 = vmatpush1.bf16.msra.mxu0 0
      %1424 = vmatprep.subr.bf16.mxu0 0
      %1425 = vmatpush1.bf16.msra.mxu0 0
      %1426 = vmatprep.subr.bf16.mxu0 0
      %1427 = vmatpush1.bf16.msra.mxu0 0
      %1428 = vmatprep.subr.bf16.mxu0 0
      %1429 = vmatpush1.bf16.msra.mxu0 0
      %1430 = vmatprep.subr.bf16.mxu0 0
      %1431 = vmatpush1.bf16.msra.mxu0 0
      %1432 = vmatprep.mubr.bf16.mxu0 0
      %1433 = vmatmul.mubr.bf16.gmra.mrb[0].mxu0 %v1398
      %v1434 = vpop.f32.mrb[0].mxu0
      %v1435 = vadd.f32 0.0, %v1434
      %v1436 = vpop.f32.mrb[0].mxu0
      %v1437 = vpop.f32.mrb[0].mxu0
      %v1438 = vpop.f32.mrb[0].mxu0
      %1439 = vdwg.mxu0
      %v1440 = vadd.f32 %v1374, %v1435
      %v1441 = vld [vmem:[%s2] sm:$0x1]
      %v1443 = vlaneseq
      %v1444 = vshrl.u32 %v1443, 7
      %v1445 = vsub.s32 0, %v1444
      %v1446 = vrot.slane %v1441, %v1445
      %v1448 = vadd.f32 %v1440, %v1446
      %vm1449 = vcmp.ge.f32.partialorder %v1448, 0.0
      %v1450 = vmul.f32 %v1448, 0.01
      %v1451 = vsel %vm1449, %v1448, %v1450
      %v1452 = vpack.c.bf16 %v1451, %v1451
      %s1453 = scalar_lea.vmem %s172, 16
      %1454 = vst.msk [vmem:[%s1453] sm:$0xf] %vm437, %v1452
      %v1455 = vld [vmem:[%s1321] sm:$0xf]
      %v1456 = vld [vmem:[%s1] sm:$0xf]
      %v1457 = vld [vmem:[%s1 + $0x4] sm:$0xf]
      %v1458 = vld [vmem:[%s1321 + $0x4] sm:$0x1]
      %v1459 = vld [vmem:[%s185] sm:$0xf]
      %v1460 = vld [vmem:[%s185 + $0x4] sm:$0xf]
      %v1463 = vunpack.c.l.b16 %v1455
      %v1464 = vunpack.c.l.b16 %v1458
      %v1465 = vpack.c.b16 %v1464, %v1463
      %v1467 = vshrl.u32 %v1465, 16
      %v1469 = vshll.u32 %v1465, 16
      %v1471 = vrot.slane %v1469, 1
      %v1472 = vor.u32 %v1467, %v1471
      %v1475 = vunpack.c.l.b16 %v1459
      %v1476 = vunpack.c.l.b16 %v1460
      %v1477 = vpack.c.b16 %v1476, %v1475
      %v1480 = vsel %vm206, %v1472, 0
      %1482 = vmatprep.subr.bf16.mxu0 0
      %1483 = vmatpush1.bf16.msra.mxu0 %v1477
      %1484 = vmatprep.subr.bf16.mxu0 0
      %1485 = vmatpush1.bf16.msra.mxu0 0
      %1486 = vmatprep.subr.bf16.mxu0 0
      %1487 = vmatpush1.bf16.msra.mxu0 0
      %1488 = vmatprep.subr.bf16.mxu0 0
      %1489 = vmatpush1.bf16.msra.mxu0 0
      %1490 = vmatprep.subr.bf16.mxu0 0
      %1491 = vmatpush1.bf16.msra.mxu0 0
      %1492 = vmatprep.subr.bf16.mxu0 0
      %1493 = vmatpush1.bf16.msra.mxu0 0
      %1494 = vmatprep.subr.bf16.mxu0 0
      %1495 = vmatpush1.bf16.msra.mxu0 0
      %1496 = vmatprep.subr.bf16.mxu0 0
      %1497 = vmatpush1.bf16.msra.mxu0 0
      %1498 = vmatprep.subr.bf16.mxu0 0
      %1499 = vmatpush1.bf16.msra.mxu0 0
      %1500 = vmatprep.subr.bf16.mxu0 0
      %1501 = vmatpush1.bf16.msra.mxu0 0
      %1502 = vmatprep.subr.bf16.mxu0 0
      %1503 = vmatpush1.bf16.msra.mxu0 0
      %1504 = vmatprep.subr.bf16.mxu0 0
      %1505 = vmatpush1.bf16.msra.mxu0 0
      %1506 = vmatprep.subr.bf16.mxu0 0
      %1507 = vmatpush1.bf16.msra.mxu0 0
      %1508 = vmatprep.subr.bf16.mxu0 0
      %1509 = vmatpush1.bf16.msra.mxu0 0
      %1510 = vmatprep.subr.bf16.mxu0 0
      %1511 = vmatpush1.bf16.msra.mxu0 0
      %1512 = vmatprep.subr.bf16.mxu0 0
      %1513 = vmatpush1.bf16.msra.mxu0 0
      %1514 = vmatprep.mubr.bf16.mxu0 0
      %1515 = vmatmul.mubr.bf16.gmra.mrb[0].mxu0 %v1480
      %v1516 = vpop.f32.mrb[0].mxu0
      %v1517 = vadd.f32 0.0, %v1516
      %v1518 = vpop.f32.mrb[0].mxu0
      %v1519 = vpop.f32.mrb[0].mxu0
      %v1520 = vpop.f32.mrb[0].mxu0
      %1521 = vdwg.mxu0
      %v1524 = vunpack.c.l.b16 %v1456
      %v1525 = vunpack.c.l.b16 %v1457
      %v1526 = vpack.c.b16 %v1525, %v1524
      %v1529 = vsel %vm206, %v1455, 0
      %1531 = vmatprep.subr.bf16.mxu0 0
      %1532 = vmatpush1.bf16.msra.mxu0 %v1526
      %1533 = vmatprep.subr.bf16.mxu0 0
      %1534 = vmatpush1.bf16.msra.mxu0 0
      %1535 = vmatprep.subr.bf16.mxu0 0
      %1536 = vmatpush1.bf16.msra.mxu0 0
      %1537 = vmatprep.subr.bf16.mxu0 0
      %1538 = vmatpush1.bf16.msra.mxu0 0
      %1539 = vmatprep.subr.bf16.mxu0 0
      %1540 = vmatpush1.bf16.msra.mxu0 0
      %1541 = vmatprep.subr.bf16.mxu0 0
      %1542 = vmatpush1.bf16.msra.mxu0 0
      %1543 = vmatprep.subr.bf16.mxu0 0
      %1544 = vmatpush1.bf16.msra.mxu0 0
      %1545 = vmatprep.subr.bf16.mxu0 0
      %1546 = vmatpush1.bf16.msra.mxu0 0
      %1547 = vmatprep.subr.bf16.mxu0 0
      %1548 = vmatpush1.bf16.msra.mxu0 0
      %1549 = vmatprep.subr.bf16.mxu0 0
      %1550 = vmatpush1.bf16.msra.mxu0 0
      %1551 = vmatprep.subr.bf16.mxu0 0
      %1552 = vmatpush1.bf16.msra.mxu0 0
      %1553 = vmatprep.subr.bf16.mxu0 0
      %1554 = vmatpush1.bf16.msra.mxu0 0
      %1555 = vmatprep.subr.bf16.mxu0 0
      %1556 = vmatpush1.bf16.msra.mxu0 0
      %1557 = vmatprep.subr.bf16.mxu0 0
      %1558 = vmatpush1.bf16.msra.mxu0 0
      %1559 = vmatprep.subr.bf16.mxu0 0
      %1560 = vmatpush1.bf16.msra.mxu0 0
      %1561 = vmatprep.subr.bf16.mxu0 0
      %1562 = vmatpush1.bf16.msra.mxu0 0
      %1563 = vmatprep.mubr.bf16.mxu0 0
      %1564 = vmatmul.mubr.bf16.gmra.mrb[0].mxu0 %v1529
      %v1565 = vpop.f32.mrb[0].mxu0
      %v1566 = vadd.f32 %v1517, %v1565
      %v1567 = vpop.f32.mrb[0].mxu0
      %v1568 = vpop.f32.mrb[0].mxu0
      %v1569 = vpop.f32.mrb[0].mxu0
      %1570 = vdwg.mxu0
      %s1571 = sadd.s32 %s175, 6
      %s1572 = smul.u32 %s1571, 2
      %s1573 = sadd.s32 %s1572, %s177
      %s1574 = smul.addr %s1573, 4
      %s1575 = scalar_lea.vmem %s0, %s1574
      %v1576 = vld [vmem:[%s1575] sm:$0xf]
      %v1577 = vld [vmem:[%s305] sm:$0xf]
      %v1578 = vld [vmem:[%s305 + $0x4] sm:$0xf]
      %v1581 = vunpack.c.l.b16 %v1577
      %v1582 = vunpack.c.l.b16 %v1578
      %v1583 = vpack.c.b16 %v1582, %v1581
      %v1586 = vsel %vm206, %v1576, 0
      %1588 = vmatprep.subr.bf16.mxu0 0
      %1589 = vmatpush1.bf16.msra.mxu0 %v1583
      %1590 = vmatprep.subr.bf16.mxu0 0
      %1591 = vmatpush1.bf16.msra.mxu0 0
      %1592 = vmatprep.subr.bf16.mxu0 0
      %1593 = vmatpush1.bf16.msra.mxu0 0
      %1594 = vmatprep.subr.bf16.mxu0 0
      %1595 = vmatpush1.bf16.msra.mxu0 0
      %1596 = vmatprep.subr.bf16.mxu0 0
      %1597 = vmatpush1.bf16.msra.mxu0 0
      %1598 = vmatprep.subr.bf16.mxu0 0
      %1599 = vmatpush1.bf16.msra.mxu0 0
      %1600 = vmatprep.subr.bf16.mxu0 0
      %1601 = vmatpush1.bf16.msra.mxu0 0
      %1602 = vmatprep.subr.bf16.mxu0 0
      %1603 = vmatpush1.bf16.msra.mxu0 0
      %1604 = vmatprep.subr.bf16.mxu0 0
      %1605 = vmatpush1.bf16.msra.mxu0 0
      %1606 = vmatprep.subr.bf16.mxu0 0
      %1607 = vmatpush1.bf16.msra.mxu0 0
      %1608 = vmatprep.subr.bf16.mxu0 0
      %1609 = vmatpush1.bf16.msra.mxu0 0
      %1610 = vmatprep.subr.bf16.mxu0 0
      %1611 = vmatpush1.bf16.msra.mxu0 0
      %1612 = vmatprep.subr.bf16.mxu0 0
      %1613 = vmatpush1.bf16.msra.mxu0 0
      %1614 = vmatprep.subr.bf16.mxu0 0
      %1615 = vmatpush1.bf16.msra.mxu0 0
      %1616 = vmatprep.subr.bf16.mxu0 0
      %1617 = vmatpush1.bf16.msra.mxu0 0
      %1618 = vmatprep.subr.bf16.mxu0 0
      %1619 = vmatpush1.bf16.msra.mxu0 0
      %1620 = vmatprep.mubr.bf16.mxu0 0
      %1621 = vmatmul.mubr.bf16.gmra.mrb[0].mxu0 %v1586
      %v1622 = vpop.f32.mrb[0].mxu0
      %v1623 = vadd.f32 0.0, %v1622
      %v1624 = vpop.f32.mrb[0].mxu0
      %v1625 = vpop.f32.mrb[0].mxu0
      %v1626 = vpop.f32.mrb[0].mxu0
      %1627 = vdwg.mxu0
      %v1628 = vadd.f32 %v1566, %v1623
      %v1629 = vld [vmem:[%s1575] sm:$0xf]
      %v1630 = vld [vmem:[%s1575 + $0x4] sm:$0x1]
      %v1631 = vld [vmem:[%s360] sm:$0xf]
      %v1632 = vld [vmem:[%s360 + $0x4] sm:$0xf]
      %v1635 = vunpack.c.l.b16 %v1629
      %v1636 = vunpack.c.l.b16 %v1630
      %v1637 = vpack.c.b16 %v1636, %v1635
      %v1639 = vshrl.u32 %v1637, 16
      %v1641 = vshll.u32 %v1637, 16
      %v1643 = vrot.slane %v1641, 1
      %v1644 = vor.u32 %v1639, %v1643
      %v1647 = vunpack.c.l.b16 %v1631
      %v1648 = vunpack.c.l.b16 %v1632
      %v1649 = vpack.c.b16 %v1648, %v1647
      %v1652 = vsel %vm206, %v1644, 0
      %1654 = vmatprep.subr.bf16.mxu0 0
      %1655 = vmatpush1.bf16.msra.mxu0 %v1649
      %1656 = vmatprep.subr.bf16.mxu0 0
      %1657 = vmatpush1.bf16.msra.mxu0 0
      %1658 = vmatprep.subr.bf16.mxu0 0
      %1659 = vmatpush1.bf16.msra.mxu0 0
      %1660 = vmatprep.subr.bf16.mxu0 0
      %1661 = vmatpush1.bf16.msra.mxu0 0
      %1662 = vmatprep.subr.bf16.mxu0 0
      %1663 = vmatpush1.bf16.msra.mxu0 0
      %1664 = vmatprep.subr.bf16.mxu0 0
      %1665 = vmatpush1.bf16.msra.mxu0 0
      %1666 = vmatprep.subr.bf16.mxu0 0
      %1667 = vmatpush1.bf16.msra.mxu0 0
      %1668 = vmatprep.subr.bf16.mxu0 0
      %1669 = vmatpush1.bf16.msra.mxu0 0
      %1670 = vmatprep.subr.bf16.mxu0 0
      %1671 = vmatpush1.bf16.msra.mxu0 0
      %1672 = vmatprep.subr.bf16.mxu0 0
      %1673 = vmatpush1.bf16.msra.mxu0 0
      %1674 = vmatprep.subr.bf16.mxu0 0
      %1675 = vmatpush1.bf16.msra.mxu0 0
      %1676 = vmatprep.subr.bf16.mxu0 0
      %1677 = vmatpush1.bf16.msra.mxu0 0
      %1678 = vmatprep.subr.bf16.mxu0 0
      %1679 = vmatpush1.bf16.msra.mxu0 0
      %1680 = vmatprep.subr.bf16.mxu0 0
      %1681 = vmatpush1.bf16.msra.mxu0 0
      %1682 = vmatprep.subr.bf16.mxu0 0
      %1683 = vmatpush1.bf16.msra.mxu0 0
      %1684 = vmatprep.subr.bf16.mxu0 0
      %1685 = vmatpush1.bf16.msra.mxu0 0
      %1686 = vmatprep.mubr.bf16.mxu0 0
      %1687 = vmatmul.mubr.bf16.gmra.mrb[0].mxu0 %v1652
      %v1688 = vpop.f32.mrb[0].mxu0
      %v1689 = vadd.f32 0.0, %v1688
      %v1690 = vpop.f32.mrb[0].mxu0
      %v1691 = vpop.f32.mrb[0].mxu0
      %v1692 = vpop.f32.mrb[0].mxu0
      %1693 = vdwg.mxu0
      %v1694 = vadd.f32 %v1628, %v1689
      %v1695 = vld [vmem:[%s2] sm:$0x1]
      %v1697 = vlaneseq
      %v1698 = vshrl.u32 %v1697, 7
      %v1699 = vsub.s32 0, %v1698
      %v1700 = vrot.slane %v1695, %v1699
      %v1702 = vadd.f32 %v1694, %v1700
      %vm1703 = vcmp.ge.f32.partialorder %v1702, 0.0
      %v1704 = vmul.f32 %v1702, 0.01
      %v1705 = vsel %vm1703, %v1702, %v1704
      %v1706 = vpack.c.bf16 %v1705, %v1705
      %s1707 = scalar_lea.vmem %s172, 20
      %1708 = vst.msk [vmem:[%s1707] sm:$0xf] %vm437, %v1706
      %v1709 = vld [vmem:[%s1575] sm:$0xf]
      %v1710 = vld [vmem:[%s1] sm:$0xf]
      %v1711 = vld [vmem:[%s1 + $0x4] sm:$0xf]
      %v1712 = vld [vmem:[%s1575 + $0x4] sm:$0x1]
      %v1713 = vld [vmem:[%s185] sm:$0xf]
      %v1714 = vld [vmem:[%s185 + $0x4] sm:$0xf]
      %v1717 = vunpack.c.l.b16 %v1709
      %v1718 = vunpack.c.l.b16 %v1712
      %v1719 = vpack.c.b16 %v1718, %v1717
      %v1721 = vshrl.u32 %v1719, 16
      %v1723 = vshll.u32 %v1719, 16
      %v1725 = vrot.slane %v1723, 1
      %v1726 = vor.u32 %v1721, %v1725
      %v1729 = vunpack.c.l.b16 %v1713
      %v1730 = vunpack.c.l.b16 %v1714
      %v1731 = vpack.c.b16 %v1730, %v1729
      %v1734 = vsel %vm206, %v1726, 0
      %1736 = vmatprep.subr.bf16.mxu0 0
      %1737 = vmatpush1.bf16.msra.mxu0 %v1731
      %1738 = vmatprep.subr.bf16.mxu0 0
      %1739 = vmatpush1.bf16.msra.mxu0 0
      %1740 = vmatprep.subr.bf16.mxu0 0
      %1741 = vmatpush1.bf16.msra.mxu0 0
      %1742 = vmatprep.subr.bf16.mxu0 0
      %1743 = vmatpush1.bf16.msra.mxu0 0
      %1744 = vmatprep.subr.bf16.mxu0 0
      %1745 = vmatpush1.bf16.msra.mxu0 0
      %1746 = vmatprep.subr.bf16.mxu0 0
      %1747 = vmatpush1.bf16.msra.mxu0 0
      %1748 = vmatprep.subr.bf16.mxu0 0
      %1749 = vmatpush1.bf16.msra.mxu0 0
      %1750 = vmatprep.subr.bf16.mxu0 0
      %1751 = vmatpush1.bf16.msra.mxu0 0
      %1752 = vmatprep.subr.bf16.mxu0 0
      %1753 = vmatpush1.bf16.msra.mxu0 0
      %1754 = vmatprep.subr.bf16.mxu0 0
      %1755 = vmatpush1.bf16.msra.mxu0 0
      %1756 = vmatprep.subr.bf16.mxu0 0
      %1757 = vmatpush1.bf16.msra.mxu0 0
      %1758 = vmatprep.subr.bf16.mxu0 0
      %1759 = vmatpush1.bf16.msra.mxu0 0
      %1760 = vmatprep.subr.bf16.mxu0 0
      %1761 = vmatpush1.bf16.msra.mxu0 0
      %1762 = vmatprep.subr.bf16.mxu0 0
      %1763 = vmatpush1.bf16.msra.mxu0 0
      %1764 = vmatprep.subr.bf16.mxu0 0
      %1765 = vmatpush1.bf16.msra.mxu0 0
      %1766 = vmatprep.subr.bf16.mxu0 0
      %1767 = vmatpush1.bf16.msra.mxu0 0
      %1768 = vmatprep.mubr.bf16.mxu0 0
      %1769 = vmatmul.mubr.bf16.gmra.mrb[0].mxu0 %v1734
      %v1770 = vpop.f32.mrb[0].mxu0
      %v1771 = vadd.f32 0.0, %v1770
      %v1772 = vpop.f32.mrb[0].mxu0
      %v1773 = vpop.f32.mrb[0].mxu0
      %v1774 = vpop.f32.mrb[0].mxu0
      %1775 = vdwg.mxu0
      %v1778 = vunpack.c.l.b16 %v1710
      %v1779 = vunpack.c.l.b16 %v1711
      %v1780 = vpack.c.b16 %v1779, %v1778
      %v1783 = vsel %vm206, %v1709, 0
      %1785 = vmatprep.subr.bf16.mxu0 0
      %1786 = vmatpush1.bf16.msra.mxu0 %v1780
      %1787 = vmatprep.subr.bf16.mxu0 0
      %1788 = vmatpush1.bf16.msra.mxu0 0
      %1789 = vmatprep.subr.bf16.mxu0 0
      %1790 = vmatpush1.bf16.msra.mxu0 0
      %1791 = vmatprep.subr.bf16.mxu0 0
      %1792 = vmatpush1.bf16.msra.mxu0 0
      %1793 = vmatprep.subr.bf16.mxu0 0
      %1794 = vmatpush1.bf16.msra.mxu0 0
      %1795 = vmatprep.subr.bf16.mxu0 0
      %1796 = vmatpush1.bf16.msra.mxu0 0
      %1797 = vmatprep.subr.bf16.mxu0 0
      %1798 = vmatpush1.bf16.msra.mxu0 0
      %1799 = vmatprep.subr.bf16.mxu0 0
      %1800 = vmatpush1.bf16.msra.mxu0 0
      %1801 = vmatprep.subr.bf16.mxu0 0
      %1802 = vmatpush1.bf16.msra.mxu0 0
      %1803 = vmatprep.subr.bf16.mxu0 0
      %1804 = vmatpush1.bf16.msra.mxu0 0
      %1805 = vmatprep.subr.bf16.mxu0 0
      %1806 = vmatpush1.bf16.msra.mxu0 0
      %1807 = vmatprep.subr.bf16.mxu0 0
      %1808 = vmatpush1.bf16.msra.mxu0 0
      %1809 = vmatprep.subr.bf16.mxu0 0
      %1810 = vmatpush1.bf16.msra.mxu0 0
      %1811 = vmatprep.subr.bf16.mxu0 0
      %1812 = vmatpush1.bf16.msra.mxu0 0
      %1813 = vmatprep.subr.bf16.mxu0 0
      %1814 = vmatpush1.bf16.msra.mxu0 0
      %1815 = vmatprep.subr.bf16.mxu0 0
      %1816 = vmatpush1.bf16.msra.mxu0 0
      %1817 = vmatprep.mubr.bf16.mxu0 0
      %1818 = vmatmul.mubr.bf16.gmra.mrb[0].mxu0 %v1783
      %v1819 = vpop.f32.mrb[0].mxu0
      %v1820 = vadd.f32 %v1771, %v1819
      %v1821 = vpop.f32.mrb[0].mxu0
      %v1822 = vpop.f32.mrb[0].mxu0
      %v1823 = vpop.f32.mrb[0].mxu0
      %1824 = vdwg.mxu0
      %s1825 = sadd.s32 %s175, 7
      %s1826 = smul.u32 %s1825, 2
      %s1827 = sadd.s32 %s1826, %s177
      %s1828 = smul.addr %s1827, 4
      %s1829 = scalar_lea.vmem %s0, %s1828
      %v1830 = vld [vmem:[%s1829] sm:$0xf]
      %v1831 = vld [vmem:[%s305] sm:$0xf]
      %v1832 = vld [vmem:[%s305 + $0x4] sm:$0xf]
      %v1835 = vunpack.c.l.b16 %v1831
      %v1836 = vunpack.c.l.b16 %v1832
      %v1837 = vpack.c.b16 %v1836, %v1835
      %v1840 = vsel %vm206, %v1830, 0
      %1842 = vmatprep.subr.bf16.mxu0 0
      %1843 = vmatpush1.bf16.msra.mxu0 %v1837
      %1844 = vmatprep.subr.bf16.mxu0 0
      %1845 = vmatpush1.bf16.msra.mxu0 0
      %1846 = vmatprep.subr.bf16.mxu0 0
      %1847 = vmatpush1.bf16.msra.mxu0 0
      %1848 = vmatprep.subr.bf16.mxu0 0
      %1849 = vmatpush1.bf16.msra.mxu0 0
      %1850 = vmatprep.subr.bf16.mxu0 0
      %1851 = vmatpush1.bf16.msra.mxu0 0
      %1852 = vmatprep.subr.bf16.mxu0 0
      %1853 = vmatpush1.bf16.msra.mxu0 0
      %1854 = vmatprep.subr.bf16.mxu0 0
      %1855 = vmatpush1.bf16.msra.mxu0 0
      %1856 = vmatprep.subr.bf16.mxu0 0
      %1857 = vmatpush1.bf16.msra.mxu0 0
      %1858 = vmatprep.subr.bf16.mxu0 0
      %1859 = vmatpush1.bf16.msra.mxu0 0
      %1860 = vmatprep.subr.bf16.mxu0 0
      %1861 = vmatpush1.bf16.msra.mxu0 0
      %1862 = vmatprep.subr.bf16.mxu0 0
      %1863 = vmatpush1.bf16.msra.mxu0 0
      %1864 = vmatprep.subr.bf16.mxu0 0
      %1865 = vmatpush1.bf16.msra.mxu0 0
      %1866 = vmatprep.subr.bf16.mxu0 0
      %1867 = vmatpush1.bf16.msra.mxu0 0
      %1868 = vmatprep.subr.bf16.mxu0 0
      %1869 = vmatpush1.bf16.msra.mxu0 0
      %1870 = vmatprep.subr.bf16.mxu0 0
      %1871 = vmatpush1.bf16.msra.mxu0 0
      %1872 = vmatprep.subr.bf16.mxu0 0
      %1873 = vmatpush1.bf16.msra.mxu0 0
      %1874 = vmatprep.mubr.bf16.mxu0 0
      %1875 = vmatmul.mubr.bf16.gmra.mrb[0].mxu0 %v1840
      %v1876 = vpop.f32.mrb[0].mxu0
      %v1877 = vadd.f32 0.0, %v1876
      %v1878 = vpop.f32.mrb[0].mxu0
      %v1879 = vpop.f32.mrb[0].mxu0
      %v1880 = vpop.f32.mrb[0].mxu0
      %1881 = vdwg.mxu0
      %v1882 = vadd.f32 %v1820, %v1877
      %v1883 = vld [vmem:[%s1829] sm:$0xf]
      %v1884 = vld [vmem:[%s1829 + $0x4] sm:$0x1]
      %v1885 = vld [vmem:[%s360] sm:$0xf]
      %v1886 = vld [vmem:[%s360 + $0x4] sm:$0xf]
      %v1889 = vunpack.c.l.b16 %v1883
      %v1890 = vunpack.c.l.b16 %v1884
      %v1891 = vpack.c.b16 %v1890, %v1889
      %v1893 = vshrl.u32 %v1891, 16
      %v1895 = vshll.u32 %v1891, 16
      %v1897 = vrot.slane %v1895, 1
      %v1898 = vor.u32 %v1893, %v1897
      %v1901 = vunpack.c.l.b16 %v1885
      %v1902 = vunpack.c.l.b16 %v1886
      %v1903 = vpack.c.b16 %v1902, %v1901
      %v1906 = vsel %vm206, %v1898, 0
      %1908 = vmatprep.subr.bf16.mxu0 0
      %1909 = vmatpush1.bf16.msra.mxu0 %v1903
      %1910 = vmatprep.subr.bf16.mxu0 0
      %1911 = vmatpush1.bf16.msra.mxu0 0
      %1912 = vmatprep.subr.bf16.mxu0 0
      %1913 = vmatpush1.bf16.msra.mxu0 0
      %1914 = vmatprep.subr.bf16.mxu0 0
      %1915 = vmatpush1.bf16.msra.mxu0 0
      %1916 = vmatprep.subr.bf16.mxu0 0
      %1917 = vmatpush1.bf16.msra.mxu0 0
      %1918 = vmatprep.subr.bf16.mxu0 0
      %1919 = vmatpush1.bf16.msra.mxu0 0
      %1920 = vmatprep.subr.bf16.mxu0 0
      %1921 = vmatpush1.bf16.msra.mxu0 0
      %1922 = vmatprep.subr.bf16.mxu0 0
      %1923 = vmatpush1.bf16.msra.mxu0 0
      %1924 = vmatprep.subr.bf16.mxu0 0
      %1925 = vmatpush1.bf16.msra.mxu0 0
      %1926 = vmatprep.subr.bf16.mxu0 0
      %1927 = vmatpush1.bf16.msra.mxu0 0
      %1928 = vmatprep.subr.bf16.mxu0 0
      %1929 = vmatpush1.bf16.msra.mxu0 0
      %1930 = vmatprep.subr.bf16.mxu0 0
      %1931 = vmatpush1.bf16.msra.mxu0 0
      %1932 = vmatprep.subr.bf16.mxu0 0
      %1933 = vmatpush1.bf16.msra.mxu0 0
      %1934 = vmatprep.subr.bf16.mxu0 0
      %1935 = vmatpush1.bf16.msra.mxu0 0
      %1936 = vmatprep.subr.bf16.mxu0 0
      %1937 = vmatpush1.bf16.msra.mxu0 0
      %1938 = vmatprep.subr.bf16.mxu0 0
      %1939 = vmatpush1.bf16.msra.mxu0 0
      %1940 = vmatprep.mubr.bf16.mxu0 0
      %1941 = vmatmul.mubr.bf16.gmra.mrb[0].mxu0 %v1906
      %v1942 = vpop.f32.mrb[0].mxu0
      %v1943 = vadd.f32 0.0, %v1942
      %v1944 = vpop.f32.mrb[0].mxu0
      %v1945 = vpop.f32.mrb[0].mxu0
      %v1946 = vpop.f32.mrb[0].mxu0
      %1947 = vdwg.mxu0
      %v1948 = vadd.f32 %v1882, %v1943
      %v1949 = vld [vmem:[%s2] sm:$0x1]
      %v1951 = vlaneseq
      %v1952 = vshrl.u32 %v1951, 7
      %v1953 = vsub.s32 0, %v1952
      %v1954 = vrot.slane %v1949, %v1953
      %v1956 = vadd.f32 %v1948, %v1954
      %vm1957 = vcmp.ge.f32.partialorder %v1956, 0.0
      %v1958 = vmul.f32 %v1956, 0.01
      %v1959 = vsel %vm1957, %v1956, %v1958
      %v1960 = vpack.c.bf16 %v1959, %v1959
      %s1961 = scalar_lea.vmem %s172, 24
      %1962 = vst.msk [vmem:[%s1961] sm:$0xf] %vm437, %v1960
      %v1963 = vld [vmem:[%s1829] sm:$0xf]
      %v1964 = vld [vmem:[%s1] sm:$0xf]
      %v1965 = vld [vmem:[%s1 + $0x4] sm:$0xf]
      %v1966 = vld [vmem:[%s1829 + $0x4] sm:$0x1]
      %v1967 = vld [vmem:[%s185] sm:$0xf]
      %v1968 = vld [vmem:[%s185 + $0x4] sm:$0xf]
      %v1971 = vunpack.c.l.b16 %v1963
      %v1972 = vunpack.c.l.b16 %v1966
      %v1973 = vpack.c.b16 %v1972, %v1971
      %v1975 = vshrl.u32 %v1973, 16
      %v1977 = vshll.u32 %v1973, 16
      %v1979 = vrot.slane %v1977, 1
      %v1980 = vor.u32 %v1975, %v1979
      %v1983 = vunpack.c.l.b16 %v1967
      %v1984 = vunpack.c.l.b16 %v1968
      %v1985 = vpack.c.b16 %v1984, %v1983
      %v1988 = vsel %vm206, %v1980, 0
      %1990 = vmatprep.subr.bf16.mxu0 0
      %1991 = vmatpush1.bf16.msra.mxu0 %v1985
      %1992 = vmatprep.subr.bf16.mxu0 0
      %1993 = vmatpush1.bf16.msra.mxu0 0
      %1994 = vmatprep.subr.bf16.mxu0 0
      %1995 = vmatpush1.bf16.msra.mxu0 0
      %1996 = vmatprep.subr.bf16.mxu0 0
      %1997 = vmatpush1.bf16.msra.mxu0 0
      %1998 = vmatprep.subr.bf16.mxu0 0
      %1999 = vmatpush1.bf16.msra.mxu0 0
      %2000 = vmatprep.subr.bf16.mxu0 0
      %2001 = vmatpush1.bf16.msra.mxu0 0
      %2002 = vmatprep.subr.bf16.mxu0 0
      %2003 = vmatpush1.bf16.msra.mxu0 0
      %2004 = vmatprep.subr.bf16.mxu0 0
      %2005 = vmatpush1.bf16.msra.mxu0 0
      %2006 = vmatprep.subr.bf16.mxu0 0
      %2007 = vmatpush1.bf16.msra.mxu0 0
      %2008 = vmatprep.subr.bf16.mxu0 0
      %2009 = vmatpush1.bf16.msra.mxu0 0
      %2010 = vmatprep.subr.bf16.mxu0 0
      %2011 = vmatpush1.bf16.msra.mxu0 0
      %2012 = vmatprep.subr.bf16.mxu0 0
      %2013 = vmatpush1.bf16.msra.mxu0 0
      %2014 = vmatprep.subr.bf16.mxu0 0
      %2015 = vmatpush1.bf16.msra.mxu0 0
      %2016 = vmatprep.subr.bf16.mxu0 0
      %2017 = vmatpush1.bf16.msra.mxu0 0
      %2018 = vmatprep.subr.bf16.mxu0 0
      %2019 = vmatpush1.bf16.msra.mxu0 0
      %2020 = vmatprep.subr.bf16.mxu0 0
      %2021 = vmatpush1.bf16.msra.mxu0 0
      %2022 = vmatprep.mubr.bf16.mxu0 0
      %2023 = vmatmul.mubr.bf16.gmra.mrb[0].mxu0 %v1988
      %v2024 = vpop.f32.mrb[0].mxu0
      %v2025 = vadd.f32 0.0, %v2024
      %v2026 = vpop.f32.mrb[0].mxu0
      %v2027 = vpop.f32.mrb[0].mxu0
      %v2028 = vpop.f32.mrb[0].mxu0
      %2029 = vdwg.mxu0
      %v2032 = vunpack.c.l.b16 %v1964
      %v2033 = vunpack.c.l.b16 %v1965
      %v2034 = vpack.c.b16 %v2033, %v2032
      %v2037 = vsel %vm206, %v1963, 0
      %2039 = vmatprep.subr.bf16.mxu0 0
      %2040 = vmatpush1.bf16.msra.mxu0 %v2034
      %2041 = vmatprep.subr.bf16.mxu0 0
      %2042 = vmatpush1.bf16.msra.mxu0 0
      %2043 = vmatprep.subr.bf16.mxu0 0
      %2044 = vmatpush1.bf16.msra.mxu0 0
      %2045 = vmatprep.subr.bf16.mxu0 0
      %2046 = vmatpush1.bf16.msra.mxu0 0
      %2047 = vmatprep.subr.bf16.mxu0 0
      %2048 = vmatpush1.bf16.msra.mxu0 0
      %2049 = vmatprep.subr.bf16.mxu0 0
      %2050 = vmatpush1.bf16.msra.mxu0 0
      %2051 = vmatprep.subr.bf16.mxu0 0
      %2052 = vmatpush1.bf16.msra.mxu0 0
      %2053 = vmatprep.subr.bf16.mxu0 0
      %2054 = vmatpush1.bf16.msra.mxu0 0
      %2055 = vmatprep.subr.bf16.mxu0 0
      %2056 = vmatpush1.bf16.msra.mxu0 0
      %2057 = vmatprep.subr.bf16.mxu0 0
      %2058 = vmatpush1.bf16.msra.mxu0 0
      %2059 = vmatprep.subr.bf16.mxu0 0
      %2060 = vmatpush1.bf16.msra.mxu0 0
      %2061 = vmatprep.subr.bf16.mxu0 0
      %2062 = vmatpush1.bf16.msra.mxu0 0
      %2063 = vmatprep.subr.bf16.mxu0 0
      %2064 = vmatpush1.bf16.msra.mxu0 0
      %2065 = vmatprep.subr.bf16.mxu0 0
      %2066 = vmatpush1.bf16.msra.mxu0 0
      %2067 = vmatprep.subr.bf16.mxu0 0
      %2068 = vmatpush1.bf16.msra.mxu0 0
      %2069 = vmatprep.subr.bf16.mxu0 0
      %2070 = vmatpush1.bf16.msra.mxu0 0
      %2071 = vmatprep.mubr.bf16.mxu0 0
      %2072 = vmatmul.mubr.bf16.gmra.mrb[0].mxu0 %v2037
      %v2073 = vpop.f32.mrb[0].mxu0
      %v2074 = vadd.f32 %v2025, %v2073
      %v2075 = vpop.f32.mrb[0].mxu0
      %v2076 = vpop.f32.mrb[0].mxu0
      %v2077 = vpop.f32.mrb[0].mxu0
      %2078 = vdwg.mxu0
      %s2079 = sadd.s32 %s175, 8
      %s2080 = smul.u32 %s2079, 2
      %s2081 = sadd.s32 %s2080, %s177
      %s2082 = smul.addr %s2081, 4
      %s2083 = scalar_lea.vmem %s0, %s2082
      %v2084 = vld [vmem:[%s2083] sm:$0xf]
      %v2085 = vld [vmem:[%s305] sm:$0xf]
      %v2086 = vld [vmem:[%s305 + $0x4] sm:$0xf]
      %v2089 = vunpack.c.l.b16 %v2085
      %v2090 = vunpack.c.l.b16 %v2086
      %v2091 = vpack.c.b16 %v2090, %v2089
      %v2094 = vsel %vm206, %v2084, 0
      %2096 = vmatprep.subr.bf16.mxu0 0
      %2097 = vmatpush1.bf16.msra.mxu0 %v2091
      %2098 = vmatprep.subr.bf16.mxu0 0
      %2099 = vmatpush1.bf16.msra.mxu0 0
      %2100 = vmatprep.subr.bf16.mxu0 0
      %2101 = vmatpush1.bf16.msra.mxu0 0
      %2102 = vmatprep.subr.bf16.mxu0 0
      %2103 = vmatpush1.bf16.msra.mxu0 0
      %2104 = vmatprep.subr.bf16.mxu0 0
      %2105 = vmatpush1.bf16.msra.mxu0 0
      %2106 = vmatprep.subr.bf16.mxu0 0
      %2107 = vmatpush1.bf16.msra.mxu0 0
      %2108 = vmatprep.subr.bf16.mxu0 0
      %2109 = vmatpush1.bf16.msra.mxu0 0
      %2110 = vmatprep.subr.bf16.mxu0 0
      %2111 = vmatpush1.bf16.msra.mxu0 0
      %2112 = vmatprep.subr.bf16.mxu0 0
      %2113 = vmatpush1.bf16.msra.mxu0 0
      %2114 = vmatprep.subr.bf16.mxu0 0
      %2115 = vmatpush1.bf16.msra.mxu0 0
      %2116 = vmatprep.subr.bf16.mxu0 0
      %2117 = vmatpush1.bf16.msra.mxu0 0
      %2118 = vmatprep.subr.bf16.mxu0 0
      %2119 = vmatpush1.bf16.msra.mxu0 0
      %2120 = vmatprep.subr.bf16.mxu0 0
      %2121 = vmatpush1.bf16.msra.mxu0 0
      %2122 = vmatprep.subr.bf16.mxu0 0
      %2123 = vmatpush1.bf16.msra.mxu0 0
      %2124 = vmatprep.subr.bf16.mxu0 0
      %2125 = vmatpush1.bf16.msra.mxu0 0
      %2126 = vmatprep.subr.bf16.mxu0 0
      %2127 = vmatpush1.bf16.msra.mxu0 0
      %2128 = vmatprep.mubr.bf16.mxu0 0
      %2129 = vmatmul.mubr.bf16.gmra.mrb[0].mxu0 %v2094
      %v2130 = vpop.f32.mrb[0].mxu0
      %v2131 = vadd.f32 0.0, %v2130
      %v2132 = vpop.f32.mrb[0].mxu0
      %v2133 = vpop.f32.mrb[0].mxu0
      %v2134 = vpop.f32.mrb[0].mxu0
      %2135 = vdwg.mxu0
      %v2136 = vadd.f32 %v2074, %v2131
      %v2137 = vld [vmem:[%s2083] sm:$0xf]
      %v2138 = vld [vmem:[%s2083 + $0x4] sm:$0x1]
      %v2139 = vld [vmem:[%s360] sm:$0xf]
      %v2140 = vld [vmem:[%s360 + $0x4] sm:$0xf]
      %v2143 = vunpack.c.l.b16 %v2137
      %v2144 = vunpack.c.l.b16 %v2138
      %v2145 = vpack.c.b16 %v2144, %v2143
      %v2147 = vshrl.u32 %v2145, 16
      %v2149 = vshll.u32 %v2145, 16
      %v2151 = vrot.slane %v2149, 1
      %v2152 = vor.u32 %v2147, %v2151
      %v2155 = vunpack.c.l.b16 %v2139
      %v2156 = vunpack.c.l.b16 %v2140
      %v2157 = vpack.c.b16 %v2156, %v2155
      %v2160 = vsel %vm206, %v2152, 0
      %2162 = vmatprep.subr.bf16.mxu0 0
      %2163 = vmatpush1.bf16.msra.mxu0 %v2157
      %2164 = vmatprep.subr.bf16.mxu0 0
      %2165 = vmatpush1.bf16.msra.mxu0 0
      %2166 = vmatprep.subr.bf16.mxu0 0
      %2167 = vmatpush1.bf16.msra.mxu0 0
      %2168 = vmatprep.subr.bf16.mxu0 0
      %2169 = vmatpush1.bf16.msra.mxu0 0
      %2170 = vmatprep.subr.bf16.mxu0 0
      %2171 = vmatpush1.bf16.msra.mxu0 0
      %2172 = vmatprep.subr.bf16.mxu0 0
      %2173 = vmatpush1.bf16.msra.mxu0 0
      %2174 = vmatprep.subr.bf16.mxu0 0
      %2175 = vmatpush1.bf16.msra.mxu0 0
      %2176 = vmatprep.subr.bf16.mxu0 0
      %2177 = vmatpush1.bf16.msra.mxu0 0
      %2178 = vmatprep.subr.bf16.mxu0 0
      %2179 = vmatpush1.bf16.msra.mxu0 0
      %2180 = vmatprep.subr.bf16.mxu0 0
      %2181 = vmatpush1.bf16.msra.mxu0 0
      %2182 = vmatprep.subr.bf16.mxu0 0
      %2183 = vmatpush1.bf16.msra.mxu0 0
      %2184 = vmatprep.subr.bf16.mxu0 0
      %2185 = vmatpush1.bf16.msra.mxu0 0
      %2186 = vmatprep.subr.bf16.mxu0 0
      %2187 = vmatpush1.bf16.msra.mxu0 0
      %2188 = vmatprep.subr.bf16.mxu0 0
      %2189 = vmatpush1.bf16.msra.mxu0 0
      %2190 = vmatprep.subr.bf16.mxu0 0
      %2191 = vmatpush1.bf16.msra.mxu0 0
      %2192 = vmatprep.subr.bf16.mxu0 0
      %2193 = vmatpush1.bf16.msra.mxu0 0
      %2194 = vmatprep.mubr.bf16.mxu0 0
      %2195 = vmatmul.mubr.bf16.gmra.mrb[0].mxu0 %v2160
      %v2196 = vpop.f32.mrb[0].mxu0
      %v2197 = vadd.f32 0.0, %v2196
      %v2198 = vpop.f32.mrb[0].mxu0
      %v2199 = vpop.f32.mrb[0].mxu0
      %v2200 = vpop.f32.mrb[0].mxu0
      %2201 = vdwg.mxu0
      %v2202 = vadd.f32 %v2136, %v2197
      %v2203 = vld [vmem:[%s2] sm:$0x1]
      %v2205 = vlaneseq
      %v2206 = vshrl.u32 %v2205, 7
      %v2207 = vsub.s32 0, %v2206
      %v2208 = vrot.slane %v2203, %v2207
      %v2210 = vadd.f32 %v2202, %v2208
      %vm2211 = vcmp.ge.f32.partialorder %v2210, 0.0
      %v2212 = vmul.f32 %v2210, 0.01
      %v2213 = vsel %vm2211, %v2210, %v2212
      %v2214 = vpack.c.bf16 %v2213, %v2213
      %s2215 = scalar_lea.vmem %s172, 28
      %2216 = vst.msk [vmem:[%s2215] sm:$0xf] %vm437, %v2214
      %s2217 = smul.u32 8, %s19
      %p2218 = scmp.lt.s32.totalorder %s18, 1
      %s2219 = scalar_select %p2218, %s18, 1
      %p2220 = scmp.lt.s32.totalorder %s2217, 7
      %s2221 = scalar_select %p2220, %s2217, 7
      %s2222 = smul.addr %s2219, 8
      %s2223 = sadd.s32 %s2221, %s2222
      %s2224 = smul.addr %s2223, 4
      %s2225 = scalar_lea.vmem %s3, %s2224
      // Predicated region
      $region33: #{_lambda_.2} parent=31 // pred_check
        %p2226 = pneg %p109
      $region34: #{_lambda_.2} parent=31 // pred_check_branch
        %2228 = sbr.rel (%p2226) target = $region36
      $region35: #{_lambda_.2} parent=31 // pred_region
        %s2229 = smul.u32 8, %s19
      $region36: #{_lambda_.2} parent=31 // pred_fallthru
        _
    $region32: #{_lambda_.2} parent=5 // pred_fallthru
      _
    %p2230 = scmp.le.s32.totalorder 2, %s9
    // Predicated region
    $region37: #{_lambda_.2} parent=5 // pred_check
      %p2231 = pneg %p2230
    $region38: #{_lambda_.2} parent=5 // pred_check_branch
      %2233 = sbr.rel (%p2231) target = $region40
    $region39: #{_lambda_.2} parent=5 // pred_region
      %s2234 = ssub.s32 %s9, 2
      // Predicated region
      $region41: #{_lambda_.2} parent=39 // pred_check
        %p2235 = pneg %p115
      $region42: #{_lambda_.2} parent=39 // pred_check_branch
        %2237 = sbr.rel (%p2235) target = $region44
      $region43: #{_lambda_.2} parent=39 // pred_region
        %s2238 = smul.u32 8, %s21
        %p2239 = scmp.lt.s32.totalorder %s20, 1
        %s2240 = scalar_select %p2239, %s20, 1
        %p2241 = scmp.lt.s32.totalorder %s2238, 7
        %s2242 = scalar_select %p2241, %s2238, 7
        %s2243 = smul.addr %s2240, 8
        %s2244 = sadd.s32 %s2242, %s2243
        %s2245 = smul.addr %s2244, 4
        %s2246 = scalar_lea.vmem %s3, %s2245
      $region44: #{_lambda_.2} parent=39 // pred_fallthru
        _
    $region40: #{_lambda_.2} parent=5 // pred_fallthru
      _
  $region6: #{_lambda_.2} parent=0 // loop_footer
    %s13 = sadd.s32 1, %s9
  $region7: #{_lambda_.2} parent=0 // loop_footer_branch
    %8 = sbr.rel target = $region3
  $region8: #{_lambda_.2} parent=0 // loop_exit
    _

</llo_original>
